<compile_context>
chip_gen: v7x
topology: tpu7x:2x2x1
jax: 0.10.0
libtpu: 0.0.40
codegen_flags: <defaults>
</compile_context>

<pallas_src>
import jax
import jax.numpy as jnp
from jax.experimental import pallas as pl
from jax.experimental.pallas import tpu as pltpu


# Logical (PyTorch) dims and lane-aligned padded dims.
D_IN, D_H1, D_H2, D_OUT = 784, 1000, 100, 1
D_IN_P, D_H1_P, D_H2_P, D_OUT_P = 896, 1024, 128, 128

NEG_SLOPE = 0.01


def _leaky_relu(v):
    # max(v, 0.01*v) == LeakyReLU(0.01) for any sign of v; 1 mul + 1 max.
    return jnp.maximum(v, NEG_SLOPE * v)


def fcn3_kernel(x_ref, w1_ref, w2_ref, w3_ref, o_ref):
    # layer 1: (TB, 896) bf16 @ (896, 1024) bf16 -> f32 accumulate -> LeakyReLU
    h = _leaky_relu(
        jnp.dot(x_ref[...], w1_ref[...], preferred_element_type=jnp.float32)
    )
    # layer 2: (TB, 1024) @ (1024, 128)
    h = _leaky_relu(
        jnp.dot(h.astype(jnp.bfloat16), w2_ref[...],
                preferred_element_type=jnp.float32)
    )
    # layer 3: (TB, 128) @ (128, 128) -- lane-dense padded output slab
    h = _leaky_relu(
        jnp.dot(h.astype(jnp.bfloat16), w3_ref[...],
                preferred_element_type=jnp.float32)
    )
    o_ref[...] = h.astype(o_ref.dtype)


def init_params(key):
    """nn.Linear-style uniform init (no bias), transposed to (in, out),
    zero-padded to lane-aligned shapes and stored as bf16."""
    k1, k2, k3 = jax.random.split(key, 3)

    def uniform_w(k, fan_in, fan_out, pad_in, pad_out):
        bound = 1.0 / jnp.sqrt(fan_in)
        w = jax.random.uniform(
            k, (fan_in, fan_out), dtype=jnp.float32, minval=-bound, maxval=bound
        )
        w = jnp.pad(w, ((0, pad_in - fan_in), (0, pad_out - fan_out)))
        return w.astype(jnp.bfloat16)

    w1_t = uniform_w(k1, D_IN, D_H1, D_IN_P, D_H1_P)    # (896, 1024) bf16
    w2_t = uniform_w(k2, D_H1, D_H2, D_H1_P, D_H2_P)    # (1024, 128) bf16
    w3_t = uniform_w(k3, D_H2, D_OUT, D_H2_P, D_OUT_P)  # (128, 128)  bf16
    return w1_t, w2_t, w3_t


def fcn3_forward(x_nchw, params, *, tb=256):
    """Replicates FCN3.forward: returns (output, x_shape list)."""
    w1_t, w2_t, w3_t = params
    B = x_nchw.shape[0]

    # flatten(1) before the first Linear (row-major, same as torch).
    x2d = x_nchw.reshape(B, -1).astype(jnp.float32)
    assert x2d.shape[1] == D_IN, f"expected {D_IN} flattened features"

    # x_shape records the activation shape seen before each layer,
    # matching the PyTorch module semantics.
    x_shape = [(B, D_IN), (B, D_H1), (B, D_H2)]

    # Batch tile: multiple of 8 sublanes; pad batch up to a multiple of TB.
    b_aligned = max(8, ((B + 7) // 8) * 8)
    TB = min(tb, b_aligned)
    Bp = pl.cdiv(b_aligned, TB) * TB

    # Pad features 784 -> 896 and batch B -> Bp with zeros; ship as bf16.
    x_pad = jnp.pad(x2d, ((0, Bp - B), (0, D_IN_P - D_IN))).astype(jnp.bfloat16)

    grid = (Bp // TB,)
    out_padded = pl.pallas_call(
        fcn3_kernel,
        out_shape=jax.ShapeDtypeStruct((Bp, D_OUT_P), jnp.float32),
        grid=grid,
        in_specs=[
            pl.BlockSpec((TB, D_IN_P), lambda i: (i, 0)),
            # Weight tiles pinned to block (0,0): stay VMEM-resident.
            pl.BlockSpec((D_IN_P, D_H1_P), lambda i: (0, 0)),
            pl.BlockSpec((D_H1_P, D_H2_P), lambda i: (0, 0)),
            pl.BlockSpec((D_H2_P, D_OUT_P), lambda i: (0, 0)),
        ],
        out_specs=pl.BlockSpec((TB, D_OUT_P), lambda i: (i, 0)),
        compiler_params=pltpu.CompilerParams(
            dimension_semantics=("parallel",),
        ),
    )(x_pad, w1_t, w2_t, w3_t)

    out = out_padded[:B, :D_OUT]
    return out, x_shape


def _reference(x_nchw, params):
    """Pure-JAX reference of the same (bf16-weight, f32-accumulate) math."""
    w1_t, w2_t, w3_t = params
    x = x_nchw.reshape(x_nchw.shape[0], -1).astype(jnp.float32)
    x = jnp.pad(x, ((0, 0), (0, D_IN_P - D_IN))).astype(jnp.bfloat16)
    h = _leaky_relu(jnp.dot(x, w1_t, preferred_element_type=jnp.float32))
    h = _leaky_relu(jnp.dot(h.astype(jnp.bfloat16), w2_t,
                            preferred_element_type=jnp.float32))
    h = _leaky_relu(jnp.dot(h.astype(jnp.bfloat16), w3_t,
                            preferred_element_type=jnp.float32))
    return h[:, :D_OUT]


if __name__ == "__main__":
    key = jax.random.PRNGKey(0)
    k_x, k_w = jax.random.split(key)

    # MNIST-like input: batch=2, NCHW (2, 1, 28, 28) -> 784 features.
    x = jax.random.normal(k_x, (2, 1, 28, 28), dtype=jnp.float32)
    params = init_params(k_w)

    out, x_shape = fcn3_forward(x, params)
    out = jax.block_until_ready(out)

    ref = _reference(x, params)
    assert out.shape == (2, 1), out.shape
    assert x_shape == [(2, 784), (2, 1000), (2, 100)], x_shape
    assert jnp.allclose(out, ref, atol=1e-3, rtol=1e-3), (
        float(jnp.max(jnp.abs(out - ref)))
    )

    print("KERNEL_OK")
</pallas_src>

<mosaic_0001>
module attributes {stable_mosaic.version = 11 : i64} {
  func.func @fcn3_kernel(%arg0: i32, %arg1: memref<8x896xbf16, #tpu.memory_space<vmem>>, %arg2: memref<896x1024xbf16, #tpu.memory_space<vmem>>, %arg3: memref<1024x128xbf16, #tpu.memory_space<vmem>>, %arg4: memref<128x128xbf16, #tpu.memory_space<vmem>>, %arg5: memref<8x128xf32, #tpu.memory_space<vmem>>) attributes {dimension_semantics = [#tpu.dimension_semantics<parallel>], iteration_bounds = array<i64: 1>, scalar_prefetch = 0 : i64, scratch_operands = 0 : i64, tpu.core_type = #tpu.core_type<tc>, window_params = [{transform_indices = @transform_0, window_bounds = array<i64: 8, 896>}, {pipeline_mode = #tpu.pipeline_mode<synchronous>, transform_indices = @transform_1, window_bounds = array<i64: 896, 1024>}, {pipeline_mode = #tpu.pipeline_mode<synchronous>, transform_indices = @transform_2, window_bounds = array<i64: 1024, 128>}, {pipeline_mode = #tpu.pipeline_mode<synchronous>, transform_indices = @transform_3, window_bounds = array<i64: 128, 128>}, {transform_indices = @transform_4, window_bounds = array<i64: 8, 128>}]} {
    %c0 = arith.constant 0 : index
    %c0_0 = arith.constant 0 : index
    %0 = vector.load %arg1[%c0, %c0_0] : memref<8x896xbf16, #tpu.memory_space<vmem>>, vector<8x896xbf16>
    %c0_1 = arith.constant 0 : index
    %c0_2 = arith.constant 0 : index
    %1 = vector.load %arg2[%c0_1, %c0_2] : memref<896x1024xbf16, #tpu.memory_space<vmem>>, vector<896x1024xbf16>
    %cst = arith.constant dense<0.000000e+00> : vector<8x1024xf32>
    %2 = tpu.matmul %0, %1, %cst {dimension_numbers = #tpu.dot_dimension_numbers<[1], [0], [0], [1], [0, 0, 1, 1], [], []>} : vector<8x896xbf16>, vector<896x1024xbf16>, vector<8x1024xf32> -> vector<8x1024xf32>
    %cst_3 = arith.constant 0.00999999977 : f32
    %3 = vector.broadcast %cst_3 : f32 to vector<8x1024xf32>
    %4 = arith.mulf %3, %2 : vector<8x1024xf32>
    %5 = arith.maximumf %2, %4 : vector<8x1024xf32>
    %6 = arith.truncf %5 : vector<8x1024xf32> to vector<8x1024xbf16>
    %c0_4 = arith.constant 0 : index
    %c0_5 = arith.constant 0 : index
    %7 = vector.load %arg3[%c0_4, %c0_5] : memref<1024x128xbf16, #tpu.memory_space<vmem>>, vector<1024x128xbf16>
    %cst_6 = arith.constant dense<0.000000e+00> : vector<8x128xf32>
    %8 = tpu.matmul %6, %7, %cst_6 {dimension_numbers = #tpu.dot_dimension_numbers<[1], [0], [0], [1], [0, 0, 1, 1], [], []>} : vector<8x1024xbf16>, vector<1024x128xbf16>, vector<8x128xf32> -> vector<8x128xf32>
    %cst_7 = arith.constant 0.00999999977 : f32
    %9 = vector.broadcast %cst_7 : f32 to vector<8x128xf32>
    %10 = arith.mulf %9, %8 : vector<8x128xf32>
    %11 = arith.maximumf %8, %10 : vector<8x128xf32>
    %12 = arith.truncf %11 : vector<8x128xf32> to vector<8x128xbf16>
    %c0_8 = arith.constant 0 : index
    %c0_9 = arith.constant 0 : index
    %13 = vector.load %arg4[%c0_8, %c0_9] : memref<128x128xbf16, #tpu.memory_space<vmem>>, vector<128x128xbf16>
    %cst_10 = arith.constant dense<0.000000e+00> : vector<8x128xf32>
    %14 = tpu.matmul %12, %13, %cst_10 {dimension_numbers = #tpu.dot_dimension_numbers<[1], [0], [0], [1], [0, 0, 1, 1], [], []>} : vector<8x128xbf16>, vector<128x128xbf16>, vector<8x128xf32> -> vector<8x128xf32>
    %cst_11 = arith.constant 0.00999999977 : f32
    %15 = vector.broadcast %cst_11 : f32 to vector<8x128xf32>
    %16 = arith.mulf %15, %14 : vector<8x128xf32>
    %17 = arith.maximumf %14, %16 : vector<8x128xf32>
    %c0_12 = arith.constant 0 : index
    %c0_13 = arith.constant 0 : index
    %18 = vector.load %arg5[%c0_12, %c0_13] : memref<8x128xf32, #tpu.memory_space<vmem>>, vector<8x128xf32>
    tpu.vector_store %arg5[%c0_12, %c0_13], %17 {strides = array<i32>} : memref<8x128xf32, #tpu.memory_space<vmem>>, vector<8x128xf32>,
    return
  }
  func.func @transform_0(%arg0: i32) -> (i32, i32) {
    %c0_i32 = arith.constant 0 : i32
    %c0_i32_0 = arith.constant 0 : i32
    return %arg0, %c0_i32 : i32, i32
  }
  func.func @transform_1(%arg0: i32) -> (i32, i32) {
    %c0_i32 = arith.constant 0 : i32
    %c0_i32_0 = arith.constant 0 : i32
    %c0_i32_1 = arith.constant 0 : i32
    return %c0_i32, %c0_i32_0 : i32, i32
  }
  func.func @transform_2(%arg0: i32) -> (i32, i32) {
    %c0_i32 = arith.constant 0 : i32
    %c0_i32_0 = arith.constant 0 : i32
    %c0_i32_1 = arith.constant 0 : i32
    return %c0_i32, %c0_i32_0 : i32, i32
  }
  func.func @transform_3(%arg0: i32) -> (i32, i32) {
    %c0_i32 = arith.constant 0 : i32
    %c0_i32_0 = arith.constant 0 : i32
    %c0_i32_1 = arith.constant 0 : i32
    return %c0_i32, %c0_i32_0 : i32, i32
  }
  func.func @transform_4(%arg0: i32) -> (i32, i32) {
    %c0_i32 = arith.constant 0 : i32
    %c0_i32_0 = arith.constant 0 : i32
    return %arg0, %c0_i32 : i32, i32
  }
}

</mosaic_0001>

<llo_original>
// kernel: tpu_custom_call.1
$region0: #{tpu_custom_call.1}
  #allocation0 [shape = 'u32[]', space=smem, size = 0x4, offset = 0x4, fixed_abs, tag = 'smem constant byte address 0x4 - core index']
  #allocation1 [shape = 'u32[144,128]{1,0:T(1,128)}', space=vmem, size = 0x12000, scoped, tag = 'internal scratch']
  %s0 = inlined_call_operand.hbm [shape: bf16[8,896], index: 0, kind: input, shape index: {}]
  %s1 = inlined_call_operand.hbm [shape: bf16[896,1024], index: 1, kind: input, shape index: {}]
  %s2 = inlined_call_operand.hbm [shape: bf16[1024,128], index: 2, kind: input, shape index: {}]
  %s3 = inlined_call_operand.hbm [shape: bf16[128,128], index: 3, kind: input, shape index: {}]
  %s4 = inlined_call_operand.hbm [shape: f32[8,128], index: 4, kind: output, shape index: {}]
  %s5 = sld [smem:[#allocation0]]
  $region42: #{tpu_custom_call.1} parent=0
    _
  %s7 = ssub.s32 1, %s5
  %s8 = scalar_select 0, %s7, %s5
  $region1: #{tpu_custom_call.1} parent=0
    #allocation2 [shape = 'u8[14336]{0}', space=vmem, size = 0x3800, scoped, tag = 'input window, operand 0, single buffered']
    #allocation3 [shape = 's32[1]{0}', space=sflag, size = 0x4, scoped, tag = 'scoped memory for tpu_custom_call.1']
    #allocation4 [shape = 's32[1]{0}', space=sflag, size = 0x4, scoped, tag = 'scoped memory for tpu_custom_call.1']
    #allocation5 [shape = 'u8[1835008]{0}', space=vmem, size = 0x1c0000, scoped, tag = 'input window, operand 1, single buffered']
    #allocation6 [shape = 's32[1]{0}', space=sflag, size = 0x4, scoped, tag = 'scoped memory for tpu_custom_call.1']
    #allocation7 [shape = 'u8[262144]{0}', space=vmem, size = 0x40000, scoped, tag = 'input window, operand 2, single buffered']
    #allocation8 [shape = 'u8[32768]{0}', space=vmem, size = 0x8000, scoped, tag = 'input window, operand 3, single buffered']
    #allocation9 [shape = 's32[1]{0}', space=sflag, size = 0x4, scoped, tag = 'scoped memory for tpu_custom_call.1']
    #allocation10 [shape = 'u8[4096]{0}', space=vmem, size = 0x1000, scoped, tag = 'output window, operand 0, single buffered']
    %9 = vsyncpa [#allocation3], 0
    %10 = vsyncpa [#allocation6], 0
    %11 = vsyncpa [#allocation9], 0
    %12 = vsyncpa [#allocation4], 0
    // Predicated region
    $region2: #{tpu_custom_call.1} parent=1 // pred_check
      _
    $region3: #{tpu_custom_call.1} parent=1 // pred_check_branch
      %14 = sbr.rel (0) target = $region5
    $region4: #{tpu_custom_call.1} parent=1 // pred_region
      %s16 = ssub.s32 448, 448
      %17 = vsyncadd [#allocation3], %s16
      %s19 = sshll.u32 [#allocation2], 4
      %s20 = int_to_ptr.vmem [resolvable:$true] %s19
      %22 = dma.hbm_to_vmem [thread:$0]  %s0, 448, %s20, [#allocation3]
    $region5: #{tpu_custom_call.1} parent=1 // pred_fallthru
      _
    // Predicated region
    $region6: #{tpu_custom_call.1} parent=1 // pred_check
      _
    $region7: #{tpu_custom_call.1} parent=1 // pred_check_branch
      %24 = sbr.rel (0) target = $region9
    $region8: #{tpu_custom_call.1} parent=1 // pred_region
      %s26 = ssub.s32 57344, 57344
      %27 = vsyncadd [#allocation6], %s26
      %s28 = sshll.u32 [#allocation5], 4
      %s29 = int_to_ptr.vmem [resolvable:$true] %s28
      %34 = dma.hbm_to_vmem [thread:$0]  %s1, 57344, %s29, [#allocation6], 512, 512, 32
    $region9: #{tpu_custom_call.1} parent=1 // pred_fallthru
      _
    // Predicated region
    $region10: #{tpu_custom_call.1} parent=1 // pred_check
      _
    $region11: #{tpu_custom_call.1} parent=1 // pred_check_branch
      %36 = sbr.rel (0) target = $region13
    $region12: #{tpu_custom_call.1} parent=1 // pred_region
      %s38 = ssub.s32 8192, 8192
      %39 = vsyncadd [#allocation6], %s38
      %s40 = sshll.u32 [#allocation7], 4
      %s41 = int_to_ptr.vmem [resolvable:$true] %s40
      %46 = dma.hbm_to_vmem [thread:$0]  %s2, 8192, %s41, [#allocation6], 64, 64, 4
    $region13: #{tpu_custom_call.1} parent=1 // pred_fallthru
      _
    // Predicated region
    $region14: #{tpu_custom_call.1} parent=1 // pred_check
      _
    $region15: #{tpu_custom_call.1} parent=1 // pred_check_branch
      %48 = sbr.rel (0) target = $region17
    $region16: #{tpu_custom_call.1} parent=1 // pred_region
      %s50 = ssub.s32 1024, 1024
      %51 = vsyncadd [#allocation9], %s50
      %s52 = sshll.u32 [#allocation8], 4
      %s53 = int_to_ptr.vmem [resolvable:$true] %s52
      %58 = dma.hbm_to_vmem [thread:$0]  %s3, 1024, %s53, [#allocation9], 64, 64, 4
    $region17: #{tpu_custom_call.1} parent=1 // pred_fallthru
      _
    // Predicated region
    $region18: #{tpu_custom_call.1} parent=1 // pred_check
      _
    $region19: #{tpu_custom_call.1} parent=1 // pred_check_branch
      %60 = sbr.rel (0) target = $region21
    $region20: #{tpu_custom_call.1} parent=1 // pred_region
      %61 = dma.done [#allocation3], 448
    $region21: #{tpu_custom_call.1} parent=1 // pred_fallthru
      _
    // Predicated region
    $region22: #{tpu_custom_call.1} parent=1 // pred_check
      _
    $region23: #{tpu_custom_call.1} parent=1 // pred_check_branch
      %63 = sbr.rel (0) target = $region25
    $region24: #{tpu_custom_call.1} parent=1 // pred_region
      %64 = dma.done [#allocation6], 57344
    $region25: #{tpu_custom_call.1} parent=1 // pred_fallthru
      _
    // Predicated region
    $region26: #{tpu_custom_call.1} parent=1 // pred_check
      _
    $region27: #{tpu_custom_call.1} parent=1 // pred_check_branch
      %66 = sbr.rel (0) target = $region29
    $region28: #{tpu_custom_call.1} parent=1 // pred_region
      %67 = dma.done [#allocation6], 8192
    $region29: #{tpu_custom_call.1} parent=1 // pred_fallthru
      _
    // Predicated region
    $region30: #{tpu_custom_call.1} parent=1 // pred_check
      _
    $region31: #{tpu_custom_call.1} parent=1 // pred_check_branch
      %69 = sbr.rel (0) target = $region33
    $region32: #{tpu_custom_call.1} parent=1 // pred_region
      %70 = dma.done [#allocation9], 1024
    $region33: #{tpu_custom_call.1} parent=1 // pred_fallthru
      _
    %v72 = vld [vmem:[#allocation2] sm:$0xff]
    %v73 = vld [vmem:[#allocation2 + $0x8] sm:$0xff]
    %v74 = vld [vmem:[#allocation2 + $0x10] sm:$0xff]
    %v75 = vld [vmem:[#allocation2 + $0x18] sm:$0xf]
    %v76 = vld [vmem:[#allocation5] sm:$0xff]
    %v77 = vld [vmem:[#allocation5 + $0x8] sm:$0xff]
    %v78 = vld [vmem:[#allocation5 + $0x10] sm:$0xff]
    %v79 = vld [vmem:[#allocation5 + $0x18] sm:$0xff]
    %v80 = vld [vmem:[#allocation5 + $0x20] sm:$0xff]
    %v81 = vld [vmem:[#allocation5 + $0x28] sm:$0xff]
    %v82 = vld [vmem:[#allocation5 + $0x30] sm:$0xff]
    %v83 = vld [vmem:[#allocation5 + $0x38] sm:$0xff]
    %v84 = vld [vmem:[#allocation5 + $0x40] sm:$0xff]
    %v85 = vld [vmem:[#allocation5 + $0x48] sm:$0xff]
    %v86 = vld [vmem:[#allocation5 + $0x50] sm:$0xff]
    %v87 = vld [vmem:[#allocation5 + $0x58] sm:$0xff]
    %v88 = vld [vmem:[#allocation5 + $0x60] sm:$0xff]
    %v89 = vld [vmem:[#allocation5 + $0x68] sm:$0xff]
    %v90 = vld [vmem:[#allocation5 + $0x70] sm:$0xff]
    %v91 = vld [vmem:[#allocation5 + $0x78] sm:$0xff]
    %v92 = vld [vmem:[#allocation5 + $0x80] sm:$0xff]
    %v93 = vld [vmem:[#allocation5 + $0x88] sm:$0xff]
    %v94 = vld [vmem:[#allocation5 + $0x90] sm:$0xff]
    %v95 = vld [vmem:[#allocation5 + $0x98] sm:$0xff]
    %v96 = vld [vmem:[#allocation5 + $0xa0] sm:$0xff]
    %v97 = vld [vmem:[#allocation5 + $0xa8] sm:$0xff]
    %v98 = vld [vmem:[#allocation5 + $0xb0] sm:$0xff]
    %v99 = vld [vmem:[#allocation5 + $0xb8] sm:$0xff]
    %v100 = vld [vmem:[#allocation5 + $0xc0] sm:$0xff]
    %v101 = vld [vmem:[#allocation5 + $0xc8] sm:$0xff]
    %v102 = vld [vmem:[#allocation5 + $0xd0] sm:$0xff]
    %v103 = vld [vmem:[#allocation5 + $0xd8] sm:$0xff]
    %v104 = vld [vmem:[#allocation5 + $0xe0] sm:$0xff]
    %v105 = vld [vmem:[#allocation5 + $0xe8] sm:$0xff]
    %v106 = vld [vmem:[#allocation5 + $0xf0] sm:$0xff]
    %v107 = vld [vmem:[#allocation5 + $0xf8] sm:$0xff]
    %v108 = vld [vmem:[#allocation5 + $0x100] sm:$0xff]
    %v109 = vld [vmem:[#allocation5 + $0x108] sm:$0xff]
    %v110 = vld [vmem:[#allocation5 + $0x110] sm:$0xff]
    %v111 = vld [vmem:[#allocation5 + $0x118] sm:$0xff]
    %v112 = vld [vmem:[#allocation5 + $0x120] sm:$0xff]
    %v113 = vld [vmem:[#allocation5 + $0x128] sm:$0xff]
    %v114 = vld [vmem:[#allocation5 + $0x130] sm:$0xff]
    %v115 = vld [vmem:[#allocation5 + $0x138] sm:$0xff]
    %v116 = vld [vmem:[#allocation5 + $0x140] sm:$0xff]
    %v117 = vld [vmem:[#allocation5 + $0x148] sm:$0xff]
    %v118 = vld [vmem:[#allocation5 + $0x150] sm:$0xff]
    %v119 = vld [vmem:[#allocation5 + $0x158] sm:$0xff]
    %v120 = vld [vmem:[#allocation5 + $0x160] sm:$0xff]
    %v121 = vld [vmem:[#allocation5 + $0x168] sm:$0xff]
    %v122 = vld [vmem:[#allocation5 + $0x170] sm:$0xff]
    %v123 = vld [vmem:[#allocation5 + $0x178] sm:$0xff]
    %v124 = vld [vmem:[#allocation5 + $0x180] sm:$0xff]
    %v125 = vld [vmem:[#allocation5 + $0x188] sm:$0xff]
    %v126 = vld [vmem:[#allocation5 + $0x190] sm:$0xff]
    %v127 = vld [vmem:[#allocation5 + $0x198] sm:$0xff]
    %v128 = vld [vmem:[#allocation5 + $0x1a0] sm:$0xff]
    %v129 = vld [vmem:[#allocation5 + $0x1a8] sm:$0xff]
    %v130 = vld [vmem:[#allocation5 + $0x1b0] sm:$0xff]
    %v131 = vld [vmem:[#allocation5 + $0x1b8] sm:$0xff]
    %v132 = vld [vmem:[#allocation5 + $0x1c0] sm:$0xff]
    %v133 = vld [vmem:[#allocation5 + $0x1c8] sm:$0xff]
    %v134 = vld [vmem:[#allocation5 + $0x1d0] sm:$0xff]
    %v135 = vld [vmem:[#allocation5 + $0x1d8] sm:$0xff]
    %v136 = vld [vmem:[#allocation5 + $0x1e0] sm:$0xff]
    %v137 = vld [vmem:[#allocation5 + $0x1e8] sm:$0xff]
    %v138 = vld [vmem:[#allocation5 + $0x1f0] sm:$0xff]
    %v139 = vld [vmem:[#allocation5 + $0x1f8] sm:$0xff]
    %v140 = vld [vmem:[#allocation5 + $0x200] sm:$0xff]
    %v141 = vld [vmem:[#allocation5 + $0x208] sm:$0xff]
    %v142 = vld [vmem:[#allocation5 + $0x210] sm:$0xff]
    %v143 = vld [vmem:[#allocation5 + $0x218] sm:$0xff]
    %v144 = vld [vmem:[#allocation5 + $0x220] sm:$0xff]
    %v145 = vld [vmem:[#allocation5 + $0x228] sm:$0xff]
    %v146 = vld [vmem:[#allocation5 + $0x230] sm:$0xff]
    %v147 = vld [vmem:[#allocation5 + $0x238] sm:$0xff]
    %v148 = vld [vmem:[#allocation5 + $0x240] sm:$0xff]
    %v149 = vld [vmem:[#allocation5 + $0x248] sm:$0xff]
    %v150 = vld [vmem:[#allocation5 + $0x250] sm:$0xff]
    %v151 = vld [vmem:[#allocation5 + $0x258] sm:$0xff]
    %v152 = vld [vmem:[#allocation5 + $0x260] sm:$0xff]
    %v153 = vld [vmem:[#allocation5 + $0x268] sm:$0xff]
    %v154 = vld [vmem:[#allocation5 + $0x270] sm:$0xff]
    %v155 = vld [vmem:[#allocation5 + $0x278] sm:$0xff]
    %v156 = vld [vmem:[#allocation5 + $0x280] sm:$0xff]
    %v157 = vld [vmem:[#allocation5 + $0x288] sm:$0xff]
    %v158 = vld [vmem:[#allocation5 + $0x290] sm:$0xff]
    %v159 = vld [vmem:[#allocation5 + $0x298] sm:$0xff]
    %v160 = vld [vmem:[#allocation5 + $0x2a0] sm:$0xff]
    %v161 = vld [vmem:[#allocation5 + $0x2a8] sm:$0xff]
    %v162 = vld [vmem:[#allocation5 + $0x2b0] sm:$0xff]
    %v163 = vld [vmem:[#allocation5 + $0x2b8] sm:$0xff]
    %v164 = vld [vmem:[#allocation5 + $0x2c0] sm:$0xff]
    %v165 = vld [vmem:[#allocation5 + $0x2c8] sm:$0xff]
    %v166 = vld [vmem:[#allocation5 + $0x2d0] sm:$0xff]
    %v167 = vld [vmem:[#allocation5 + $0x2d8] sm:$0xff]
    %v168 = vld [vmem:[#allocation5 + $0x2e0] sm:$0xff]
    %v169 = vld [vmem:[#allocation5 + $0x2e8] sm:$0xff]
    %v170 = vld [vmem:[#allocation5 + $0x2f0] sm:$0xff]
    %v171 = vld [vmem:[#allocation5 + $0x2f8] sm:$0xff]
    %v172 = vld [vmem:[#allocation5 + $0x300] sm:$0xff]
    %v173 = vld [vmem:[#allocation5 + $0x308] sm:$0xff]
    %v174 = vld [vmem:[#allocation5 + $0x310] sm:$0xff]
    %v175 = vld [vmem:[#allocation5 + $0x318] sm:$0xff]
    %v176 = vld [vmem:[#allocation5 + $0x320] sm:$0xff]
    %v177 = vld [vmem:[#allocation5 + $0x328] sm:$0xff]
    %v178 = vld [vmem:[#allocation5 + $0x330] sm:$0xff]
    %v179 = vld [vmem:[#allocation5 + $0x338] sm:$0xff]
    %v180 = vld [vmem:[#allocation5 + $0x340] sm:$0xff]
    %v181 = vld [vmem:[#allocation5 + $0x348] sm:$0xff]
    %v182 = vld [vmem:[#allocation5 + $0x350] sm:$0xff]
    %v183 = vld [vmem:[#allocation5 + $0x358] sm:$0xff]
    %v184 = vld [vmem:[#allocation5 + $0x360] sm:$0xff]
    %v185 = vld [vmem:[#allocation5 + $0x368] sm:$0xff]
    %v186 = vld [vmem:[#allocation5 + $0x370] sm:$0xff]
    %v187 = vld [vmem:[#allocation5 + $0x378] sm:$0xff]
    %v188 = vld [vmem:[#allocation5 + $0x380] sm:$0xff]
    %v189 = vld [vmem:[#allocation5 + $0x388] sm:$0xff]
    %v190 = vld [vmem:[#allocation5 + $0x390] sm:$0xff]
    %v191 = vld [vmem:[#allocation5 + $0x398] sm:$0xff]
    %v192 = vld [vmem:[#allocation5 + $0x3a0] sm:$0xff]
    %v193 = vld [vmem:[#allocation5 + $0x3a8] sm:$0xff]
    %v194 = vld [vmem:[#allocation5 + $0x3b0] sm:$0xff]
    %v195 = vld [vmem:[#allocation5 + $0x3b8] sm:$0xff]
    %v196 = vld [vmem:[#allocation5 + $0x3c0] sm:$0xff]
    %v197 = vld [vmem:[#allocation5 + $0x3c8] sm:$0xff]
    %v198 = vld [vmem:[#allocation5 + $0x3d0] sm:$0xff]
    %v199 = vld [vmem:[#allocation5 + $0x3d8] sm:$0xff]
    %v200 = vld [vmem:[#allocation5 + $0x3e0] sm:$0xff]
    %v201 = vld [vmem:[#allocation5 + $0x3e8] sm:$0xff]
    %v202 = vld [vmem:[#allocation5 + $0x3f0] sm:$0xff]
    %v203 = vld [vmem:[#allocation5 + $0x3f8] sm:$0xff]
    %v204 = vld [vmem:[#allocation5 + $0x400] sm:$0xff]
    %v205 = vld [vmem:[#allocation5 + $0x408] sm:$0xff]
    %v206 = vld [vmem:[#allocation5 + $0x410] sm:$0xff]
    %v207 = vld [vmem:[#allocation5 + $0x418] sm:$0xff]
    %v208 = vld [vmem:[#allocation5 + $0x420] sm:$0xff]
    %v209 = vld [vmem:[#allocation5 + $0x428] sm:$0xff]
    %v210 = vld [vmem:[#allocation5 + $0x430] sm:$0xff]
    %v211 = vld [vmem:[#allocation5 + $0x438] sm:$0xff]
    %v212 = vld [vmem:[#allocation5 + $0x440] sm:$0xff]
    %v213 = vld [vmem:[#allocation5 + $0x448] sm:$0xff]
    %v214 = vld [vmem:[#allocation5 + $0x450] sm:$0xff]
    %v215 = vld [vmem:[#allocation5 + $0x458] sm:$0xff]
    %v216 = vld [vmem:[#allocation5 + $0x460] sm:$0xff]
    %v217 = vld [vmem:[#allocation5 + $0x468] sm:$0xff]
    %v218 = vld [vmem:[#allocation5 + $0x470] sm:$0xff]
    %v219 = vld [vmem:[#allocation5 + $0x478] sm:$0xff]
    %v220 = vld [vmem:[#allocation5 + $0x480] sm:$0xff]
    %v221 = vld [vmem:[#allocation5 + $0x488] sm:$0xff]
    %v222 = vld [vmem:[#allocation5 + $0x490] sm:$0xff]
    %v223 = vld [vmem:[#allocation5 + $0x498] sm:$0xff]
    %v224 = vld [vmem:[#allocation5 + $0x4a0] sm:$0xff]
    %v225 = vld [vmem:[#allocation5 + $0x4a8] sm:$0xff]
    %v226 = vld [vmem:[#allocation5 + $0x4b0] sm:$0xff]
    %v227 = vld [vmem:[#allocation5 + $0x4b8] sm:$0xff]
    %v228 = vld [vmem:[#allocation5 + $0x4c0] sm:$0xff]
    %v229 = vld [vmem:[#allocation5 + $0x4c8] sm:$0xff]
    %v230 = vld [vmem:[#allocation5 + $0x4d0] sm:$0xff]
    %v231 = vld [vmem:[#allocation5 + $0x4d8] sm:$0xff]
    %v232 = vld [vmem:[#allocation5 + $0x4e0] sm:$0xff]
    %v233 = vld [vmem:[#allocation5 + $0x4e8] sm:$0xff]
    %v234 = vld [vmem:[#allocation5 + $0x4f0] sm:$0xff]
    %v235 = vld [vmem:[#allocation5 + $0x4f8] sm:$0xff]
    %v236 = vld [vmem:[#allocation5 + $0x500] sm:$0xff]
    %v237 = vld [vmem:[#allocation5 + $0x508] sm:$0xff]
    %v238 = vld [vmem:[#allocation5 + $0x510] sm:$0xff]
    %v239 = vld [vmem:[#allocation5 + $0x518] sm:$0xff]
    %v240 = vld [vmem:[#allocation5 + $0x520] sm:$0xff]
    %v241 = vld [vmem:[#allocation5 + $0x528] sm:$0xff]
    %v242 = vld [vmem:[#allocation5 + $0x530] sm:$0xff]
    %v243 = vld [vmem:[#allocation5 + $0x538] sm:$0xff]
    %v244 = vld [vmem:[#allocation5 + $0x540] sm:$0xff]
    %v245 = vld [vmem:[#allocation5 + $0x548] sm:$0xff]
    %v246 = vld [vmem:[#allocation5 + $0x550] sm:$0xff]
    %v247 = vld [vmem:[#allocation5 + $0x558] sm:$0xff]
    %v248 = vld [vmem:[#allocation5 + $0x560] sm:$0xff]
    %v249 = vld [vmem:[#allocation5 + $0x568] sm:$0xff]
    %v250 = vld [vmem:[#allocation5 + $0x570] sm:$0xff]
    %v251 = vld [vmem:[#allocation5 + $0x578] sm:$0xff]
    %v252 = vld [vmem:[#allocation5 + $0x580] sm:$0xff]
    %v253 = vld [vmem:[#allocation5 + $0x588] sm:$0xff]
    %v254 = vld [vmem:[#allocation5 + $0x590] sm:$0xff]
    %v255 = vld [vmem:[#allocation5 + $0x598] sm:$0xff]
    %v256 = vld [vmem:[#allocation5 + $0x5a0] sm:$0xff]
    %v257 = vld [vmem:[#allocation5 + $0x5a8] sm:$0xff]
    %v258 = vld [vmem:[#allocation5 + $0x5b0] sm:$0xff]
    %v259 = vld [vmem:[#allocation5 + $0x5b8] sm:$0xff]
    %v260 = vld [vmem:[#allocation5 + $0x5c0] sm:$0xff]
    %v261 = vld [vmem:[#allocation5 + $0x5c8] sm:$0xff]
    %v262 = vld [vmem:[#allocation5 + $0x5d0] sm:$0xff]
    %v263 = vld [vmem:[#allocation5 + $0x5d8] sm:$0xff]
    %v264 = vld [vmem:[#allocation5 + $0x5e0] sm:$0xff]
    %v265 = vld [vmem:[#allocation5 + $0x5e8] sm:$0xff]
    %v266 = vld [vmem:[#allocation5 + $0x5f0] sm:$0xff]
    %v267 = vld [vmem:[#allocation5 + $0x5f8] sm:$0xff]
    %v268 = vld [vmem:[#allocation5 + $0x600] sm:$0xff]
    %v269 = vld [vmem:[#allocation5 + $0x608] sm:$0xff]
    %v270 = vld [vmem:[#allocation5 + $0x610] sm:$0xff]
    %v271 = vld [vmem:[#allocation5 + $0x618] sm:$0xff]
    %v272 = vld [vmem:[#allocation5 + $0x620] sm:$0xff]
    %v273 = vld [vmem:[#allocation5 + $0x628] sm:$0xff]
    %v274 = vld [vmem:[#allocation5 + $0x630] sm:$0xff]
    %v275 = vld [vmem:[#allocation5 + $0x638] sm:$0xff]
    %v276 = vld [vmem:[#allocation5 + $0x640] sm:$0xff]
    %v277 = vld [vmem:[#allocation5 + $0x648] sm:$0xff]
    %v278 = vld [vmem:[#allocation5 + $0x650] sm:$0xff]
    %v279 = vld [vmem:[#allocation5 + $0x658] sm:$0xff]
    %v280 = vld [vmem:[#allocation5 + $0x660] sm:$0xff]
    %v281 = vld [vmem:[#allocation5 + $0x668] sm:$0xff]
    %v282 = vld [vmem:[#allocation5 + $0x670] sm:$0xff]
    %v283 = vld [vmem:[#allocation5 + $0x678] sm:$0xff]
    %v284 = vld [vmem:[#allocation5 + $0x680] sm:$0xff]
    %v285 = vld [vmem:[#allocation5 + $0x688] sm:$0xff]
    %v286 = vld [vmem:[#allocation5 + $0x690] sm:$0xff]
    %v287 = vld [vmem:[#allocation5 + $0x698] sm:$0xff]
    %v288 = vld [vmem:[#allocation5 + $0x6a0] sm:$0xff]
    %v289 = vld [vmem:[#allocation5 + $0x6a8] sm:$0xff]
    %v290 = vld [vmem:[#allocation5 + $0x6b0] sm:$0xff]
    %v291 = vld [vmem:[#allocation5 + $0x6b8] sm:$0xff]
    %v292 = vld [vmem:[#allocation5 + $0x6c0] sm:$0xff]
    %v293 = vld [vmem:[#allocation5 + $0x6c8] sm:$0xff]
    %v294 = vld [vmem:[#allocation5 + $0x6d0] sm:$0xff]
    %v295 = vld [vmem:[#allocation5 + $0x6d8] sm:$0xff]
    %v296 = vld [vmem:[#allocation5 + $0x6e0] sm:$0xff]
    %v297 = vld [vmem:[#allocation5 + $0x6e8] sm:$0xff]
    %v298 = vld [vmem:[#allocation5 + $0x6f0] sm:$0xff]
    %v299 = vld [vmem:[#allocation5 + $0x6f8] sm:$0xff]
    %v300 = vld [vmem:[#allocation5 + $0x700] sm:$0xff]
    %v301 = vld [vmem:[#allocation5 + $0x708] sm:$0xff]
    %v302 = vld [vmem:[#allocation5 + $0x710] sm:$0xff]
    %v303 = vld [vmem:[#allocation5 + $0x718] sm:$0xff]
    %v304 = vld [vmem:[#allocation5 + $0x720] sm:$0xff]
    %v305 = vld [vmem:[#allocation5 + $0x728] sm:$0xff]
    %v306 = vld [vmem:[#allocation5 + $0x730] sm:$0xff]
    %v307 = vld [vmem:[#allocation5 + $0x738] sm:$0xff]
    %v308 = vld [vmem:[#allocation5 + $0x740] sm:$0xff]
    %v309 = vld [vmem:[#allocation5 + $0x748] sm:$0xff]
    %v310 = vld [vmem:[#allocation5 + $0x750] sm:$0xff]
    %v311 = vld [vmem:[#allocation5 + $0x758] sm:$0xff]
    %v312 = vld [vmem:[#allocation5 + $0x760] sm:$0xff]
    %v313 = vld [vmem:[#allocation5 + $0x768] sm:$0xff]
    %v314 = vld [vmem:[#allocation5 + $0x770] sm:$0xff]
    %v315 = vld [vmem:[#allocation5 + $0x778] sm:$0xff]
    %v316 = vld [vmem:[#allocation5 + $0x780] sm:$0xff]
    %v317 = vld [vmem:[#allocation5 + $0x788] sm:$0xff]
    %v318 = vld [vmem:[#allocation5 + $0x790] sm:$0xff]
    %v319 = vld [vmem:[#allocation5 + $0x798] sm:$0xff]
    %v320 = vld [vmem:[#allocation5 + $0x7a0] sm:$0xff]
    %v321 = vld [vmem:[#allocation5 + $0x7a8] sm:$0xff]
    %v322 = vld [vmem:[#allocation5 + $0x7b0] sm:$0xff]
    %v323 = vld [vmem:[#allocation5 + $0x7b8] sm:$0xff]
    %v324 = vld [vmem:[#allocation5 + $0x7c0] sm:$0xff]
    %v325 = vld [vmem:[#allocation5 + $0x7c8] sm:$0xff]
    %v326 = vld [vmem:[#allocation5 + $0x7d0] sm:$0xff]
    %v327 = vld [vmem:[#allocation5 + $0x7d8] sm:$0xff]
    %v328 = vld [vmem:[#allocation5 + $0x7e0] sm:$0xff]
    %v329 = vld [vmem:[#allocation5 + $0x7e8] sm:$0xff]
    %v330 = vld [vmem:[#allocation5 + $0x7f0] sm:$0xff]
    %v331 = vld [vmem:[#allocation5 + $0x7f8] sm:$0xff]
    %v332 = vld [vmem:[#allocation5 + $0x800] sm:$0xff]
    %v333 = vld [vmem:[#allocation5 + $0x808] sm:$0xff]
    %v334 = vld [vmem:[#allocation5 + $0x810] sm:$0xff]
    %v335 = vld [vmem:[#allocation5 + $0x818] sm:$0xff]
    %v336 = vld [vmem:[#allocation5 + $0x820] sm:$0xff]
    %v337 = vld [vmem:[#allocation5 + $0x828] sm:$0xff]
    %v338 = vld [vmem:[#allocation5 + $0x830] sm:$0xff]
    %v339 = vld [vmem:[#allocation5 + $0x838] sm:$0xff]
    %v340 = vld [vmem:[#allocation5 + $0x840] sm:$0xff]
    %v341 = vld [vmem:[#allocation5 + $0x848] sm:$0xff]
    %v342 = vld [vmem:[#allocation5 + $0x850] sm:$0xff]
    %v343 = vld [vmem:[#allocation5 + $0x858] sm:$0xff]
    %v344 = vld [vmem:[#allocation5 + $0x860] sm:$0xff]
    %v345 = vld [vmem:[#allocation5 + $0x868] sm:$0xff]
    %v346 = vld [vmem:[#allocation5 + $0x870] sm:$0xff]
    %v347 = vld [vmem:[#allocation5 + $0x878] sm:$0xff]
    %v348 = vld [vmem:[#allocation5 + $0x880] sm:$0xff]
    %v349 = vld [vmem:[#allocation5 + $0x888] sm:$0xff]
    %v350 = vld [vmem:[#allocation5 + $0x890] sm:$0xff]
    %v351 = vld [vmem:[#allocation5 + $0x898] sm:$0xff]
    %v352 = vld [vmem:[#allocation5 + $0x8a0] sm:$0xff]
    %v353 = vld [vmem:[#allocation5 + $0x8a8] sm:$0xff]
    %v354 = vld [vmem:[#allocation5 + $0x8b0] sm:$0xff]
    %v355 = vld [vmem:[#allocation5 + $0x8b8] sm:$0xff]
    %v356 = vld [vmem:[#allocation5 + $0x8c0] sm:$0xff]
    %v357 = vld [vmem:[#allocation5 + $0x8c8] sm:$0xff]
    %v358 = vld [vmem:[#allocation5 + $0x8d0] sm:$0xff]
    %v359 = vld [vmem:[#allocation5 + $0x8d8] sm:$0xff]
    %v360 = vld [vmem:[#allocation5 + $0x8e0] sm:$0xff]
    %v361 = vld [vmem:[#allocation5 + $0x8e8] sm:$0xff]
    %v362 = vld [vmem:[#allocation5 + $0x8f0] sm:$0xff]
    %v363 = vld [vmem:[#allocation5 + $0x8f8] sm:$0xff]
    %v364 = vld [vmem:[#allocation5 + $0x900] sm:$0xff]
    %v365 = vld [vmem:[#allocation5 + $0x908] sm:$0xff]
    %v366 = vld [vmem:[#allocation5 + $0x910] sm:$0xff]
    %v367 = vld [vmem:[#allocation5 + $0x918] sm:$0xff]
    %v368 = vld [vmem:[#allocation5 + $0x920] sm:$0xff]
    %v369 = vld [vmem:[#allocation5 + $0x928] sm:$0xff]
    %v370 = vld [vmem:[#allocation5 + $0x930] sm:$0xff]
    %v371 = vld [vmem:[#allocation5 + $0x938] sm:$0xff]
    %v372 = vld [vmem:[#allocation5 + $0x940] sm:$0xff]
    %v373 = vld [vmem:[#allocation5 + $0x948] sm:$0xff]
    %v374 = vld [vmem:[#allocation5 + $0x950] sm:$0xff]
    %v375 = vld [vmem:[#allocation5 + $0x958] sm:$0xff]
    %v376 = vld [vmem:[#allocation5 + $0x960] sm:$0xff]
    %v377 = vld [vmem:[#allocation5 + $0x968] sm:$0xff]
    %v378 = vld [vmem:[#allocation5 + $0x970] sm:$0xff]
    %v379 = vld [vmem:[#allocation5 + $0x978] sm:$0xff]
    %v380 = vld [vmem:[#allocation5 + $0x980] sm:$0xff]
    %v381 = vld [vmem:[#allocation5 + $0x988] sm:$0xff]
    %v382 = vld [vmem:[#allocation5 + $0x990] sm:$0xff]
    %v383 = vld [vmem:[#allocation5 + $0x998] sm:$0xff]
    %v384 = vld [vmem:[#allocation5 + $0x9a0] sm:$0xff]
    %v385 = vld [vmem:[#allocation5 + $0x9a8] sm:$0xff]
    %v386 = vld [vmem:[#allocation5 + $0x9b0] sm:$0xff]
    %v387 = vld [vmem:[#allocation5 + $0x9b8] sm:$0xff]
    %v388 = vld [vmem:[#allocation5 + $0x9c0] sm:$0xff]
    %v389 = vld [vmem:[#allocation5 + $0x9c8] sm:$0xff]
    %v390 = vld [vmem:[#allocation5 + $0x9d0] sm:$0xff]
    %v391 = vld [vmem:[#allocation5 + $0x9d8] sm:$0xff]
    %v392 = vld [vmem:[#allocation5 + $0x9e0] sm:$0xff]
    %v393 = vld [vmem:[#allocation5 + $0x9e8] sm:$0xff]
    %v394 = vld [vmem:[#allocation5 + $0x9f0] sm:$0xff]
    %v395 = vld [vmem:[#allocation5 + $0x9f8] sm:$0xff]
    %v396 = vld [vmem:[#allocation5 + $0xa00] sm:$0xff]
    %v397 = vld [vmem:[#allocation5 + $0xa08] sm:$0xff]
    %v398 = vld [vmem:[#allocation5 + $0xa10] sm:$0xff]
    %v399 = vld [vmem:[#allocation5 + $0xa18] sm:$0xff]
    %v400 = vld [vmem:[#allocation5 + $0xa20] sm:$0xff]
    %v401 = vld [vmem:[#allocation5 + $0xa28] sm:$0xff]
    %v402 = vld [vmem:[#allocation5 + $0xa30] sm:$0xff]
    %v403 = vld [vmem:[#allocation5 + $0xa38] sm:$0xff]
    %v404 = vld [vmem:[#allocation5 + $0xa40] sm:$0xff]
    %v405 = vld [vmem:[#allocation5 + $0xa48] sm:$0xff]
    %v406 = vld [vmem:[#allocation5 + $0xa50] sm:$0xff]
    %v407 = vld [vmem:[#allocation5 + $0xa58] sm:$0xff]
    %v408 = vld [vmem:[#allocation5 + $0xa60] sm:$0xff]
    %v409 = vld [vmem:[#allocation5 + $0xa68] sm:$0xff]
    %v410 = vld [vmem:[#allocation5 + $0xa70] sm:$0xff]
    %v411 = vld [vmem:[#allocation5 + $0xa78] sm:$0xff]
    %v412 = vld [vmem:[#allocation5 + $0xa80] sm:$0xff]
    %v413 = vld [vmem:[#allocation5 + $0xa88] sm:$0xff]
    %v414 = vld [vmem:[#allocation5 + $0xa90] sm:$0xff]
    %v415 = vld [vmem:[#allocation5 + $0xa98] sm:$0xff]
    %v416 = vld [vmem:[#allocation5 + $0xaa0] sm:$0xff]
    %v417 = vld [vmem:[#allocation5 + $0xaa8] sm:$0xff]
    %v418 = vld [vmem:[#allocation5 + $0xab0] sm:$0xff]
    %v419 = vld [vmem:[#allocation5 + $0xab8] sm:$0xff]
    %v420 = vld [vmem:[#allocation5 + $0xac0] sm:$0xff]
    %v421 = vld [vmem:[#allocation5 + $0xac8] sm:$0xff]
    %v422 = vld [vmem:[#allocation5 + $0xad0] sm:$0xff]
    %v423 = vld [vmem:[#allocation5 + $0xad8] sm:$0xff]
    %v424 = vld [vmem:[#allocation5 + $0xae0] sm:$0xff]
    %v425 = vld [vmem:[#allocation5 + $0xae8] sm:$0xff]
    %v426 = vld [vmem:[#allocation5 + $0xaf0] sm:$0xff]
    %v427 = vld [vmem:[#allocation5 + $0xaf8] sm:$0xff]
    %v428 = vld [vmem:[#allocation5 + $0xb00] sm:$0xff]
    %v429 = vld [vmem:[#allocation5 + $0xb08] sm:$0xff]
    %v430 = vld [vmem:[#allocation5 + $0xb10] sm:$0xff]
    %v431 = vld [vmem:[#allocation5 + $0xb18] sm:$0xff]
    %v432 = vld [vmem:[#allocation5 + $0xb20] sm:$0xff]
    %v433 = vld [vmem:[#allocation5 + $0xb28] sm:$0xff]
    %v434 = vld [vmem:[#allocation5 + $0xb30] sm:$0xff]
    %v435 = vld [vmem:[#allocation5 + $0xb38] sm:$0xff]
    %v436 = vld [vmem:[#allocation5 + $0xb40] sm:$0xff]
    %v437 = vld [vmem:[#allocation5 + $0xb48] sm:$0xff]
    %v438 = vld [vmem:[#allocation5 + $0xb50] sm:$0xff]
    %v439 = vld [vmem:[#allocation5 + $0xb58] sm:$0xff]
    %v440 = vld [vmem:[#allocation5 + $0xb60] sm:$0xff]
    %v441 = vld [vmem:[#allocation5 + $0xb68] sm:$0xff]
    %v442 = vld [vmem:[#allocation5 + $0xb70] sm:$0xff]
    %v443 = vld [vmem:[#allocation5 + $0xb78] sm:$0xff]
    %v444 = vld [vmem:[#allocation5 + $0xb80] sm:$0xff]
    %v445 = vld [vmem:[#allocation5 + $0xb88] sm:$0xff]
    %v446 = vld [vmem:[#allocation5 + $0xb90] sm:$0xff]
    %v447 = vld [vmem:[#allocation5 + $0xb98] sm:$0xff]
    %v448 = vld [vmem:[#allocation5 + $0xba0] sm:$0xff]
    %v449 = vld [vmem:[#allocation5 + $0xba8] sm:$0xff]
    %v450 = vld [vmem:[#allocation5 + $0xbb0] sm:$0xff]
    %v451 = vld [vmem:[#allocation5 + $0xbb8] sm:$0xff]
    %v452 = vld [vmem:[#allocation5 + $0xbc0] sm:$0xff]
    %v453 = vld [vmem:[#allocation5 + $0xbc8] sm:$0xff]
    %v454 = vld [vmem:[#allocation5 + $0xbd0] sm:$0xff]
    %v455 = vld [vmem:[#allocation5 + $0xbd8] sm:$0xff]
    %v456 = vld [vmem:[#allocation5 + $0xbe0] sm:$0xff]
    %v457 = vld [vmem:[#allocation5 + $0xbe8] sm:$0xff]
    %v458 = vld [vmem:[#allocation5 + $0xbf0] sm:$0xff]
    %v459 = vld [vmem:[#allocation5 + $0xbf8] sm:$0xff]
    %v460 = vld [vmem:[#allocation5 + $0xc00] sm:$0xff]
    %v461 = vld [vmem:[#allocation5 + $0xc08] sm:$0xff]
    %v462 = vld [vmem:[#allocation5 + $0xc10] sm:$0xff]
    %v463 = vld [vmem:[#allocation5 + $0xc18] sm:$0xff]
    %v464 = vld [vmem:[#allocation5 + $0xc20] sm:$0xff]
    %v465 = vld [vmem:[#allocation5 + $0xc28] sm:$0xff]
    %v466 = vld [vmem:[#allocation5 + $0xc30] sm:$0xff]
    %v467 = vld [vmem:[#allocation5 + $0xc38] sm:$0xff]
    %v468 = vld [vmem:[#allocation5 + $0xc40] sm:$0xff]
    %v469 = vld [vmem:[#allocation5 + $0xc48] sm:$0xff]
    %v470 = vld [vmem:[#allocation5 + $0xc50] sm:$0xff]
    %v471 = vld [vmem:[#allocation5 + $0xc58] sm:$0xff]
    %v472 = vld [vmem:[#allocation5 + $0xc60] sm:$0xff]
    %v473 = vld [vmem:[#allocation5 + $0xc68] sm:$0xff]
    %v474 = vld [vmem:[#allocation5 + $0xc70] sm:$0xff]
    %v475 = vld [vmem:[#allocation5 + $0xc78] sm:$0xff]
    %v476 = vld [vmem:[#allocation5 + $0xc80] sm:$0xff]
    %v477 = vld [vmem:[#allocation5 + $0xc88] sm:$0xff]
    %v478 = vld [vmem:[#allocation5 + $0xc90] sm:$0xff]
    %v479 = vld [vmem:[#allocation5 + $0xc98] sm:$0xff]
    %v480 = vld [vmem:[#allocation5 + $0xca0] sm:$0xff]
    %v481 = vld [vmem:[#allocation5 + $0xca8] sm:$0xff]
    %v482 = vld [vmem:[#allocation5 + $0xcb0] sm:$0xff]
    %v483 = vld [vmem:[#allocation5 + $0xcb8] sm:$0xff]
    %v484 = vld [vmem:[#allocation5 + $0xcc0] sm:$0xff]
    %v485 = vld [vmem:[#allocation5 + $0xcc8] sm:$0xff]
    %v486 = vld [vmem:[#allocation5 + $0xcd0] sm:$0xff]
    %v487 = vld [vmem:[#allocation5 + $0xcd8] sm:$0xff]
    %v488 = vld [vmem:[#allocation5 + $0xce0] sm:$0xff]
    %v489 = vld [vmem:[#allocation5 + $0xce8] sm:$0xff]
    %v490 = vld [vmem:[#allocation5 + $0xcf0] sm:$0xff]
    %v491 = vld [vmem:[#allocation5 + $0xcf8] sm:$0xff]
    %v492 = vld [vmem:[#allocation5 + $0xd00] sm:$0xff]
    %v493 = vld [vmem:[#allocation5 + $0xd08] sm:$0xff]
    %v494 = vld [vmem:[#allocation5 + $0xd10] sm:$0xff]
    %v495 = vld [vmem:[#allocation5 + $0xd18] sm:$0xff]
    %v496 = vld [vmem:[#allocation5 + $0xd20] sm:$0xff]
    %v497 = vld [vmem:[#allocation5 + $0xd28] sm:$0xff]
    %v498 = vld [vmem:[#allocation5 + $0xd30] sm:$0xff]
    %v499 = vld [vmem:[#allocation5 + $0xd38] sm:$0xff]
    %v500 = vld [vmem:[#allocation5 + $0xd40] sm:$0xff]
    %v501 = vld [vmem:[#allocation5 + $0xd48] sm:$0xff]
    %v502 = vld [vmem:[#allocation5 + $0xd50] sm:$0xff]
    %v503 = vld [vmem:[#allocation5 + $0xd58] sm:$0xff]
    %v504 = vld [vmem:[#allocation5 + $0xd60] sm:$0xff]
    %v505 = vld [vmem:[#allocation5 + $0xd68] sm:$0xff]
    %v506 = vld [vmem:[#allocation5 + $0xd70] sm:$0xff]
    %v507 = vld [vmem:[#allocation5 + $0xd78] sm:$0xff]
    %v508 = vld [vmem:[#allocation5 + $0xd80] sm:$0xff]
    %v509 = vld [vmem:[#allocation5 + $0xd88] sm:$0xff]
    %v510 = vld [vmem:[#allocation5 + $0xd90] sm:$0xff]
    %v511 = vld [vmem:[#allocation5 + $0xd98] sm:$0xff]
    %v512 = vld [vmem:[#allocation5 + $0xda0] sm:$0xff]
    %v513 = vld [vmem:[#allocation5 + $0xda8] sm:$0xff]
    %v514 = vld [vmem:[#allocation5 + $0xdb0] sm:$0xff]
    %v515 = vld [vmem:[#allocation5 + $0xdb8] sm:$0xff]
    %v516 = vld [vmem:[#allocation5 + $0xdc0] sm:$0xff]
    %v517 = vld [vmem:[#allocation5 + $0xdc8] sm:$0xff]
    %v518 = vld [vmem:[#allocation5 + $0xdd0] sm:$0xff]
    %v519 = vld [vmem:[#allocation5 + $0xdd8] sm:$0xff]
    %v520 = vld [vmem:[#allocation5 + $0xde0] sm:$0xff]
    %v521 = vld [vmem:[#allocation5 + $0xde8] sm:$0xff]
    %v522 = vld [vmem:[#allocation5 + $0xdf0] sm:$0xff]
    %v523 = vld [vmem:[#allocation5 + $0xdf8] sm:$0xff]
    %v528 = vunpack.c.l.b16 %v72
    %v529 = vunpack.c.h.b16 %v72
    %v530 = vunpack.c.l.b16 %v73
    %v531 = vunpack.c.h.b16 %v73
    %v532 = vunpack.c.l.b16 %v74
    %v533 = vunpack.c.h.b16 %v74
    %v534 = vunpack.c.l.b16 %v75
    %v535 = vpack.c.b16 %v528, %v528
    %v536 = vpack.c.b16 %v529, %v529
    %v537 = vpack.c.b16 %v530, %v530
    %v538 = vpack.c.b16 %v531, %v531
    %v539 = vpack.c.b16 %v532, %v532
    %v540 = vpack.c.b16 %v533, %v533
    %v541 = vpack.c.b16 %v534, %v534
    %v997 = vunpack.c.l.b16 %v76
    %v998 = vunpack.c.h.b16 %v76
    %v999 = vunpack.c.l.b16 %v77
    %v1000 = vunpack.c.h.b16 %v77
    %v1001 = vunpack.c.l.b16 %v78
    %v1002 = vunpack.c.h.b16 %v78
    %v1003 = vunpack.c.l.b16 %v79
    %v1004 = vunpack.c.h.b16 %v79
    %v1005 = vunpack.c.l.b16 %v80
    %v1006 = vunpack.c.h.b16 %v80
    %v1007 = vunpack.c.l.b16 %v81
    %v1008 = vunpack.c.h.b16 %v81
    %v1009 = vunpack.c.l.b16 %v82
    %v1010 = vunpack.c.h.b16 %v82
    %v1011 = vunpack.c.l.b16 %v83
    %v1012 = vunpack.c.h.b16 %v83
    %v1013 = vunpack.c.l.b16 %v84
    %v1014 = vunpack.c.h.b16 %v84
    %v1015 = vunpack.c.l.b16 %v85
    %v1016 = vunpack.c.h.b16 %v85
    %v1017 = vunpack.c.l.b16 %v86
    %v1018 = vunpack.c.h.b16 %v86
    %v1019 = vunpack.c.l.b16 %v87
    %v1020 = vunpack.c.h.b16 %v87
    %v1021 = vunpack.c.l.b16 %v88
    %v1022 = vunpack.c.h.b16 %v88
    %v1023 = vunpack.c.l.b16 %v89
    %v1024 = vunpack.c.h.b16 %v89
    %v1025 = vunpack.c.l.b16 %v90
    %v1026 = vunpack.c.h.b16 %v90
    %v1027 = vunpack.c.l.b16 %v91
    %v1028 = vunpack.c.h.b16 %v91
    %v1029 = vunpack.c.l.b16 %v92
    %v1030 = vunpack.c.h.b16 %v92
    %v1031 = vunpack.c.l.b16 %v93
    %v1032 = vunpack.c.h.b16 %v93
    %v1033 = vunpack.c.l.b16 %v94
    %v1034 = vunpack.c.h.b16 %v94
    %v1035 = vunpack.c.l.b16 %v95
    %v1036 = vunpack.c.h.b16 %v95
    %v1037 = vunpack.c.l.b16 %v96
    %v1038 = vunpack.c.h.b16 %v96
    %v1039 = vunpack.c.l.b16 %v97
    %v1040 = vunpack.c.h.b16 %v97
    %v1041 = vunpack.c.l.b16 %v98
    %v1042 = vunpack.c.h.b16 %v98
    %v1043 = vunpack.c.l.b16 %v99
    %v1044 = vunpack.c.h.b16 %v99
    %v1045 = vunpack.c.l.b16 %v100
    %v1046 = vunpack.c.h.b16 %v100
    %v1047 = vunpack.c.l.b16 %v101
    %v1048 = vunpack.c.h.b16 %v101
    %v1049 = vunpack.c.l.b16 %v102
    %v1050 = vunpack.c.h.b16 %v102
    %v1051 = vunpack.c.l.b16 %v103
    %v1052 = vunpack.c.h.b16 %v103
    %v1053 = vunpack.c.l.b16 %v104
    %v1054 = vunpack.c.h.b16 %v104
    %v1055 = vunpack.c.l.b16 %v105
    %v1056 = vunpack.c.h.b16 %v105
    %v1057 = vunpack.c.l.b16 %v106
    %v1058 = vunpack.c.h.b16 %v106
    %v1059 = vunpack.c.l.b16 %v107
    %v1060 = vunpack.c.h.b16 %v107
    %v1061 = vunpack.c.l.b16 %v108
    %v1062 = vunpack.c.h.b16 %v108
    %v1063 = vunpack.c.l.b16 %v109
    %v1064 = vunpack.c.h.b16 %v109
    %v1065 = vunpack.c.l.b16 %v110
    %v1066 = vunpack.c.h.b16 %v110
    %v1067 = vunpack.c.l.b16 %v111
    %v1068 = vunpack.c.h.b16 %v111
    %v1069 = vunpack.c.l.b16 %v112
    %v1070 = vunpack.c.h.b16 %v112
    %v1071 = vunpack.c.l.b16 %v113
    %v1072 = vunpack.c.h.b16 %v113
    %v1073 = vunpack.c.l.b16 %v114
    %v1074 = vunpack.c.h.b16 %v114
    %v1075 = vunpack.c.l.b16 %v115
    %v1076 = vunpack.c.h.b16 %v115
    %v1077 = vunpack.c.l.b16 %v116
    %v1078 = vunpack.c.h.b16 %v116
    %v1079 = vunpack.c.l.b16 %v117
    %v1080 = vunpack.c.h.b16 %v117
    %v1081 = vunpack.c.l.b16 %v118
    %v1082 = vunpack.c.h.b16 %v118
    %v1083 = vunpack.c.l.b16 %v119
    %v1084 = vunpack.c.h.b16 %v119
    %v1085 = vunpack.c.l.b16 %v120
    %v1086 = vunpack.c.h.b16 %v120
    %v1087 = vunpack.c.l.b16 %v121
    %v1088 = vunpack.c.h.b16 %v121
    %v1089 = vunpack.c.l.b16 %v122
    %v1090 = vunpack.c.h.b16 %v122
    %v1091 = vunpack.c.l.b16 %v123
    %v1092 = vunpack.c.h.b16 %v123
    %v1093 = vunpack.c.l.b16 %v124
    %v1094 = vunpack.c.h.b16 %v124
    %v1095 = vunpack.c.l.b16 %v125
    %v1096 = vunpack.c.h.b16 %v125
    %v1097 = vunpack.c.l.b16 %v126
    %v1098 = vunpack.c.h.b16 %v126
    %v1099 = vunpack.c.l.b16 %v127
    %v1100 = vunpack.c.h.b16 %v127
    %v1101 = vunpack.c.l.b16 %v128
    %v1102 = vunpack.c.h.b16 %v128
    %v1103 = vunpack.c.l.b16 %v129
    %v1104 = vunpack.c.h.b16 %v129
    %v1105 = vunpack.c.l.b16 %v130
    %v1106 = vunpack.c.h.b16 %v130
    %v1107 = vunpack.c.l.b16 %v131
    %v1108 = vunpack.c.h.b16 %v131
    %v1109 = vunpack.c.l.b16 %v132
    %v1110 = vunpack.c.h.b16 %v132
    %v1111 = vunpack.c.l.b16 %v133
    %v1112 = vunpack.c.h.b16 %v133
    %v1113 = vunpack.c.l.b16 %v134
    %v1114 = vunpack.c.h.b16 %v134
    %v1115 = vunpack.c.l.b16 %v135
    %v1116 = vunpack.c.h.b16 %v135
    %v1117 = vunpack.c.l.b16 %v136
    %v1118 = vunpack.c.h.b16 %v136
    %v1119 = vunpack.c.l.b16 %v137
    %v1120 = vunpack.c.h.b16 %v137
    %v1121 = vunpack.c.l.b16 %v138
    %v1122 = vunpack.c.h.b16 %v138
    %v1123 = vunpack.c.l.b16 %v139
    %v1124 = vunpack.c.h.b16 %v139
    %v1125 = vunpack.c.l.b16 %v140
    %v1126 = vunpack.c.h.b16 %v140
    %v1127 = vunpack.c.l.b16 %v141
    %v1128 = vunpack.c.h.b16 %v141
    %v1129 = vunpack.c.l.b16 %v142
    %v1130 = vunpack.c.h.b16 %v142
    %v1131 = vunpack.c.l.b16 %v143
    %v1132 = vunpack.c.h.b16 %v143
    %v1133 = vunpack.c.l.b16 %v144
    %v1134 = vunpack.c.h.b16 %v144
    %v1135 = vunpack.c.l.b16 %v145
    %v1136 = vunpack.c.h.b16 %v145
    %v1137 = vunpack.c.l.b16 %v146
    %v1138 = vunpack.c.h.b16 %v146
    %v1139 = vunpack.c.l.b16 %v147
    %v1140 = vunpack.c.h.b16 %v147
    %v1141 = vunpack.c.l.b16 %v148
    %v1142 = vunpack.c.h.b16 %v148
    %v1143 = vunpack.c.l.b16 %v149
    %v1144 = vunpack.c.h.b16 %v149
    %v1145 = vunpack.c.l.b16 %v150
    %v1146 = vunpack.c.h.b16 %v150
    %v1147 = vunpack.c.l.b16 %v151
    %v1148 = vunpack.c.h.b16 %v151
    %v1149 = vunpack.c.l.b16 %v152
    %v1150 = vunpack.c.h.b16 %v152
    %v1151 = vunpack.c.l.b16 %v153
    %v1152 = vunpack.c.h.b16 %v153
    %v1153 = vunpack.c.l.b16 %v154
    %v1154 = vunpack.c.h.b16 %v154
    %v1155 = vunpack.c.l.b16 %v155
    %v1156 = vunpack.c.h.b16 %v155
    %v1157 = vunpack.c.l.b16 %v156
    %v1158 = vunpack.c.h.b16 %v156
    %v1159 = vunpack.c.l.b16 %v157
    %v1160 = vunpack.c.h.b16 %v157
    %v1161 = vunpack.c.l.b16 %v158
    %v1162 = vunpack.c.h.b16 %v158
    %v1163 = vunpack.c.l.b16 %v159
    %v1164 = vunpack.c.h.b16 %v159
    %v1165 = vunpack.c.l.b16 %v160
    %v1166 = vunpack.c.h.b16 %v160
    %v1167 = vunpack.c.l.b16 %v161
    %v1168 = vunpack.c.h.b16 %v161
    %v1169 = vunpack.c.l.b16 %v162
    %v1170 = vunpack.c.h.b16 %v162
    %v1171 = vunpack.c.l.b16 %v163
    %v1172 = vunpack.c.h.b16 %v163
    %v1173 = vunpack.c.l.b16 %v164
    %v1174 = vunpack.c.h.b16 %v164
    %v1175 = vunpack.c.l.b16 %v165
    %v1176 = vunpack.c.h.b16 %v165
    %v1177 = vunpack.c.l.b16 %v166
    %v1178 = vunpack.c.h.b16 %v166
    %v1179 = vunpack.c.l.b16 %v167
    %v1180 = vunpack.c.h.b16 %v167
    %v1181 = vunpack.c.l.b16 %v168
    %v1182 = vunpack.c.h.b16 %v168
    %v1183 = vunpack.c.l.b16 %v169
    %v1184 = vunpack.c.h.b16 %v169
    %v1185 = vunpack.c.l.b16 %v170
    %v1186 = vunpack.c.h.b16 %v170
    %v1187 = vunpack.c.l.b16 %v171
    %v1188 = vunpack.c.h.b16 %v171
    %v1189 = vunpack.c.l.b16 %v172
    %v1190 = vunpack.c.h.b16 %v172
    %v1191 = vunpack.c.l.b16 %v173
    %v1192 = vunpack.c.h.b16 %v173
    %v1193 = vunpack.c.l.b16 %v174
    %v1194 = vunpack.c.h.b16 %v174
    %v1195 = vunpack.c.l.b16 %v175
    %v1196 = vunpack.c.h.b16 %v175
    %v1197 = vunpack.c.l.b16 %v176
    %v1198 = vunpack.c.h.b16 %v176
    %v1199 = vunpack.c.l.b16 %v177
    %v1200 = vunpack.c.h.b16 %v177
    %v1201 = vunpack.c.l.b16 %v178
    %v1202 = vunpack.c.h.b16 %v178
    %v1203 = vunpack.c.l.b16 %v179
    %v1204 = vunpack.c.h.b16 %v179
    %v1205 = vunpack.c.l.b16 %v180
    %v1206 = vunpack.c.h.b16 %v180
    %v1207 = vunpack.c.l.b16 %v181
    %v1208 = vunpack.c.h.b16 %v181
    %v1209 = vunpack.c.l.b16 %v182
    %v1210 = vunpack.c.h.b16 %v182
    %v1211 = vunpack.c.l.b16 %v183
    %v1212 = vunpack.c.h.b16 %v183
    %v1213 = vunpack.c.l.b16 %v184
    %v1214 = vunpack.c.h.b16 %v184
    %v1215 = vunpack.c.l.b16 %v185
    %v1216 = vunpack.c.h.b16 %v185
    %v1217 = vunpack.c.l.b16 %v186
    %v1218 = vunpack.c.h.b16 %v186
    %v1219 = vunpack.c.l.b16 %v187
    %v1220 = vunpack.c.h.b16 %v187
    %v1221 = vunpack.c.l.b16 %v188
    %v1222 = vunpack.c.h.b16 %v188
    %v1223 = vunpack.c.l.b16 %v189
    %v1224 = vunpack.c.h.b16 %v189
    %v1225 = vunpack.c.l.b16 %v190
    %v1226 = vunpack.c.h.b16 %v190
    %v1227 = vunpack.c.l.b16 %v191
    %v1228 = vunpack.c.h.b16 %v191
    %v1229 = vunpack.c.l.b16 %v192
    %v1230 = vunpack.c.h.b16 %v192
    %v1231 = vunpack.c.l.b16 %v193
    %v1232 = vunpack.c.h.b16 %v193
    %v1233 = vunpack.c.l.b16 %v194
    %v1234 = vunpack.c.h.b16 %v194
    %v1235 = vunpack.c.l.b16 %v195
    %v1236 = vunpack.c.h.b16 %v195
    %v1237 = vunpack.c.l.b16 %v196
    %v1238 = vunpack.c.h.b16 %v196
    %v1239 = vunpack.c.l.b16 %v197
    %v1240 = vunpack.c.h.b16 %v197
    %v1241 = vunpack.c.l.b16 %v198
    %v1242 = vunpack.c.h.b16 %v198
    %v1243 = vunpack.c.l.b16 %v199
    %v1244 = vunpack.c.h.b16 %v199
    %v1245 = vunpack.c.l.b16 %v200
    %v1246 = vunpack.c.h.b16 %v200
    %v1247 = vunpack.c.l.b16 %v201
    %v1248 = vunpack.c.h.b16 %v201
    %v1249 = vunpack.c.l.b16 %v202
    %v1250 = vunpack.c.h.b16 %v202
    %v1251 = vunpack.c.l.b16 %v203
    %v1252 = vunpack.c.h.b16 %v203
    %v1253 = vunpack.c.l.b16 %v204
    %v1254 = vunpack.c.h.b16 %v204
    %v1255 = vunpack.c.l.b16 %v205
    %v1256 = vunpack.c.h.b16 %v205
    %v1257 = vunpack.c.l.b16 %v206
    %v1258 = vunpack.c.h.b16 %v206
    %v1259 = vunpack.c.l.b16 %v207
    %v1260 = vunpack.c.h.b16 %v207
    %v1261 = vunpack.c.l.b16 %v208
    %v1262 = vunpack.c.h.b16 %v208
    %v1263 = vunpack.c.l.b16 %v209
    %v1264 = vunpack.c.h.b16 %v209
    %v1265 = vunpack.c.l.b16 %v210
    %v1266 = vunpack.c.h.b16 %v210
    %v1267 = vunpack.c.l.b16 %v211
    %v1268 = vunpack.c.h.b16 %v211
    %v1269 = vunpack.c.l.b16 %v212
    %v1270 = vunpack.c.h.b16 %v212
    %v1271 = vunpack.c.l.b16 %v213
    %v1272 = vunpack.c.h.b16 %v213
    %v1273 = vunpack.c.l.b16 %v214
    %v1274 = vunpack.c.h.b16 %v214
    %v1275 = vunpack.c.l.b16 %v215
    %v1276 = vunpack.c.h.b16 %v215
    %v1277 = vunpack.c.l.b16 %v216
    %v1278 = vunpack.c.h.b16 %v216
    %v1279 = vunpack.c.l.b16 %v217
    %v1280 = vunpack.c.h.b16 %v217
    %v1281 = vunpack.c.l.b16 %v218
    %v1282 = vunpack.c.h.b16 %v218
    %v1283 = vunpack.c.l.b16 %v219
    %v1284 = vunpack.c.h.b16 %v219
    %v1285 = vunpack.c.l.b16 %v220
    %v1286 = vunpack.c.h.b16 %v220
    %v1287 = vunpack.c.l.b16 %v221
    %v1288 = vunpack.c.h.b16 %v221
    %v1289 = vunpack.c.l.b16 %v222
    %v1290 = vunpack.c.h.b16 %v222
    %v1291 = vunpack.c.l.b16 %v223
    %v1292 = vunpack.c.h.b16 %v223
    %v1293 = vunpack.c.l.b16 %v224
    %v1294 = vunpack.c.h.b16 %v224
    %v1295 = vunpack.c.l.b16 %v225
    %v1296 = vunpack.c.h.b16 %v225
    %v1297 = vunpack.c.l.b16 %v226
    %v1298 = vunpack.c.h.b16 %v226
    %v1299 = vunpack.c.l.b16 %v227
    %v1300 = vunpack.c.h.b16 %v227
    %v1301 = vunpack.c.l.b16 %v228
    %v1302 = vunpack.c.h.b16 %v228
    %v1303 = vunpack.c.l.b16 %v229
    %v1304 = vunpack.c.h.b16 %v229
    %v1305 = vunpack.c.l.b16 %v230
    %v1306 = vunpack.c.h.b16 %v230
    %v1307 = vunpack.c.l.b16 %v231
    %v1308 = vunpack.c.h.b16 %v231
    %v1309 = vunpack.c.l.b16 %v232
    %v1310 = vunpack.c.h.b16 %v232
    %v1311 = vunpack.c.l.b16 %v233
    %v1312 = vunpack.c.h.b16 %v233
    %v1313 = vunpack.c.l.b16 %v234
    %v1314 = vunpack.c.h.b16 %v234
    %v1315 = vunpack.c.l.b16 %v235
    %v1316 = vunpack.c.h.b16 %v235
    %v1317 = vunpack.c.l.b16 %v236
    %v1318 = vunpack.c.h.b16 %v236
    %v1319 = vunpack.c.l.b16 %v237
    %v1320 = vunpack.c.h.b16 %v237
    %v1321 = vunpack.c.l.b16 %v238
    %v1322 = vunpack.c.h.b16 %v238
    %v1323 = vunpack.c.l.b16 %v239
    %v1324 = vunpack.c.h.b16 %v239
    %v1325 = vunpack.c.l.b16 %v240
    %v1326 = vunpack.c.h.b16 %v240
    %v1327 = vunpack.c.l.b16 %v241
    %v1328 = vunpack.c.h.b16 %v241
    %v1329 = vunpack.c.l.b16 %v242
    %v1330 = vunpack.c.h.b16 %v242
    %v1331 = vunpack.c.l.b16 %v243
    %v1332 = vunpack.c.h.b16 %v243
    %v1333 = vunpack.c.l.b16 %v244
    %v1334 = vunpack.c.h.b16 %v244
    %v1335 = vunpack.c.l.b16 %v245
    %v1336 = vunpack.c.h.b16 %v245
    %v1337 = vunpack.c.l.b16 %v246
    %v1338 = vunpack.c.h.b16 %v246
    %v1339 = vunpack.c.l.b16 %v247
    %v1340 = vunpack.c.h.b16 %v247
    %v1341 = vunpack.c.l.b16 %v248
    %v1342 = vunpack.c.h.b16 %v248
    %v1343 = vunpack.c.l.b16 %v249
    %v1344 = vunpack.c.h.b16 %v249
    %v1345 = vunpack.c.l.b16 %v250
    %v1346 = vunpack.c.h.b16 %v250
    %v1347 = vunpack.c.l.b16 %v251
    %v1348 = vunpack.c.h.b16 %v251
    %v1349 = vunpack.c.l.b16 %v252
    %v1350 = vunpack.c.h.b16 %v252
    %v1351 = vunpack.c.l.b16 %v253
    %v1352 = vunpack.c.h.b16 %v253
    %v1353 = vunpack.c.l.b16 %v254
    %v1354 = vunpack.c.h.b16 %v254
    %v1355 = vunpack.c.l.b16 %v255
    %v1356 = vunpack.c.h.b16 %v255
    %v1357 = vunpack.c.l.b16 %v256
    %v1358 = vunpack.c.h.b16 %v256
    %v1359 = vunpack.c.l.b16 %v257
    %v1360 = vunpack.c.h.b16 %v257
    %v1361 = vunpack.c.l.b16 %v258
    %v1362 = vunpack.c.h.b16 %v258
    %v1363 = vunpack.c.l.b16 %v259
    %v1364 = vunpack.c.h.b16 %v259
    %v1365 = vunpack.c.l.b16 %v260
    %v1366 = vunpack.c.h.b16 %v260
    %v1367 = vunpack.c.l.b16 %v261
    %v1368 = vunpack.c.h.b16 %v261
    %v1369 = vunpack.c.l.b16 %v262
    %v1370 = vunpack.c.h.b16 %v262
    %v1371 = vunpack.c.l.b16 %v263
    %v1372 = vunpack.c.h.b16 %v263
    %v1373 = vunpack.c.l.b16 %v264
    %v1374 = vunpack.c.h.b16 %v264
    %v1375 = vunpack.c.l.b16 %v265
    %v1376 = vunpack.c.h.b16 %v265
    %v1377 = vunpack.c.l.b16 %v266
    %v1378 = vunpack.c.h.b16 %v266
    %v1379 = vunpack.c.l.b16 %v267
    %v1380 = vunpack.c.h.b16 %v267
    %v1381 = vunpack.c.l.b16 %v268
    %v1382 = vunpack.c.h.b16 %v268
    %v1383 = vunpack.c.l.b16 %v269
    %v1384 = vunpack.c.h.b16 %v269
    %v1385 = vunpack.c.l.b16 %v270
    %v1386 = vunpack.c.h.b16 %v270
    %v1387 = vunpack.c.l.b16 %v271
    %v1388 = vunpack.c.h.b16 %v271
    %v1389 = vunpack.c.l.b16 %v272
    %v1390 = vunpack.c.h.b16 %v272
    %v1391 = vunpack.c.l.b16 %v273
    %v1392 = vunpack.c.h.b16 %v273
    %v1393 = vunpack.c.l.b16 %v274
    %v1394 = vunpack.c.h.b16 %v274
    %v1395 = vunpack.c.l.b16 %v275
    %v1396 = vunpack.c.h.b16 %v275
    %v1397 = vunpack.c.l.b16 %v276
    %v1398 = vunpack.c.h.b16 %v276
    %v1399 = vunpack.c.l.b16 %v277
    %v1400 = vunpack.c.h.b16 %v277
    %v1401 = vunpack.c.l.b16 %v278
    %v1402 = vunpack.c.h.b16 %v278
    %v1403 = vunpack.c.l.b16 %v279
    %v1404 = vunpack.c.h.b16 %v279
    %v1405 = vunpack.c.l.b16 %v280
    %v1406 = vunpack.c.h.b16 %v280
    %v1407 = vunpack.c.l.b16 %v281
    %v1408 = vunpack.c.h.b16 %v281
    %v1409 = vunpack.c.l.b16 %v282
    %v1410 = vunpack.c.h.b16 %v282
    %v1411 = vunpack.c.l.b16 %v283
    %v1412 = vunpack.c.h.b16 %v283
    %v1413 = vunpack.c.l.b16 %v284
    %v1414 = vunpack.c.h.b16 %v284
    %v1415 = vunpack.c.l.b16 %v285
    %v1416 = vunpack.c.h.b16 %v285
    %v1417 = vunpack.c.l.b16 %v286
    %v1418 = vunpack.c.h.b16 %v286
    %v1419 = vunpack.c.l.b16 %v287
    %v1420 = vunpack.c.h.b16 %v287
    %v1421 = vunpack.c.l.b16 %v288
    %v1422 = vunpack.c.h.b16 %v288
    %v1423 = vunpack.c.l.b16 %v289
    %v1424 = vunpack.c.h.b16 %v289
    %v1425 = vunpack.c.l.b16 %v290
    %v1426 = vunpack.c.h.b16 %v290
    %v1427 = vunpack.c.l.b16 %v291
    %v1428 = vunpack.c.h.b16 %v291
    %v1429 = vunpack.c.l.b16 %v292
    %v1430 = vunpack.c.h.b16 %v292
    %v1431 = vunpack.c.l.b16 %v293
    %v1432 = vunpack.c.h.b16 %v293
    %v1433 = vunpack.c.l.b16 %v294
    %v1434 = vunpack.c.h.b16 %v294
    %v1435 = vunpack.c.l.b16 %v295
    %v1436 = vunpack.c.h.b16 %v295
    %v1437 = vunpack.c.l.b16 %v296
    %v1438 = vunpack.c.h.b16 %v296
    %v1439 = vunpack.c.l.b16 %v297
    %v1440 = vunpack.c.h.b16 %v297
    %v1441 = vunpack.c.l.b16 %v298
    %v1442 = vunpack.c.h.b16 %v298
    %v1443 = vunpack.c.l.b16 %v299
    %v1444 = vunpack.c.h.b16 %v299
    %v1445 = vunpack.c.l.b16 %v300
    %v1446 = vunpack.c.h.b16 %v300
    %v1447 = vunpack.c.l.b16 %v301
    %v1448 = vunpack.c.h.b16 %v301
    %v1449 = vunpack.c.l.b16 %v302
    %v1450 = vunpack.c.h.b16 %v302
    %v1451 = vunpack.c.l.b16 %v303
    %v1452 = vunpack.c.h.b16 %v303
    %v1453 = vunpack.c.l.b16 %v304
    %v1454 = vunpack.c.h.b16 %v304
    %v1455 = vunpack.c.l.b16 %v305
    %v1456 = vunpack.c.h.b16 %v305
    %v1457 = vunpack.c.l.b16 %v306
    %v1458 = vunpack.c.h.b16 %v306
    %v1459 = vunpack.c.l.b16 %v307
    %v1460 = vunpack.c.h.b16 %v307
    %v1461 = vunpack.c.l.b16 %v308
    %v1462 = vunpack.c.h.b16 %v308
    %v1463 = vunpack.c.l.b16 %v309
    %v1464 = vunpack.c.h.b16 %v309
    %v1465 = vunpack.c.l.b16 %v310
    %v1466 = vunpack.c.h.b16 %v310
    %v1467 = vunpack.c.l.b16 %v311
    %v1468 = vunpack.c.h.b16 %v311
    %v1469 = vunpack.c.l.b16 %v312
    %v1470 = vunpack.c.h.b16 %v312
    %v1471 = vunpack.c.l.b16 %v313
    %v1472 = vunpack.c.h.b16 %v313
    %v1473 = vunpack.c.l.b16 %v314
    %v1474 = vunpack.c.h.b16 %v314
    %v1475 = vunpack.c.l.b16 %v315
    %v1476 = vunpack.c.h.b16 %v315
    %v1477 = vunpack.c.l.b16 %v316
    %v1478 = vunpack.c.h.b16 %v316
    %v1479 = vunpack.c.l.b16 %v317
    %v1480 = vunpack.c.h.b16 %v317
    %v1481 = vunpack.c.l.b16 %v318
    %v1482 = vunpack.c.h.b16 %v318
    %v1483 = vunpack.c.l.b16 %v319
    %v1484 = vunpack.c.h.b16 %v319
    %v1485 = vunpack.c.l.b16 %v320
    %v1486 = vunpack.c.h.b16 %v320
    %v1487 = vunpack.c.l.b16 %v321
    %v1488 = vunpack.c.h.b16 %v321
    %v1489 = vunpack.c.l.b16 %v322
    %v1490 = vunpack.c.h.b16 %v322
    %v1491 = vunpack.c.l.b16 %v323
    %v1492 = vunpack.c.h.b16 %v323
    %v1493 = vunpack.c.l.b16 %v324
    %v1494 = vunpack.c.h.b16 %v324
    %v1495 = vunpack.c.l.b16 %v325
    %v1496 = vunpack.c.h.b16 %v325
    %v1497 = vunpack.c.l.b16 %v326
    %v1498 = vunpack.c.h.b16 %v326
    %v1499 = vunpack.c.l.b16 %v327
    %v1500 = vunpack.c.h.b16 %v327
    %v1501 = vunpack.c.l.b16 %v328
    %v1502 = vunpack.c.h.b16 %v328
    %v1503 = vunpack.c.l.b16 %v329
    %v1504 = vunpack.c.h.b16 %v329
    %v1505 = vunpack.c.l.b16 %v330
    %v1506 = vunpack.c.h.b16 %v330
    %v1507 = vunpack.c.l.b16 %v331
    %v1508 = vunpack.c.h.b16 %v331
    %v1509 = vunpack.c.l.b16 %v332
    %v1510 = vunpack.c.h.b16 %v332
    %v1511 = vunpack.c.l.b16 %v333
    %v1512 = vunpack.c.h.b16 %v333
    %v1513 = vunpack.c.l.b16 %v334
    %v1514 = vunpack.c.h.b16 %v334
    %v1515 = vunpack.c.l.b16 %v335
    %v1516 = vunpack.c.h.b16 %v335
    %v1517 = vunpack.c.l.b16 %v336
    %v1518 = vunpack.c.h.b16 %v336
    %v1519 = vunpack.c.l.b16 %v337
    %v1520 = vunpack.c.h.b16 %v337
    %v1521 = vunpack.c.l.b16 %v338
    %v1522 = vunpack.c.h.b16 %v338
    %v1523 = vunpack.c.l.b16 %v339
    %v1524 = vunpack.c.h.b16 %v339
    %v1525 = vunpack.c.l.b16 %v340
    %v1526 = vunpack.c.h.b16 %v340
    %v1527 = vunpack.c.l.b16 %v341
    %v1528 = vunpack.c.h.b16 %v341
    %v1529 = vunpack.c.l.b16 %v342
    %v1530 = vunpack.c.h.b16 %v342
    %v1531 = vunpack.c.l.b16 %v343
    %v1532 = vunpack.c.h.b16 %v343
    %v1533 = vunpack.c.l.b16 %v344
    %v1534 = vunpack.c.h.b16 %v344
    %v1535 = vunpack.c.l.b16 %v345
    %v1536 = vunpack.c.h.b16 %v345
    %v1537 = vunpack.c.l.b16 %v346
    %v1538 = vunpack.c.h.b16 %v346
    %v1539 = vunpack.c.l.b16 %v347
    %v1540 = vunpack.c.h.b16 %v347
    %v1541 = vunpack.c.l.b16 %v348
    %v1542 = vunpack.c.h.b16 %v348
    %v1543 = vunpack.c.l.b16 %v349
    %v1544 = vunpack.c.h.b16 %v349
    %v1545 = vunpack.c.l.b16 %v350
    %v1546 = vunpack.c.h.b16 %v350
    %v1547 = vunpack.c.l.b16 %v351
    %v1548 = vunpack.c.h.b16 %v351
    %v1549 = vunpack.c.l.b16 %v352
    %v1550 = vunpack.c.h.b16 %v352
    %v1551 = vunpack.c.l.b16 %v353
    %v1552 = vunpack.c.h.b16 %v353
    %v1553 = vunpack.c.l.b16 %v354
    %v1554 = vunpack.c.h.b16 %v354
    %v1555 = vunpack.c.l.b16 %v355
    %v1556 = vunpack.c.h.b16 %v355
    %v1557 = vunpack.c.l.b16 %v356
    %v1558 = vunpack.c.h.b16 %v356
    %v1559 = vunpack.c.l.b16 %v357
    %v1560 = vunpack.c.h.b16 %v357
    %v1561 = vunpack.c.l.b16 %v358
    %v1562 = vunpack.c.h.b16 %v358
    %v1563 = vunpack.c.l.b16 %v359
    %v1564 = vunpack.c.h.b16 %v359
    %v1565 = vunpack.c.l.b16 %v360
    %v1566 = vunpack.c.h.b16 %v360
    %v1567 = vunpack.c.l.b16 %v361
    %v1568 = vunpack.c.h.b16 %v361
    %v1569 = vunpack.c.l.b16 %v362
    %v1570 = vunpack.c.h.b16 %v362
    %v1571 = vunpack.c.l.b16 %v363
    %v1572 = vunpack.c.h.b16 %v363
    %v1573 = vunpack.c.l.b16 %v364
    %v1574 = vunpack.c.h.b16 %v364
    %v1575 = vunpack.c.l.b16 %v365
    %v1576 = vunpack.c.h.b16 %v365
    %v1577 = vunpack.c.l.b16 %v366
    %v1578 = vunpack.c.h.b16 %v366
    %v1579 = vunpack.c.l.b16 %v367
    %v1580 = vunpack.c.h.b16 %v367
    %v1581 = vunpack.c.l.b16 %v368
    %v1582 = vunpack.c.h.b16 %v368
    %v1583 = vunpack.c.l.b16 %v369
    %v1584 = vunpack.c.h.b16 %v369
    %v1585 = vunpack.c.l.b16 %v370
    %v1586 = vunpack.c.h.b16 %v370
    %v1587 = vunpack.c.l.b16 %v371
    %v1588 = vunpack.c.h.b16 %v371
    %v1589 = vunpack.c.l.b16 %v372
    %v1590 = vunpack.c.h.b16 %v372
    %v1591 = vunpack.c.l.b16 %v373
    %v1592 = vunpack.c.h.b16 %v373
    %v1593 = vunpack.c.l.b16 %v374
    %v1594 = vunpack.c.h.b16 %v374
    %v1595 = vunpack.c.l.b16 %v375
    %v1596 = vunpack.c.h.b16 %v375
    %v1597 = vunpack.c.l.b16 %v376
    %v1598 = vunpack.c.h.b16 %v376
    %v1599 = vunpack.c.l.b16 %v377
    %v1600 = vunpack.c.h.b16 %v377
    %v1601 = vunpack.c.l.b16 %v378
    %v1602 = vunpack.c.h.b16 %v378
    %v1603 = vunpack.c.l.b16 %v379
    %v1604 = vunpack.c.h.b16 %v379
    %v1605 = vunpack.c.l.b16 %v380
    %v1606 = vunpack.c.h.b16 %v380
    %v1607 = vunpack.c.l.b16 %v381
    %v1608 = vunpack.c.h.b16 %v381
    %v1609 = vunpack.c.l.b16 %v382
    %v1610 = vunpack.c.h.b16 %v382
    %v1611 = vunpack.c.l.b16 %v383
    %v1612 = vunpack.c.h.b16 %v383
    %v1613 = vunpack.c.l.b16 %v384
    %v1614 = vunpack.c.h.b16 %v384
    %v1615 = vunpack.c.l.b16 %v385
    %v1616 = vunpack.c.h.b16 %v385
    %v1617 = vunpack.c.l.b16 %v386
    %v1618 = vunpack.c.h.b16 %v386
    %v1619 = vunpack.c.l.b16 %v387
    %v1620 = vunpack.c.h.b16 %v387
    %v1621 = vunpack.c.l.b16 %v388
    %v1622 = vunpack.c.h.b16 %v388
    %v1623 = vunpack.c.l.b16 %v389
    %v1624 = vunpack.c.h.b16 %v389
    %v1625 = vunpack.c.l.b16 %v390
    %v1626 = vunpack.c.h.b16 %v390
    %v1627 = vunpack.c.l.b16 %v391
    %v1628 = vunpack.c.h.b16 %v391
    %v1629 = vunpack.c.l.b16 %v392
    %v1630 = vunpack.c.h.b16 %v392
    %v1631 = vunpack.c.l.b16 %v393
    %v1632 = vunpack.c.h.b16 %v393
    %v1633 = vunpack.c.l.b16 %v394
    %v1634 = vunpack.c.h.b16 %v394
    %v1635 = vunpack.c.l.b16 %v395
    %v1636 = vunpack.c.h.b16 %v395
    %v1637 = vunpack.c.l.b16 %v396
    %v1638 = vunpack.c.h.b16 %v396
    %v1639 = vunpack.c.l.b16 %v397
    %v1640 = vunpack.c.h.b16 %v397
    %v1641 = vunpack.c.l.b16 %v398
    %v1642 = vunpack.c.h.b16 %v398
    %v1643 = vunpack.c.l.b16 %v399
    %v1644 = vunpack.c.h.b16 %v399
    %v1645 = vunpack.c.l.b16 %v400
    %v1646 = vunpack.c.h.b16 %v400
    %v1647 = vunpack.c.l.b16 %v401
    %v1648 = vunpack.c.h.b16 %v401
    %v1649 = vunpack.c.l.b16 %v402
    %v1650 = vunpack.c.h.b16 %v402
    %v1651 = vunpack.c.l.b16 %v403
    %v1652 = vunpack.c.h.b16 %v403
    %v1653 = vunpack.c.l.b16 %v404
    %v1654 = vunpack.c.h.b16 %v404
    %v1655 = vunpack.c.l.b16 %v405
    %v1656 = vunpack.c.h.b16 %v405
    %v1657 = vunpack.c.l.b16 %v406
    %v1658 = vunpack.c.h.b16 %v406
    %v1659 = vunpack.c.l.b16 %v407
    %v1660 = vunpack.c.h.b16 %v407
    %v1661 = vunpack.c.l.b16 %v408
    %v1662 = vunpack.c.h.b16 %v408
    %v1663 = vunpack.c.l.b16 %v409
    %v1664 = vunpack.c.h.b16 %v409
    %v1665 = vunpack.c.l.b16 %v410
    %v1666 = vunpack.c.h.b16 %v410
    %v1667 = vunpack.c.l.b16 %v411
    %v1668 = vunpack.c.h.b16 %v411
    %v1669 = vunpack.c.l.b16 %v412
    %v1670 = vunpack.c.h.b16 %v412
    %v1671 = vunpack.c.l.b16 %v413
    %v1672 = vunpack.c.h.b16 %v413
    %v1673 = vunpack.c.l.b16 %v414
    %v1674 = vunpack.c.h.b16 %v414
    %v1675 = vunpack.c.l.b16 %v415
    %v1676 = vunpack.c.h.b16 %v415
    %v1677 = vunpack.c.l.b16 %v416
    %v1678 = vunpack.c.h.b16 %v416
    %v1679 = vunpack.c.l.b16 %v417
    %v1680 = vunpack.c.h.b16 %v417
    %v1681 = vunpack.c.l.b16 %v418
    %v1682 = vunpack.c.h.b16 %v418
    %v1683 = vunpack.c.l.b16 %v419
    %v1684 = vunpack.c.h.b16 %v419
    %v1685 = vunpack.c.l.b16 %v420
    %v1686 = vunpack.c.h.b16 %v420
    %v1687 = vunpack.c.l.b16 %v421
    %v1688 = vunpack.c.h.b16 %v421
    %v1689 = vunpack.c.l.b16 %v422
    %v1690 = vunpack.c.h.b16 %v422
    %v1691 = vunpack.c.l.b16 %v423
    %v1692 = vunpack.c.h.b16 %v423
    %v1693 = vunpack.c.l.b16 %v424
    %v1694 = vunpack.c.h.b16 %v424
    %v1695 = vunpack.c.l.b16 %v425
    %v1696 = vunpack.c.h.b16 %v425
    %v1697 = vunpack.c.l.b16 %v426
    %v1698 = vunpack.c.h.b16 %v426
    %v1699 = vunpack.c.l.b16 %v427
    %v1700 = vunpack.c.h.b16 %v427
    %v1701 = vunpack.c.l.b16 %v428
    %v1702 = vunpack.c.h.b16 %v428
    %v1703 = vunpack.c.l.b16 %v429
    %v1704 = vunpack.c.h.b16 %v429
    %v1705 = vunpack.c.l.b16 %v430
    %v1706 = vunpack.c.h.b16 %v430
    %v1707 = vunpack.c.l.b16 %v431
    %v1708 = vunpack.c.h.b16 %v431
    %v1709 = vunpack.c.l.b16 %v432
    %v1710 = vunpack.c.h.b16 %v432
    %v1711 = vunpack.c.l.b16 %v433
    %v1712 = vunpack.c.h.b16 %v433
    %v1713 = vunpack.c.l.b16 %v434
    %v1714 = vunpack.c.h.b16 %v434
    %v1715 = vunpack.c.l.b16 %v435
    %v1716 = vunpack.c.h.b16 %v435
    %v1717 = vunpack.c.l.b16 %v436
    %v1718 = vunpack.c.h.b16 %v436
    %v1719 = vunpack.c.l.b16 %v437
    %v1720 = vunpack.c.h.b16 %v437
    %v1721 = vunpack.c.l.b16 %v438
    %v1722 = vunpack.c.h.b16 %v438
    %v1723 = vunpack.c.l.b16 %v439
    %v1724 = vunpack.c.h.b16 %v439
    %v1725 = vunpack.c.l.b16 %v440
    %v1726 = vunpack.c.h.b16 %v440
    %v1727 = vunpack.c.l.b16 %v441
    %v1728 = vunpack.c.h.b16 %v441
    %v1729 = vunpack.c.l.b16 %v442
    %v1730 = vunpack.c.h.b16 %v442
    %v1731 = vunpack.c.l.b16 %v443
    %v1732 = vunpack.c.h.b16 %v443
    %v1733 = vunpack.c.l.b16 %v444
    %v1734 = vunpack.c.h.b16 %v444
    %v1735 = vunpack.c.l.b16 %v445
    %v1736 = vunpack.c.h.b16 %v445
    %v1737 = vunpack.c.l.b16 %v446
    %v1738 = vunpack.c.h.b16 %v446
    %v1739 = vunpack.c.l.b16 %v447
    %v1740 = vunpack.c.h.b16 %v447
    %v1741 = vunpack.c.l.b16 %v448
    %v1742 = vunpack.c.h.b16 %v448
    %v1743 = vunpack.c.l.b16 %v449
    %v1744 = vunpack.c.h.b16 %v449
    %v1745 = vunpack.c.l.b16 %v450
    %v1746 = vunpack.c.h.b16 %v450
    %v1747 = vunpack.c.l.b16 %v451
    %v1748 = vunpack.c.h.b16 %v451
    %v1749 = vunpack.c.l.b16 %v452
    %v1750 = vunpack.c.h.b16 %v452
    %v1751 = vunpack.c.l.b16 %v453
    %v1752 = vunpack.c.h.b16 %v453
    %v1753 = vunpack.c.l.b16 %v454
    %v1754 = vunpack.c.h.b16 %v454
    %v1755 = vunpack.c.l.b16 %v455
    %v1756 = vunpack.c.h.b16 %v455
    %v1757 = vunpack.c.l.b16 %v456
    %v1758 = vunpack.c.h.b16 %v456
    %v1759 = vunpack.c.l.b16 %v457
    %v1760 = vunpack.c.h.b16 %v457
    %v1761 = vunpack.c.l.b16 %v458
    %v1762 = vunpack.c.h.b16 %v458
    %v1763 = vunpack.c.l.b16 %v459
    %v1764 = vunpack.c.h.b16 %v459
    %v1765 = vunpack.c.l.b16 %v460
    %v1766 = vunpack.c.h.b16 %v460
    %v1767 = vunpack.c.l.b16 %v461
    %v1768 = vunpack.c.h.b16 %v461
    %v1769 = vunpack.c.l.b16 %v462
    %v1770 = vunpack.c.h.b16 %v462
    %v1771 = vunpack.c.l.b16 %v463
    %v1772 = vunpack.c.h.b16 %v463
    %v1773 = vunpack.c.l.b16 %v464
    %v1774 = vunpack.c.h.b16 %v464
    %v1775 = vunpack.c.l.b16 %v465
    %v1776 = vunpack.c.h.b16 %v465
    %v1777 = vunpack.c.l.b16 %v466
    %v1778 = vunpack.c.h.b16 %v466
    %v1779 = vunpack.c.l.b16 %v467
    %v1780 = vunpack.c.h.b16 %v467
    %v1781 = vunpack.c.l.b16 %v468
    %v1782 = vunpack.c.h.b16 %v468
    %v1783 = vunpack.c.l.b16 %v469
    %v1784 = vunpack.c.h.b16 %v469
    %v1785 = vunpack.c.l.b16 %v470
    %v1786 = vunpack.c.h.b16 %v470
    %v1787 = vunpack.c.l.b16 %v471
    %v1788 = vunpack.c.h.b16 %v471
    %v1789 = vunpack.c.l.b16 %v472
    %v1790 = vunpack.c.h.b16 %v472
    %v1791 = vunpack.c.l.b16 %v473
    %v1792 = vunpack.c.h.b16 %v473
    %v1793 = vunpack.c.l.b16 %v474
    %v1794 = vunpack.c.h.b16 %v474
    %v1795 = vunpack.c.l.b16 %v475
    %v1796 = vunpack.c.h.b16 %v475
    %v1797 = vunpack.c.l.b16 %v476
    %v1798 = vunpack.c.h.b16 %v476
    %v1799 = vunpack.c.l.b16 %v477
    %v1800 = vunpack.c.h.b16 %v477
    %v1801 = vunpack.c.l.b16 %v478
    %v1802 = vunpack.c.h.b16 %v478
    %v1803 = vunpack.c.l.b16 %v479
    %v1804 = vunpack.c.h.b16 %v479
    %v1805 = vunpack.c.l.b16 %v480
    %v1806 = vunpack.c.h.b16 %v480
    %v1807 = vunpack.c.l.b16 %v481
    %v1808 = vunpack.c.h.b16 %v481
    %v1809 = vunpack.c.l.b16 %v482
    %v1810 = vunpack.c.h.b16 %v482
    %v1811 = vunpack.c.l.b16 %v483
    %v1812 = vunpack.c.h.b16 %v483
    %v1813 = vunpack.c.l.b16 %v484
    %v1814 = vunpack.c.h.b16 %v484
    %v1815 = vunpack.c.l.b16 %v485
    %v1816 = vunpack.c.h.b16 %v485
    %v1817 = vunpack.c.l.b16 %v486
    %v1818 = vunpack.c.h.b16 %v486
    %v1819 = vunpack.c.l.b16 %v487
    %v1820 = vunpack.c.h.b16 %v487
    %v1821 = vunpack.c.l.b16 %v488
    %v1822 = vunpack.c.h.b16 %v488
    %v1823 = vunpack.c.l.b16 %v489
    %v1824 = vunpack.c.h.b16 %v489
    %v1825 = vunpack.c.l.b16 %v490
    %v1826 = vunpack.c.h.b16 %v490
    %v1827 = vunpack.c.l.b16 %v491
    %v1828 = vunpack.c.h.b16 %v491
    %v1829 = vunpack.c.l.b16 %v492
    %v1830 = vunpack.c.h.b16 %v492
    %v1831 = vunpack.c.l.b16 %v493
    %v1832 = vunpack.c.h.b16 %v493
    %v1833 = vunpack.c.l.b16 %v494
    %v1834 = vunpack.c.h.b16 %v494
    %v1835 = vunpack.c.l.b16 %v495
    %v1836 = vunpack.c.h.b16 %v495
    %v1837 = vunpack.c.l.b16 %v496
    %v1838 = vunpack.c.h.b16 %v496
    %v1839 = vunpack.c.l.b16 %v497
    %v1840 = vunpack.c.h.b16 %v497
    %v1841 = vunpack.c.l.b16 %v498
    %v1842 = vunpack.c.h.b16 %v498
    %v1843 = vunpack.c.l.b16 %v499
    %v1844 = vunpack.c.h.b16 %v499
    %v1845 = vunpack.c.l.b16 %v500
    %v1846 = vunpack.c.h.b16 %v500
    %v1847 = vunpack.c.l.b16 %v501
    %v1848 = vunpack.c.h.b16 %v501
    %v1849 = vunpack.c.l.b16 %v502
    %v1850 = vunpack.c.h.b16 %v502
    %v1851 = vunpack.c.l.b16 %v503
    %v1852 = vunpack.c.h.b16 %v503
    %v1853 = vunpack.c.l.b16 %v504
    %v1854 = vunpack.c.h.b16 %v504
    %v1855 = vunpack.c.l.b16 %v505
    %v1856 = vunpack.c.h.b16 %v505
    %v1857 = vunpack.c.l.b16 %v506
    %v1858 = vunpack.c.h.b16 %v506
    %v1859 = vunpack.c.l.b16 %v507
    %v1860 = vunpack.c.h.b16 %v507
    %v1861 = vunpack.c.l.b16 %v508
    %v1862 = vunpack.c.h.b16 %v508
    %v1863 = vunpack.c.l.b16 %v509
    %v1864 = vunpack.c.h.b16 %v509
    %v1865 = vunpack.c.l.b16 %v510
    %v1866 = vunpack.c.h.b16 %v510
    %v1867 = vunpack.c.l.b16 %v511
    %v1868 = vunpack.c.h.b16 %v511
    %v1869 = vunpack.c.l.b16 %v512
    %v1870 = vunpack.c.h.b16 %v512
    %v1871 = vunpack.c.l.b16 %v513
    %v1872 = vunpack.c.h.b16 %v513
    %v1873 = vunpack.c.l.b16 %v514
    %v1874 = vunpack.c.h.b16 %v514
    %v1875 = vunpack.c.l.b16 %v515
    %v1876 = vunpack.c.h.b16 %v515
    %v1877 = vunpack.c.l.b16 %v516
    %v1878 = vunpack.c.h.b16 %v516
    %v1879 = vunpack.c.l.b16 %v517
    %v1880 = vunpack.c.h.b16 %v517
    %v1881 = vunpack.c.l.b16 %v518
    %v1882 = vunpack.c.h.b16 %v518
    %v1883 = vunpack.c.l.b16 %v519
    %v1884 = vunpack.c.h.b16 %v519
    %v1885 = vunpack.c.l.b16 %v520
    %v1886 = vunpack.c.h.b16 %v520
    %v1887 = vunpack.c.l.b16 %v521
    %v1888 = vunpack.c.h.b16 %v521
    %v1889 = vunpack.c.l.b16 %v522
    %v1890 = vunpack.c.h.b16 %v522
    %v1891 = vunpack.c.l.b16 %v523
    %v1892 = vunpack.c.h.b16 %v523
    %v1893 = vpack.c.b16 %v1005, %v997
    %v1894 = vpack.c.b16 %v1006, %v998
    %v1895 = vpack.c.b16 %v1007, %v999
    %v1896 = vpack.c.b16 %v1008, %v1000
    %v1897 = vpack.c.b16 %v1009, %v1001
    %v1898 = vpack.c.b16 %v1010, %v1002
    %v1899 = vpack.c.b16 %v1011, %v1003
    %v1900 = vpack.c.b16 %v1012, %v1004
    %v1901 = vpack.c.b16 %v1021, %v1013
    %v1902 = vpack.c.b16 %v1022, %v1014
    %v1903 = vpack.c.b16 %v1023, %v1015
    %v1904 = vpack.c.b16 %v1024, %v1016
    %v1905 = vpack.c.b16 %v1025, %v1017
    %v1906 = vpack.c.b16 %v1026, %v1018
    %v1907 = vpack.c.b16 %v1027, %v1019
    %v1908 = vpack.c.b16 %v1028, %v1020
    %v1909 = vpack.c.b16 %v1037, %v1029
    %v1910 = vpack.c.b16 %v1038, %v1030
    %v1911 = vpack.c.b16 %v1039, %v1031
    %v1912 = vpack.c.b16 %v1040, %v1032
    %v1913 = vpack.c.b16 %v1041, %v1033
    %v1914 = vpack.c.b16 %v1042, %v1034
    %v1915 = vpack.c.b16 %v1043, %v1035
    %v1916 = vpack.c.b16 %v1044, %v1036
    %v1917 = vpack.c.b16 %v1053, %v1045
    %v1918 = vpack.c.b16 %v1054, %v1046
    %v1919 = vpack.c.b16 %v1055, %v1047
    %v1920 = vpack.c.b16 %v1056, %v1048
    %v1921 = vpack.c.b16 %v1057, %v1049
    %v1922 = vpack.c.b16 %v1058, %v1050
    %v1923 = vpack.c.b16 %v1059, %v1051
    %v1924 = vpack.c.b16 %v1060, %v1052
    %v1925 = vpack.c.b16 %v1069, %v1061
    %v1926 = vpack.c.b16 %v1070, %v1062
    %v1927 = vpack.c.b16 %v1071, %v1063
    %v1928 = vpack.c.b16 %v1072, %v1064
    %v1929 = vpack.c.b16 %v1073, %v1065
    %v1930 = vpack.c.b16 %v1074, %v1066
    %v1931 = vpack.c.b16 %v1075, %v1067
    %v1932 = vpack.c.b16 %v1076, %v1068
    %v1933 = vpack.c.b16 %v1085, %v1077
    %v1934 = vpack.c.b16 %v1086, %v1078
    %v1935 = vpack.c.b16 %v1087, %v1079
    %v1936 = vpack.c.b16 %v1088, %v1080
    %v1937 = vpack.c.b16 %v1089, %v1081
    %v1938 = vpack.c.b16 %v1090, %v1082
    %v1939 = vpack.c.b16 %v1091, %v1083
    %v1940 = vpack.c.b16 %v1092, %v1084
    %v1941 = vpack.c.b16 %v1101, %v1093
    %v1942 = vpack.c.b16 %v1102, %v1094
    %v1943 = vpack.c.b16 %v1103, %v1095
    %v1944 = vpack.c.b16 %v1104, %v1096
    %v1945 = vpack.c.b16 %v1105, %v1097
    %v1946 = vpack.c.b16 %v1106, %v1098
    %v1947 = vpack.c.b16 %v1107, %v1099
    %v1948 = vpack.c.b16 %v1108, %v1100
    %v1949 = vpack.c.b16 %v1117, %v1109
    %v1950 = vpack.c.b16 %v1118, %v1110
    %v1951 = vpack.c.b16 %v1119, %v1111
    %v1952 = vpack.c.b16 %v1120, %v1112
    %v1953 = vpack.c.b16 %v1121, %v1113
    %v1954 = vpack.c.b16 %v1122, %v1114
    %v1955 = vpack.c.b16 %v1123, %v1115
    %v1956 = vpack.c.b16 %v1124, %v1116
    %v1957 = vpack.c.b16 %v1133, %v1125
    %v1958 = vpack.c.b16 %v1134, %v1126
    %v1959 = vpack.c.b16 %v1135, %v1127
    %v1960 = vpack.c.b16 %v1136, %v1128
    %v1961 = vpack.c.b16 %v1137, %v1129
    %v1962 = vpack.c.b16 %v1138, %v1130
    %v1963 = vpack.c.b16 %v1139, %v1131
    %v1964 = vpack.c.b16 %v1140, %v1132
    %v1965 = vpack.c.b16 %v1149, %v1141
    %v1966 = vpack.c.b16 %v1150, %v1142
    %v1967 = vpack.c.b16 %v1151, %v1143
    %v1968 = vpack.c.b16 %v1152, %v1144
    %v1969 = vpack.c.b16 %v1153, %v1145
    %v1970 = vpack.c.b16 %v1154, %v1146
    %v1971 = vpack.c.b16 %v1155, %v1147
    %v1972 = vpack.c.b16 %v1156, %v1148
    %v1973 = vpack.c.b16 %v1165, %v1157
    %v1974 = vpack.c.b16 %v1166, %v1158
    %v1975 = vpack.c.b16 %v1167, %v1159
    %v1976 = vpack.c.b16 %v1168, %v1160
    %v1977 = vpack.c.b16 %v1169, %v1161
    %v1978 = vpack.c.b16 %v1170, %v1162
    %v1979 = vpack.c.b16 %v1171, %v1163
    %v1980 = vpack.c.b16 %v1172, %v1164
    %v1981 = vpack.c.b16 %v1181, %v1173
    %v1982 = vpack.c.b16 %v1182, %v1174
    %v1983 = vpack.c.b16 %v1183, %v1175
    %v1984 = vpack.c.b16 %v1184, %v1176
    %v1985 = vpack.c.b16 %v1185, %v1177
    %v1986 = vpack.c.b16 %v1186, %v1178
    %v1987 = vpack.c.b16 %v1187, %v1179
    %v1988 = vpack.c.b16 %v1188, %v1180
    %v1989 = vpack.c.b16 %v1197, %v1189
    %v1990 = vpack.c.b16 %v1198, %v1190
    %v1991 = vpack.c.b16 %v1199, %v1191
    %v1992 = vpack.c.b16 %v1200, %v1192
    %v1993 = vpack.c.b16 %v1201, %v1193
    %v1994 = vpack.c.b16 %v1202, %v1194
    %v1995 = vpack.c.b16 %v1203, %v1195
    %v1996 = vpack.c.b16 %v1204, %v1196
    %v1997 = vpack.c.b16 %v1213, %v1205
    %v1998 = vpack.c.b16 %v1214, %v1206
    %v1999 = vpack.c.b16 %v1215, %v1207
    %v2000 = vpack.c.b16 %v1216, %v1208
    %v2001 = vpack.c.b16 %v1217, %v1209
    %v2002 = vpack.c.b16 %v1218, %v1210
    %v2003 = vpack.c.b16 %v1219, %v1211
    %v2004 = vpack.c.b16 %v1220, %v1212
    %v2005 = vpack.c.b16 %v1229, %v1221
    %v2006 = vpack.c.b16 %v1230, %v1222
    %v2007 = vpack.c.b16 %v1231, %v1223
    %v2008 = vpack.c.b16 %v1232, %v1224
    %v2009 = vpack.c.b16 %v1233, %v1225
    %v2010 = vpack.c.b16 %v1234, %v1226
    %v2011 = vpack.c.b16 %v1235, %v1227
    %v2012 = vpack.c.b16 %v1236, %v1228
    %v2013 = vpack.c.b16 %v1245, %v1237
    %v2014 = vpack.c.b16 %v1246, %v1238
    %v2015 = vpack.c.b16 %v1247, %v1239
    %v2016 = vpack.c.b16 %v1248, %v1240
    %v2017 = vpack.c.b16 %v1249, %v1241
    %v2018 = vpack.c.b16 %v1250, %v1242
    %v2019 = vpack.c.b16 %v1251, %v1243
    %v2020 = vpack.c.b16 %v1252, %v1244
    %v2021 = vpack.c.b16 %v1261, %v1253
    %v2022 = vpack.c.b16 %v1262, %v1254
    %v2023 = vpack.c.b16 %v1263, %v1255
    %v2024 = vpack.c.b16 %v1264, %v1256
    %v2025 = vpack.c.b16 %v1265, %v1257
    %v2026 = vpack.c.b16 %v1266, %v1258
    %v2027 = vpack.c.b16 %v1267, %v1259
    %v2028 = vpack.c.b16 %v1268, %v1260
    %v2029 = vpack.c.b16 %v1277, %v1269
    %v2030 = vpack.c.b16 %v1278, %v1270
    %v2031 = vpack.c.b16 %v1279, %v1271
    %v2032 = vpack.c.b16 %v1280, %v1272
    %v2033 = vpack.c.b16 %v1281, %v1273
    %v2034 = vpack.c.b16 %v1282, %v1274
    %v2035 = vpack.c.b16 %v1283, %v1275
    %v2036 = vpack.c.b16 %v1284, %v1276
    %v2037 = vpack.c.b16 %v1293, %v1285
    %v2038 = vpack.c.b16 %v1294, %v1286
    %v2039 = vpack.c.b16 %v1295, %v1287
    %v2040 = vpack.c.b16 %v1296, %v1288
    %v2041 = vpack.c.b16 %v1297, %v1289
    %v2042 = vpack.c.b16 %v1298, %v1290
    %v2043 = vpack.c.b16 %v1299, %v1291
    %v2044 = vpack.c.b16 %v1300, %v1292
    %v2045 = vpack.c.b16 %v1309, %v1301
    %v2046 = vpack.c.b16 %v1310, %v1302
    %v2047 = vpack.c.b16 %v1311, %v1303
    %v2048 = vpack.c.b16 %v1312, %v1304
    %v2049 = vpack.c.b16 %v1313, %v1305
    %v2050 = vpack.c.b16 %v1314, %v1306
    %v2051 = vpack.c.b16 %v1315, %v1307
    %v2052 = vpack.c.b16 %v1316, %v1308
    %v2053 = vpack.c.b16 %v1325, %v1317
    %v2054 = vpack.c.b16 %v1326, %v1318
    %v2055 = vpack.c.b16 %v1327, %v1319
    %v2056 = vpack.c.b16 %v1328, %v1320
    %v2057 = vpack.c.b16 %v1329, %v1321
    %v2058 = vpack.c.b16 %v1330, %v1322
    %v2059 = vpack.c.b16 %v1331, %v1323
    %v2060 = vpack.c.b16 %v1332, %v1324
    %v2061 = vpack.c.b16 %v1341, %v1333
    %v2062 = vpack.c.b16 %v1342, %v1334
    %v2063 = vpack.c.b16 %v1343, %v1335
    %v2064 = vpack.c.b16 %v1344, %v1336
    %v2065 = vpack.c.b16 %v1345, %v1337
    %v2066 = vpack.c.b16 %v1346, %v1338
    %v2067 = vpack.c.b16 %v1347, %v1339
    %v2068 = vpack.c.b16 %v1348, %v1340
    %v2069 = vpack.c.b16 %v1357, %v1349
    %v2070 = vpack.c.b16 %v1358, %v1350
    %v2071 = vpack.c.b16 %v1359, %v1351
    %v2072 = vpack.c.b16 %v1360, %v1352
    %v2073 = vpack.c.b16 %v1361, %v1353
    %v2074 = vpack.c.b16 %v1362, %v1354
    %v2075 = vpack.c.b16 %v1363, %v1355
    %v2076 = vpack.c.b16 %v1364, %v1356
    %v2077 = vpack.c.b16 %v1373, %v1365
    %v2078 = vpack.c.b16 %v1374, %v1366
    %v2079 = vpack.c.b16 %v1375, %v1367
    %v2080 = vpack.c.b16 %v1376, %v1368
    %v2081 = vpack.c.b16 %v1377, %v1369
    %v2082 = vpack.c.b16 %v1378, %v1370
    %v2083 = vpack.c.b16 %v1379, %v1371
    %v2084 = vpack.c.b16 %v1380, %v1372
    %v2085 = vpack.c.b16 %v1389, %v1381
    %v2086 = vpack.c.b16 %v1390, %v1382
    %v2087 = vpack.c.b16 %v1391, %v1383
    %v2088 = vpack.c.b16 %v1392, %v1384
    %v2089 = vpack.c.b16 %v1393, %v1385
    %v2090 = vpack.c.b16 %v1394, %v1386
    %v2091 = vpack.c.b16 %v1395, %v1387
    %v2092 = vpack.c.b16 %v1396, %v1388
    %v2093 = vpack.c.b16 %v1405, %v1397
    %v2094 = vpack.c.b16 %v1406, %v1398
    %v2095 = vpack.c.b16 %v1407, %v1399
    %v2096 = vpack.c.b16 %v1408, %v1400
    %v2097 = vpack.c.b16 %v1409, %v1401
    %v2098 = vpack.c.b16 %v1410, %v1402
    %v2099 = vpack.c.b16 %v1411, %v1403
    %v2100 = vpack.c.b16 %v1412, %v1404
    %v2101 = vpack.c.b16 %v1421, %v1413
    %v2102 = vpack.c.b16 %v1422, %v1414
    %v2103 = vpack.c.b16 %v1423, %v1415
    %v2104 = vpack.c.b16 %v1424, %v1416
    %v2105 = vpack.c.b16 %v1425, %v1417
    %v2106 = vpack.c.b16 %v1426, %v1418
    %v2107 = vpack.c.b16 %v1427, %v1419
    %v2108 = vpack.c.b16 %v1428, %v1420
    %v2109 = vpack.c.b16 %v1437, %v1429
    %v2110 = vpack.c.b16 %v1438, %v1430
    %v2111 = vpack.c.b16 %v1439, %v1431
    %v2112 = vpack.c.b16 %v1440, %v1432
    %v2113 = vpack.c.b16 %v1441, %v1433
    %v2114 = vpack.c.b16 %v1442, %v1434
    %v2115 = vpack.c.b16 %v1443, %v1435
    %v2116 = vpack.c.b16 %v1444, %v1436
    %v2117 = vpack.c.b16 %v1453, %v1445
    %v2118 = vpack.c.b16 %v1454, %v1446
    %v2119 = vpack.c.b16 %v1455, %v1447
    %v2120 = vpack.c.b16 %v1456, %v1448
    %v2121 = vpack.c.b16 %v1457, %v1449
    %v2122 = vpack.c.b16 %v1458, %v1450
    %v2123 = vpack.c.b16 %v1459, %v1451
    %v2124 = vpack.c.b16 %v1460, %v1452
    %v2125 = vpack.c.b16 %v1469, %v1461
    %v2126 = vpack.c.b16 %v1470, %v1462
    %v2127 = vpack.c.b16 %v1471, %v1463
    %v2128 = vpack.c.b16 %v1472, %v1464
    %v2129 = vpack.c.b16 %v1473, %v1465
    %v2130 = vpack.c.b16 %v1474, %v1466
    %v2131 = vpack.c.b16 %v1475, %v1467
    %v2132 = vpack.c.b16 %v1476, %v1468
    %v2133 = vpack.c.b16 %v1485, %v1477
    %v2134 = vpack.c.b16 %v1486, %v1478
    %v2135 = vpack.c.b16 %v1487, %v1479
    %v2136 = vpack.c.b16 %v1488, %v1480
    %v2137 = vpack.c.b16 %v1489, %v1481
    %v2138 = vpack.c.b16 %v1490, %v1482
    %v2139 = vpack.c.b16 %v1491, %v1483
    %v2140 = vpack.c.b16 %v1492, %v1484
    %v2141 = vpack.c.b16 %v1501, %v1493
    %v2142 = vpack.c.b16 %v1502, %v1494
    %v2143 = vpack.c.b16 %v1503, %v1495
    %v2144 = vpack.c.b16 %v1504, %v1496
    %v2145 = vpack.c.b16 %v1505, %v1497
    %v2146 = vpack.c.b16 %v1506, %v1498
    %v2147 = vpack.c.b16 %v1507, %v1499
    %v2148 = vpack.c.b16 %v1508, %v1500
    %v2149 = vpack.c.b16 %v1517, %v1509
    %v2150 = vpack.c.b16 %v1518, %v1510
    %v2151 = vpack.c.b16 %v1519, %v1511
    %v2152 = vpack.c.b16 %v1520, %v1512
    %v2153 = vpack.c.b16 %v1521, %v1513
    %v2154 = vpack.c.b16 %v1522, %v1514
    %v2155 = vpack.c.b16 %v1523, %v1515
    %v2156 = vpack.c.b16 %v1524, %v1516
    %v2157 = vpack.c.b16 %v1533, %v1525
    %v2158 = vpack.c.b16 %v1534, %v1526
    %v2159 = vpack.c.b16 %v1535, %v1527
    %v2160 = vpack.c.b16 %v1536, %v1528
    %v2161 = vpack.c.b16 %v1537, %v1529
    %v2162 = vpack.c.b16 %v1538, %v1530
    %v2163 = vpack.c.b16 %v1539, %v1531
    %v2164 = vpack.c.b16 %v1540, %v1532
    %v2165 = vpack.c.b16 %v1549, %v1541
    %v2166 = vpack.c.b16 %v1550, %v1542
    %v2167 = vpack.c.b16 %v1551, %v1543
    %v2168 = vpack.c.b16 %v1552, %v1544
    %v2169 = vpack.c.b16 %v1553, %v1545
    %v2170 = vpack.c.b16 %v1554, %v1546
    %v2171 = vpack.c.b16 %v1555, %v1547
    %v2172 = vpack.c.b16 %v1556, %v1548
    %v2173 = vpack.c.b16 %v1565, %v1557
    %v2174 = vpack.c.b16 %v1566, %v1558
    %v2175 = vpack.c.b16 %v1567, %v1559
    %v2176 = vpack.c.b16 %v1568, %v1560
    %v2177 = vpack.c.b16 %v1569, %v1561
    %v2178 = vpack.c.b16 %v1570, %v1562
    %v2179 = vpack.c.b16 %v1571, %v1563
    %v2180 = vpack.c.b16 %v1572, %v1564
    %v2181 = vpack.c.b16 %v1581, %v1573
    %v2182 = vpack.c.b16 %v1582, %v1574
    %v2183 = vpack.c.b16 %v1583, %v1575
    %v2184 = vpack.c.b16 %v1584, %v1576
    %v2185 = vpack.c.b16 %v1585, %v1577
    %v2186 = vpack.c.b16 %v1586, %v1578
    %v2187 = vpack.c.b16 %v1587, %v1579
    %v2188 = vpack.c.b16 %v1588, %v1580
    %v2189 = vpack.c.b16 %v1597, %v1589
    %v2190 = vpack.c.b16 %v1598, %v1590
    %v2191 = vpack.c.b16 %v1599, %v1591
    %v2192 = vpack.c.b16 %v1600, %v1592
    %v2193 = vpack.c.b16 %v1601, %v1593
    %v2194 = vpack.c.b16 %v1602, %v1594
    %v2195 = vpack.c.b16 %v1603, %v1595
    %v2196 = vpack.c.b16 %v1604, %v1596
    %v2197 = vpack.c.b16 %v1613, %v1605
    %v2198 = vpack.c.b16 %v1614, %v1606
    %v2199 = vpack.c.b16 %v1615, %v1607
    %v2200 = vpack.c.b16 %v1616, %v1608
    %v2201 = vpack.c.b16 %v1617, %v1609
    %v2202 = vpack.c.b16 %v1618, %v1610
    %v2203 = vpack.c.b16 %v1619, %v1611
    %v2204 = vpack.c.b16 %v1620, %v1612
    %v2205 = vpack.c.b16 %v1629, %v1621
    %v2206 = vpack.c.b16 %v1630, %v1622
    %v2207 = vpack.c.b16 %v1631, %v1623
    %v2208 = vpack.c.b16 %v1632, %v1624
    %v2209 = vpack.c.b16 %v1633, %v1625
    %v2210 = vpack.c.b16 %v1634, %v1626
    %v2211 = vpack.c.b16 %v1635, %v1627
    %v2212 = vpack.c.b16 %v1636, %v1628
    %v2213 = vpack.c.b16 %v1645, %v1637
    %v2214 = vpack.c.b16 %v1646, %v1638
    %v2215 = vpack.c.b16 %v1647, %v1639
    %v2216 = vpack.c.b16 %v1648, %v1640
    %v2217 = vpack.c.b16 %v1649, %v1641
    %v2218 = vpack.c.b16 %v1650, %v1642
    %v2219 = vpack.c.b16 %v1651, %v1643
    %v2220 = vpack.c.b16 %v1652, %v1644
    %v2221 = vpack.c.b16 %v1661, %v1653
    %v2222 = vpack.c.b16 %v1662, %v1654
    %v2223 = vpack.c.b16 %v1663, %v1655
    %v2224 = vpack.c.b16 %v1664, %v1656
    %v2225 = vpack.c.b16 %v1665, %v1657
    %v2226 = vpack.c.b16 %v1666, %v1658
    %v2227 = vpack.c.b16 %v1667, %v1659
    %v2228 = vpack.c.b16 %v1668, %v1660
    %v2229 = vpack.c.b16 %v1677, %v1669
    %v2230 = vpack.c.b16 %v1678, %v1670
    %v2231 = vpack.c.b16 %v1679, %v1671
    %v2232 = vpack.c.b16 %v1680, %v1672
    %v2233 = vpack.c.b16 %v1681, %v1673
    %v2234 = vpack.c.b16 %v1682, %v1674
    %v2235 = vpack.c.b16 %v1683, %v1675
    %v2236 = vpack.c.b16 %v1684, %v1676
    %v2237 = vpack.c.b16 %v1693, %v1685
    %v2238 = vpack.c.b16 %v1694, %v1686
    %v2239 = vpack.c.b16 %v1695, %v1687
    %v2240 = vpack.c.b16 %v1696, %v1688
    %v2241 = vpack.c.b16 %v1697, %v1689
    %v2242 = vpack.c.b16 %v1698, %v1690
    %v2243 = vpack.c.b16 %v1699, %v1691
    %v2244 = vpack.c.b16 %v1700, %v1692
    %v2245 = vpack.c.b16 %v1709, %v1701
    %v2246 = vpack.c.b16 %v1710, %v1702
    %v2247 = vpack.c.b16 %v1711, %v1703
    %v2248 = vpack.c.b16 %v1712, %v1704
    %v2249 = vpack.c.b16 %v1713, %v1705
    %v2250 = vpack.c.b16 %v1714, %v1706
    %v2251 = vpack.c.b16 %v1715, %v1707
    %v2252 = vpack.c.b16 %v1716, %v1708
    %v2253 = vpack.c.b16 %v1725, %v1717
    %v2254 = vpack.c.b16 %v1726, %v1718
    %v2255 = vpack.c.b16 %v1727, %v1719
    %v2256 = vpack.c.b16 %v1728, %v1720
    %v2257 = vpack.c.b16 %v1729, %v1721
    %v2258 = vpack.c.b16 %v1730, %v1722
    %v2259 = vpack.c.b16 %v1731, %v1723
    %v2260 = vpack.c.b16 %v1732, %v1724
    %v2261 = vpack.c.b16 %v1741, %v1733
    %v2262 = vpack.c.b16 %v1742, %v1734
    %v2263 = vpack.c.b16 %v1743, %v1735
    %v2264 = vpack.c.b16 %v1744, %v1736
    %v2265 = vpack.c.b16 %v1745, %v1737
    %v2266 = vpack.c.b16 %v1746, %v1738
    %v2267 = vpack.c.b16 %v1747, %v1739
    %v2268 = vpack.c.b16 %v1748, %v1740
    %v2269 = vpack.c.b16 %v1757, %v1749
    %v2270 = vpack.c.b16 %v1758, %v1750
    %v2271 = vpack.c.b16 %v1759, %v1751
    %v2272 = vpack.c.b16 %v1760, %v1752
    %v2273 = vpack.c.b16 %v1761, %v1753
    %v2274 = vpack.c.b16 %v1762, %v1754
    %v2275 = vpack.c.b16 %v1763, %v1755
    %v2276 = vpack.c.b16 %v1764, %v1756
    %v2277 = vpack.c.b16 %v1773, %v1765
    %v2278 = vpack.c.b16 %v1774, %v1766
    %v2279 = vpack.c.b16 %v1775, %v1767
    %v2280 = vpack.c.b16 %v1776, %v1768
    %v2281 = vpack.c.b16 %v1777, %v1769
    %v2282 = vpack.c.b16 %v1778, %v1770
    %v2283 = vpack.c.b16 %v1779, %v1771
    %v2284 = vpack.c.b16 %v1780, %v1772
    %v2285 = vpack.c.b16 %v1789, %v1781
    %v2286 = vpack.c.b16 %v1790, %v1782
    %v2287 = vpack.c.b16 %v1791, %v1783
    %v2288 = vpack.c.b16 %v1792, %v1784
    %v2289 = vpack.c.b16 %v1793, %v1785
    %v2290 = vpack.c.b16 %v1794, %v1786
    %v2291 = vpack.c.b16 %v1795, %v1787
    %v2292 = vpack.c.b16 %v1796, %v1788
    %v2293 = vpack.c.b16 %v1805, %v1797
    %v2294 = vpack.c.b16 %v1806, %v1798
    %v2295 = vpack.c.b16 %v1807, %v1799
    %v2296 = vpack.c.b16 %v1808, %v1800
    %v2297 = vpack.c.b16 %v1809, %v1801
    %v2298 = vpack.c.b16 %v1810, %v1802
    %v2299 = vpack.c.b16 %v1811, %v1803
    %v2300 = vpack.c.b16 %v1812, %v1804
    %v2301 = vpack.c.b16 %v1821, %v1813
    %v2302 = vpack.c.b16 %v1822, %v1814
    %v2303 = vpack.c.b16 %v1823, %v1815
    %v2304 = vpack.c.b16 %v1824, %v1816
    %v2305 = vpack.c.b16 %v1825, %v1817
    %v2306 = vpack.c.b16 %v1826, %v1818
    %v2307 = vpack.c.b16 %v1827, %v1819
    %v2308 = vpack.c.b16 %v1828, %v1820
    %v2309 = vpack.c.b16 %v1837, %v1829
    %v2310 = vpack.c.b16 %v1838, %v1830
    %v2311 = vpack.c.b16 %v1839, %v1831
    %v2312 = vpack.c.b16 %v1840, %v1832
    %v2313 = vpack.c.b16 %v1841, %v1833
    %v2314 = vpack.c.b16 %v1842, %v1834
    %v2315 = vpack.c.b16 %v1843, %v1835
    %v2316 = vpack.c.b16 %v1844, %v1836
    %v2317 = vpack.c.b16 %v1853, %v1845
    %v2318 = vpack.c.b16 %v1854, %v1846
    %v2319 = vpack.c.b16 %v1855, %v1847
    %v2320 = vpack.c.b16 %v1856, %v1848
    %v2321 = vpack.c.b16 %v1857, %v1849
    %v2322 = vpack.c.b16 %v1858, %v1850
    %v2323 = vpack.c.b16 %v1859, %v1851
    %v2324 = vpack.c.b16 %v1860, %v1852
    %v2325 = vpack.c.b16 %v1869, %v1861
    %v2326 = vpack.c.b16 %v1870, %v1862
    %v2327 = vpack.c.b16 %v1871, %v1863
    %v2328 = vpack.c.b16 %v1872, %v1864
    %v2329 = vpack.c.b16 %v1873, %v1865
    %v2330 = vpack.c.b16 %v1874, %v1866
    %v2331 = vpack.c.b16 %v1875, %v1867
    %v2332 = vpack.c.b16 %v1876, %v1868
    %v2333 = vpack.c.b16 %v1885, %v1877
    %v2334 = vpack.c.b16 %v1886, %v1878
    %v2335 = vpack.c.b16 %v1887, %v1879
    %v2336 = vpack.c.b16 %v1888, %v1880
    %v2337 = vpack.c.b16 %v1889, %v1881
    %v2338 = vpack.c.b16 %v1890, %v1882
    %v2339 = vpack.c.b16 %v1891, %v1883
    %v2340 = vpack.c.b16 %v1892, %v1884
    %2789 = vmatprep.subr.bf16.mxu0 %v1894
    %2790 = vmatpush1.bf16.msra.mxu0 %v1893
    %2791 = vmatprep.subr.bf16.mxu0 %v1902
    %2792 = vmatpush1.bf16.msra.mxu0 %v1901
    %2793 = vmatprep.subr.bf16.mxu0 %v1910
    %2794 = vmatpush1.bf16.msra.mxu0 %v1909
    %2795 = vmatprep.subr.bf16.mxu0 %v1918
    %2796 = vmatpush1.bf16.msra.mxu0 %v1917
    %2797 = vmatprep.subr.bf16.mxu0 %v1926
    %2798 = vmatpush1.bf16.msra.mxu0 %v1925
    %2799 = vmatprep.subr.bf16.mxu0 %v1934
    %2800 = vmatpush1.bf16.msra.mxu0 %v1933
    %2801 = vmatprep.subr.bf16.mxu0 %v1942
    %2802 = vmatpush1.bf16.msra.mxu0 %v1941
    %2803 = vmatprep.subr.bf16.mxu0 %v1950
    %2804 = vmatpush1.bf16.msra.mxu0 %v1949
    %2805 = vmatprep.subr.bf16.mxu0 %v1958
    %2806 = vmatpush1.bf16.msra.mxu0 %v1957
    %2807 = vmatprep.subr.bf16.mxu0 %v1966
    %2808 = vmatpush1.bf16.msra.mxu0 %v1965
    %2809 = vmatprep.subr.bf16.mxu0 %v1974
    %2810 = vmatpush1.bf16.msra.mxu0 %v1973
    %2811 = vmatprep.subr.bf16.mxu0 %v1982
    %2812 = vmatpush1.bf16.msra.mxu0 %v1981
    %2813 = vmatprep.subr.bf16.mxu0 %v1990
    %2814 = vmatpush1.bf16.msra.mxu0 %v1989
    %2815 = vmatprep.subr.bf16.mxu0 %v1998
    %2816 = vmatpush1.bf16.msra.mxu0 %v1997
    %2817 = vmatprep.subr.bf16.mxu0 %v2006
    %2818 = vmatpush1.bf16.msra.mxu0 %v2005
    %2819 = vmatprep.subr.bf16.mxu0 %v2014
    %2820 = vmatpush1.bf16.msra.mxu0 %v2013
    %2821 = vmatprep.mubr.bf16.mxu0 %v536
    %2822 = vmatmul.mubr.bf16.gmra.mrb[0].mxu0 %v535
    %v2823 = vpop.f32.mrb[0].mxu0
    %v2824 = vadd.f32 0.0, %v2823
    %v2825 = vpop.f32.mrb[0].mxu0
    %v2826 = vadd.f32 0.0, %v2825
    %v2827 = vpop.f32.mrb[0].mxu0
    %v2828 = vpop.f32.mrb[0].mxu0
    %2829 = vdwg.mxu0
    %2830 = vmatprep.subr.bf16.mxu0 %v2022
    %2831 = vmatpush1.bf16.msra.mxu0 %v2021
    %2832 = vmatprep.subr.bf16.mxu0 %v2030
    %2833 = vmatpush1.bf16.msra.mxu0 %v2029
    %2834 = vmatprep.subr.bf16.mxu0 %v2038
    %2835 = vmatpush1.bf16.msra.mxu0 %v2037
    %2836 = vmatprep.subr.bf16.mxu0 %v2046
    %2837 = vmatpush1.bf16.msra.mxu0 %v2045
    %2838 = vmatprep.subr.bf16.mxu0 %v2054
    %2839 = vmatpush1.bf16.msra.mxu0 %v2053
    %2840 = vmatprep.subr.bf16.mxu0 %v2062
    %2841 = vmatpush1.bf16.msra.mxu0 %v2061
    %2842 = vmatprep.subr.bf16.mxu0 %v2070
    %2843 = vmatpush1.bf16.msra.mxu0 %v2069
    %2844 = vmatprep.subr.bf16.mxu0 %v2078
    %2845 = vmatpush1.bf16.msra.mxu0 %v2077
    %2846 = vmatprep.subr.bf16.mxu0 %v2086
    %2847 = vmatpush1.bf16.msra.mxu0 %v2085
    %2848 = vmatprep.subr.bf16.mxu0 %v2094
    %2849 = vmatpush1.bf16.msra.mxu0 %v2093
    %2850 = vmatprep.subr.bf16.mxu0 %v2102
    %2851 = vmatpush1.bf16.msra.mxu0 %v2101
    %2852 = vmatprep.subr.bf16.mxu0 %v2110
    %2853 = vmatpush1.bf16.msra.mxu0 %v2109
    %2854 = vmatprep.subr.bf16.mxu0 %v2118
    %2855 = vmatpush1.bf16.msra.mxu0 %v2117
    %2856 = vmatprep.subr.bf16.mxu0 %v2126
    %2857 = vmatpush1.bf16.msra.mxu0 %v2125
    %2858 = vmatprep.subr.bf16.mxu0 %v2134
    %2859 = vmatpush1.bf16.msra.mxu0 %v2133
    %2860 = vmatprep.subr.bf16.mxu0 %v2142
    %2861 = vmatpush1.bf16.msra.mxu0 %v2141
    %2862 = vmatprep.mubr.bf16.mxu0 %v538
    %2863 = vmatmul.mubr.bf16.gmra.mrb[0].mxu0 %v537
    %v2864 = vpop.f32.mrb[0].mxu0
    %v2865 = vadd.f32 %v2824, %v2864
    %v2866 = vpop.f32.mrb[0].mxu0
    %v2867 = vadd.f32 %v2826, %v2866
    %v2868 = vpop.f32.mrb[0].mxu0
    %v2869 = vpop.f32.mrb[0].mxu0
    %2870 = vdwg.mxu0
    %2871 = vmatprep.subr.bf16.mxu0 %v2150
    %2872 = vmatpush1.bf16.msra.mxu0 %v2149
    %2873 = vmatprep.subr.bf16.mxu0 %v2158
    %2874 = vmatpush1.bf16.msra.mxu0 %v2157
    %2875 = vmatprep.subr.bf16.mxu0 %v2166
    %2876 = vmatpush1.bf16.msra.mxu0 %v2165
    %2877 = vmatprep.subr.bf16.mxu0 %v2174
    %2878 = vmatpush1.bf16.msra.mxu0 %v2173
    %2879 = vmatprep.subr.bf16.mxu0 %v2182
    %2880 = vmatpush1.bf16.msra.mxu0 %v2181
    %2881 = vmatprep.subr.bf16.mxu0 %v2190
    %2882 = vmatpush1.bf16.msra.mxu0 %v2189
    %2883 = vmatprep.subr.bf16.mxu0 %v2198
    %2884 = vmatpush1.bf16.msra.mxu0 %v2197
    %2885 = vmatprep.subr.bf16.mxu0 %v2206
    %2886 = vmatpush1.bf16.msra.mxu0 %v2205
    %2887 = vmatprep.subr.bf16.mxu0 %v2214
    %2888 = vmatpush1.bf16.msra.mxu0 %v2213
    %2889 = vmatprep.subr.bf16.mxu0 %v2222
    %2890 = vmatpush1.bf16.msra.mxu0 %v2221
    %2891 = vmatprep.subr.bf16.mxu0 %v2230
    %2892 = vmatpush1.bf16.msra.mxu0 %v2229
    %2893 = vmatprep.subr.bf16.mxu0 %v2238
    %2894 = vmatpush1.bf16.msra.mxu0 %v2237
    %2895 = vmatprep.subr.bf16.mxu0 %v2246
    %2896 = vmatpush1.bf16.msra.mxu0 %v2245
    %2897 = vmatprep.subr.bf16.mxu0 %v2254
    %2898 = vmatpush1.bf16.msra.mxu0 %v2253
    %2899 = vmatprep.subr.bf16.mxu0 %v2262
    %2900 = vmatpush1.bf16.msra.mxu0 %v2261
    %2901 = vmatprep.subr.bf16.mxu0 %v2270
    %2902 = vmatpush1.bf16.msra.mxu0 %v2269
    %2903 = vmatprep.mubr.bf16.mxu0 %v540
    %2904 = vmatmul.mubr.bf16.gmra.mrb[0].mxu0 %v539
    %v2905 = vpop.f32.mrb[0].mxu0
    %v2906 = vadd.f32 %v2865, %v2905
    %v2907 = vpop.f32.mrb[0].mxu0
    %v2908 = vadd.f32 %v2867, %v2907
    %v2909 = vpop.f32.mrb[0].mxu0
    %v2910 = vpop.f32.mrb[0].mxu0
    %2911 = vdwg.mxu0
    %2912 = vmatprep.subr.bf16.mxu0 %v2278
    %2913 = vmatpush1.bf16.msra.mxu0 %v2277
    %2914 = vmatprep.subr.bf16.mxu0 %v2286
    %2915 = vmatpush1.bf16.msra.mxu0 %v2285
    %2916 = vmatprep.subr.bf16.mxu0 %v2294
    %2917 = vmatpush1.bf16.msra.mxu0 %v2293
    %2918 = vmatprep.subr.bf16.mxu0 %v2302
    %2919 = vmatpush1.bf16.msra.mxu0 %v2301
    %2920 = vmatprep.subr.bf16.mxu0 %v2310
    %2921 = vmatpush1.bf16.msra.mxu0 %v2309
    %2922 = vmatprep.subr.bf16.mxu0 %v2318
    %2923 = vmatpush1.bf16.msra.mxu0 %v2317
    %2924 = vmatprep.subr.bf16.mxu0 %v2326
    %2925 = vmatpush1.bf16.msra.mxu0 %v2325
    %2926 = vmatprep.subr.bf16.mxu0 %v2334
    %2927 = vmatpush1.bf16.msra.mxu0 %v2333
    %2928 = vmatprep.subr.bf16.mxu0 0
    %2929 = vmatpush1.bf16.msra.mxu0 0
    %2930 = vmatprep.subr.bf16.mxu0 0
    %2931 = vmatpush1.bf16.msra.mxu0 0
    %2932 = vmatprep.subr.bf16.mxu0 0
    %2933 = vmatpush1.bf16.msra.mxu0 0
    %2934 = vmatprep.subr.bf16.mxu0 0
    %2935 = vmatpush1.bf16.msra.mxu0 0
    %2936 = vmatprep.subr.bf16.mxu0 0
    %2937 = vmatpush1.bf16.msra.mxu0 0
    %2938 = vmatprep.subr.bf16.mxu0 0
    %2939 = vmatpush1.bf16.msra.mxu0 0
    %2940 = vmatprep.subr.bf16.mxu0 0
    %2941 = vmatpush1.bf16.msra.mxu0 0
    %2942 = vmatprep.subr.bf16.mxu0 0
    %2943 = vmatpush1.bf16.msra.mxu0 0
    %2944 = vmatprep.mubr.bf16.mxu0 0
    %2945 = vmatmul.mubr.bf16.gmra.mrb[0].mxu0 %v541
    %v2946 = vpop.f32.mrb[0].mxu0
    %v2947 = vadd.f32 %v2906, %v2946
    %v2948 = vpop.f32.mrb[0].mxu0
    %v2949 = vadd.f32 %v2908, %v2948
    %v2950 = vpop.f32.mrb[0].mxu0
    %v2951 = vpop.f32.mrb[0].mxu0
    %2952 = vdwg.mxu0
    %2953 = vmatprep.subr.bf16.mxu0 %v1896
    %2954 = vmatpush1.bf16.msra.mxu0 %v1895
    %2955 = vmatprep.subr.bf16.mxu0 %v1904
    %2956 = vmatpush1.bf16.msra.mxu0 %v1903
    %2957 = vmatprep.subr.bf16.mxu0 %v1912
    %2958 = vmatpush1.bf16.msra.mxu0 %v1911
    %2959 = vmatprep.subr.bf16.mxu0 %v1920
    %2960 = vmatpush1.bf16.msra.mxu0 %v1919
    %2961 = vmatprep.subr.bf16.mxu0 %v1928
    %2962 = vmatpush1.bf16.msra.mxu0 %v1927
    %2963 = vmatprep.subr.bf16.mxu0 %v1936
    %2964 = vmatpush1.bf16.msra.mxu0 %v1935
    %2965 = vmatprep.subr.bf16.mxu0 %v1944
    %2966 = vmatpush1.bf16.msra.mxu0 %v1943
    %2967 = vmatprep.subr.bf16.mxu0 %v1952
    %2968 = vmatpush1.bf16.msra.mxu0 %v1951
    %2969 = vmatprep.subr.bf16.mxu0 %v1960
    %2970 = vmatpush1.bf16.msra.mxu0 %v1959
    %2971 = vmatprep.subr.bf16.mxu0 %v1968
    %2972 = vmatpush1.bf16.msra.mxu0 %v1967
    %2973 = vmatprep.subr.bf16.mxu0 %v1976
    %2974 = vmatpush1.bf16.msra.mxu0 %v1975
    %2975 = vmatprep.subr.bf16.mxu0 %v1984
    %2976 = vmatpush1.bf16.msra.mxu0 %v1983
    %2977 = vmatprep.subr.bf16.mxu0 %v1992
    %2978 = vmatpush1.bf16.msra.mxu0 %v1991
    %2979 = vmatprep.subr.bf16.mxu0 %v2000
    %2980 = vmatpush1.bf16.msra.mxu0 %v1999
    %2981 = vmatprep.subr.bf16.mxu0 %v2008
    %2982 = vmatpush1.bf16.msra.mxu0 %v2007
    %2983 = vmatprep.subr.bf16.mxu0 %v2016
    %2984 = vmatpush1.bf16.msra.mxu0 %v2015
    %2985 = vmatprep.mubr.bf16.mxu0 %v536
    %2986 = vmatmul.mubr.bf16.gmra.mrb[0].mxu0 %v535
    %v2987 = vpop.f32.mrb[0].mxu0
    %v2988 = vadd.f32 0.0, %v2987
    %v2989 = vpop.f32.mrb[0].mxu0
    %v2990 = vadd.f32 0.0, %v2989
    %v2991 = vpop.f32.mrb[0].mxu0
    %v2992 = vpop.f32.mrb[0].mxu0
    %2993 = vdwg.mxu0
    %2994 = vmatprep.subr.bf16.mxu0 %v2024
    %2995 = vmatpush1.bf16.msra.mxu0 %v2023
    %2996 = vmatprep.subr.bf16.mxu0 %v2032
    %2997 = vmatpush1.bf16.msra.mxu0 %v2031
    %2998 = vmatprep.subr.bf16.mxu0 %v2040
    %2999 = vmatpush1.bf16.msra.mxu0 %v2039
    %3000 = vmatprep.subr.bf16.mxu0 %v2048
    %3001 = vmatpush1.bf16.msra.mxu0 %v2047
    %3002 = vmatprep.subr.bf16.mxu0 %v2056
    %3003 = vmatpush1.bf16.msra.mxu0 %v2055
    %3004 = vmatprep.subr.bf16.mxu0 %v2064
    %3005 = vmatpush1.bf16.msra.mxu0 %v2063
    %3006 = vmatprep.subr.bf16.mxu0 %v2072
    %3007 = vmatpush1.bf16.msra.mxu0 %v2071
    %3008 = vmatprep.subr.bf16.mxu0 %v2080
    %3009 = vmatpush1.bf16.msra.mxu0 %v2079
    %3010 = vmatprep.subr.bf16.mxu0 %v2088
    %3011 = vmatpush1.bf16.msra.mxu0 %v2087
    %3012 = vmatprep.subr.bf16.mxu0 %v2096
    %3013 = vmatpush1.bf16.msra.mxu0 %v2095
    %3014 = vmatprep.subr.bf16.mxu0 %v2104
    %3015 = vmatpush1.bf16.msra.mxu0 %v2103
    %3016 = vmatprep.subr.bf16.mxu0 %v2112
    %3017 = vmatpush1.bf16.msra.mxu0 %v2111
    %3018 = vmatprep.subr.bf16.mxu0 %v2120
    %3019 = vmatpush1.bf16.msra.mxu0 %v2119
    %3020 = vmatprep.subr.bf16.mxu0 %v2128
    %3021 = vmatpush1.bf16.msra.mxu0 %v2127
    %3022 = vmatprep.subr.bf16.mxu0 %v2136
    %3023 = vmatpush1.bf16.msra.mxu0 %v2135
    %3024 = vmatprep.subr.bf16.mxu0 %v2144
    %3025 = vmatpush1.bf16.msra.mxu0 %v2143
    %3026 = vmatprep.mubr.bf16.mxu0 %v538
    %3027 = vmatmul.mubr.bf16.gmra.mrb[0].mxu0 %v537
    %v3028 = vpop.f32.mrb[0].mxu0
    %v3029 = vadd.f32 %v2988, %v3028
    %v3030 = vpop.f32.mrb[0].mxu0
    %v3031 = vadd.f32 %v2990, %v3030
    %v3032 = vpop.f32.mrb[0].mxu0
    %v3033 = vpop.f32.mrb[0].mxu0
    %3034 = vdwg.mxu0
    %3035 = vmatprep.subr.bf16.mxu0 %v2152
    %3036 = vmatpush1.bf16.msra.mxu0 %v2151
    %3037 = vmatprep.subr.bf16.mxu0 %v2160
    %3038 = vmatpush1.bf16.msra.mxu0 %v2159
    %3039 = vmatprep.subr.bf16.mxu0 %v2168
    %3040 = vmatpush1.bf16.msra.mxu0 %v2167
    %3041 = vmatprep.subr.bf16.mxu0 %v2176
    %3042 = vmatpush1.bf16.msra.mxu0 %v2175
    %3043 = vmatprep.subr.bf16.mxu0 %v2184
    %3044 = vmatpush1.bf16.msra.mxu0 %v2183
    %3045 = vmatprep.subr.bf16.mxu0 %v2192
    %3046 = vmatpush1.bf16.msra.mxu0 %v2191
    %3047 = vmatprep.subr.bf16.mxu0 %v2200
    %3048 = vmatpush1.bf16.msra.mxu0 %v2199
    %3049 = vmatprep.subr.bf16.mxu0 %v2208
    %3050 = vmatpush1.bf16.msra.mxu0 %v2207
    %3051 = vmatprep.subr.bf16.mxu0 %v2216
    %3052 = vmatpush1.bf16.msra.mxu0 %v2215
    %3053 = vmatprep.subr.bf16.mxu0 %v2224
    %3054 = vmatpush1.bf16.msra.mxu0 %v2223
    %3055 = vmatprep.subr.bf16.mxu0 %v2232
    %3056 = vmatpush1.bf16.msra.mxu0 %v2231
    %3057 = vmatprep.subr.bf16.mxu0 %v2240
    %3058 = vmatpush1.bf16.msra.mxu0 %v2239
    %3059 = vmatprep.subr.bf16.mxu0 %v2248
    %3060 = vmatpush1.bf16.msra.mxu0 %v2247
    %3061 = vmatprep.subr.bf16.mxu0 %v2256
    %3062 = vmatpush1.bf16.msra.mxu0 %v2255
    %3063 = vmatprep.subr.bf16.mxu0 %v2264
    %3064 = vmatpush1.bf16.msra.mxu0 %v2263
    %3065 = vmatprep.subr.bf16.mxu0 %v2272
    %3066 = vmatpush1.bf16.msra.mxu0 %v2271
    %3067 = vmatprep.mubr.bf16.mxu0 %v540
    %3068 = vmatmul.mubr.bf16.gmra.mrb[0].mxu0 %v539
    %v3069 = vpop.f32.mrb[0].mxu0
    %v3070 = vadd.f32 %v3029, %v3069
    %v3071 = vpop.f32.mrb[0].mxu0
    %v3072 = vadd.f32 %v3031, %v3071
    %v3073 = vpop.f32.mrb[0].mxu0
    %v3074 = vpop.f32.mrb[0].mxu0
    %3075 = vdwg.mxu0
    %3076 = vmatprep.subr.bf16.mxu0 %v2280
    %3077 = vmatpush1.bf16.msra.mxu0 %v2279
    %3078 = vmatprep.subr.bf16.mxu0 %v2288
    %3079 = vmatpush1.bf16.msra.mxu0 %v2287
    %3080 = vmatprep.subr.bf16.mxu0 %v2296
    %3081 = vmatpush1.bf16.msra.mxu0 %v2295
    %3082 = vmatprep.subr.bf16.mxu0 %v2304
    %3083 = vmatpush1.bf16.msra.mxu0 %v2303
    %3084 = vmatprep.subr.bf16.mxu0 %v2312
    %3085 = vmatpush1.bf16.msra.mxu0 %v2311
    %3086 = vmatprep.subr.bf16.mxu0 %v2320
    %3087 = vmatpush1.bf16.msra.mxu0 %v2319
    %3088 = vmatprep.subr.bf16.mxu0 %v2328
    %3089 = vmatpush1.bf16.msra.mxu0 %v2327
    %3090 = vmatprep.subr.bf16.mxu0 %v2336
    %3091 = vmatpush1.bf16.msra.mxu0 %v2335
    %3092 = vmatprep.subr.bf16.mxu0 0
    %3093 = vmatpush1.bf16.msra.mxu0 0
    %3094 = vmatprep.subr.bf16.mxu0 0
    %3095 = vmatpush1.bf16.msra.mxu0 0
    %3096 = vmatprep.subr.bf16.mxu0 0
    %3097 = vmatpush1.bf16.msra.mxu0 0
    %3098 = vmatprep.subr.bf16.mxu0 0
    %3099 = vmatpush1.bf16.msra.mxu0 0
    %3100 = vmatprep.subr.bf16.mxu0 0
    %3101 = vmatpush1.bf16.msra.mxu0 0
    %3102 = vmatprep.subr.bf16.mxu0 0
    %3103 = vmatpush1.bf16.msra.mxu0 0
    %3104 = vmatprep.subr.bf16.mxu0 0
    %3105 = vmatpush1.bf16.msra.mxu0 0
    %3106 = vmatprep.subr.bf16.mxu0 0
    %3107 = vmatpush1.bf16.msra.mxu0 0
    %3108 = vmatprep.mubr.bf16.mxu0 0
    %3109 = vmatmul.mubr.bf16.gmra.mrb[0].mxu0 %v541
    %v3110 = vpop.f32.mrb[0].mxu0
    %v3111 = vadd.f32 %v3070, %v3110
    %v3112 = vpop.f32.mrb[0].mxu0
    %v3113 = vadd.f32 %v3072, %v3112
    %v3114 = vpop.f32.mrb[0].mxu0
    %v3115 = vpop.f32.mrb[0].mxu0
    %3116 = vdwg.mxu0
    %3117 = vmatprep.subr.bf16.mxu0 %v1898
    %3118 = vmatpush1.bf16.msra.mxu0 %v1897
    %3119 = vmatprep.subr.bf16.mxu0 %v1906
    %3120 = vmatpush1.bf16.msra.mxu0 %v1905
    %3121 = vmatprep.subr.bf16.mxu0 %v1914
    %3122 = vmatpush1.bf16.msra.mxu0 %v1913
    %3123 = vmatprep.subr.bf16.mxu0 %v1922
    %3124 = vmatpush1.bf16.msra.mxu0 %v1921
    %3125 = vmatprep.subr.bf16.mxu0 %v1930
    %3126 = vmatpush1.bf16.msra.mxu0 %v1929
    %3127 = vmatprep.subr.bf16.mxu0 %v1938
    %3128 = vmatpush1.bf16.msra.mxu0 %v1937
    %3129 = vmatprep.subr.bf16.mxu0 %v1946
    %3130 = vmatpush1.bf16.msra.mxu0 %v1945
    %3131 = vmatprep.subr.bf16.mxu0 %v1954
    %3132 = vmatpush1.bf16.msra.mxu0 %v1953
    %3133 = vmatprep.subr.bf16.mxu0 %v1962
    %3134 = vmatpush1.bf16.msra.mxu0 %v1961
    %3135 = vmatprep.subr.bf16.mxu0 %v1970
    %3136 = vmatpush1.bf16.msra.mxu0 %v1969
    %3137 = vmatprep.subr.bf16.mxu0 %v1978
    %3138 = vmatpush1.bf16.msra.mxu0 %v1977
    %3139 = vmatprep.subr.bf16.mxu0 %v1986
    %3140 = vmatpush1.bf16.msra.mxu0 %v1985
    %3141 = vmatprep.subr.bf16.mxu0 %v1994
    %3142 = vmatpush1.bf16.msra.mxu0 %v1993
    %3143 = vmatprep.subr.bf16.mxu0 %v2002
    %3144 = vmatpush1.bf16.msra.mxu0 %v2001
    %3145 = vmatprep.subr.bf16.mxu0 %v2010
    %3146 = vmatpush1.bf16.msra.mxu0 %v2009
    %3147 = vmatprep.subr.bf16.mxu0 %v2018
    %3148 = vmatpush1.bf16.msra.mxu0 %v2017
    %3149 = vmatprep.mubr.bf16.mxu0 %v536
    %3150 = vmatmul.mubr.bf16.gmra.mrb[0].mxu0 %v535
    %v3151 = vpop.f32.mrb[0].mxu0
    %v3152 = vadd.f32 0.0, %v3151
    %v3153 = vpop.f32.mrb[0].mxu0
    %v3154 = vadd.f32 0.0, %v3153
    %v3155 = vpop.f32.mrb[0].mxu0
    %v3156 = vpop.f32.mrb[0].mxu0
    %3157 = vdwg.mxu0
    %3158 = vmatprep.subr.bf16.mxu0 %v2026
    %3159 = vmatpush1.bf16.msra.mxu0 %v2025
    %3160 = vmatprep.subr.bf16.mxu0 %v2034
    %3161 = vmatpush1.bf16.msra.mxu0 %v2033
    %3162 = vmatprep.subr.bf16.mxu0 %v2042
    %3163 = vmatpush1.bf16.msra.mxu0 %v2041
    %3164 = vmatprep.subr.bf16.mxu0 %v2050
    %3165 = vmatpush1.bf16.msra.mxu0 %v2049
    %3166 = vmatprep.subr.bf16.mxu0 %v2058
    %3167 = vmatpush1.bf16.msra.mxu0 %v2057
    %3168 = vmatprep.subr.bf16.mxu0 %v2066
    %3169 = vmatpush1.bf16.msra.mxu0 %v2065
    %3170 = vmatprep.subr.bf16.mxu0 %v2074
    %3171 = vmatpush1.bf16.msra.mxu0 %v2073
    %3172 = vmatprep.subr.bf16.mxu0 %v2082
    %3173 = vmatpush1.bf16.msra.mxu0 %v2081
    %3174 = vmatprep.subr.bf16.mxu0 %v2090
    %3175 = vmatpush1.bf16.msra.mxu0 %v2089
    %3176 = vmatprep.subr.bf16.mxu0 %v2098
    %3177 = vmatpush1.bf16.msra.mxu0 %v2097
    %3178 = vmatprep.subr.bf16.mxu0 %v2106
    %3179 = vmatpush1.bf16.msra.mxu0 %v2105
    %3180 = vmatprep.subr.bf16.mxu0 %v2114
    %3181 = vmatpush1.bf16.msra.mxu0 %v2113
    %3182 = vmatprep.subr.bf16.mxu0 %v2122
    %3183 = vmatpush1.bf16.msra.mxu0 %v2121
    %3184 = vmatprep.subr.bf16.mxu0 %v2130
    %3185 = vmatpush1.bf16.msra.mxu0 %v2129
    %3186 = vmatprep.subr.bf16.mxu0 %v2138
    %3187 = vmatpush1.bf16.msra.mxu0 %v2137
    %3188 = vmatprep.subr.bf16.mxu0 %v2146
    %3189 = vmatpush1.bf16.msra.mxu0 %v2145
    %3190 = vmatprep.mubr.bf16.mxu0 %v538
    %3191 = vmatmul.mubr.bf16.gmra.mrb[0].mxu0 %v537
    %v3192 = vpop.f32.mrb[0].mxu0
    %v3193 = vadd.f32 %v3152, %v3192
    %v3194 = vpop.f32.mrb[0].mxu0
    %v3195 = vadd.f32 %v3154, %v3194
    %v3196 = vpop.f32.mrb[0].mxu0
    %v3197 = vpop.f32.mrb[0].mxu0
    %3198 = vdwg.mxu0
    %3199 = vmatprep.subr.bf16.mxu0 %v2154
    %3200 = vmatpush1.bf16.msra.mxu0 %v2153
    %3201 = vmatprep.subr.bf16.mxu0 %v2162
    %3202 = vmatpush1.bf16.msra.mxu0 %v2161
    %3203 = vmatprep.subr.bf16.mxu0 %v2170
    %3204 = vmatpush1.bf16.msra.mxu0 %v2169
    %3205 = vmatprep.subr.bf16.mxu0 %v2178
    %3206 = vmatpush1.bf16.msra.mxu0 %v2177
    %3207 = vmatprep.subr.bf16.mxu0 %v2186
    %3208 = vmatpush1.bf16.msra.mxu0 %v2185
    %3209 = vmatprep.subr.bf16.mxu0 %v2194
    %3210 = vmatpush1.bf16.msra.mxu0 %v2193
    %3211 = vmatprep.subr.bf16.mxu0 %v2202
    %3212 = vmatpush1.bf16.msra.mxu0 %v2201
    %3213 = vmatprep.subr.bf16.mxu0 %v2210
    %3214 = vmatpush1.bf16.msra.mxu0 %v2209
    %3215 = vmatprep.subr.bf16.mxu0 %v2218
    %3216 = vmatpush1.bf16.msra.mxu0 %v2217
    %3217 = vmatprep.subr.bf16.mxu0 %v2226
    %3218 = vmatpush1.bf16.msra.mxu0 %v2225
    %3219 = vmatprep.subr.bf16.mxu0 %v2234
    %3220 = vmatpush1.bf16.msra.mxu0 %v2233
    %3221 = vmatprep.subr.bf16.mxu0 %v2242
    %3222 = vmatpush1.bf16.msra.mxu0 %v2241
    %3223 = vmatprep.subr.bf16.mxu0 %v2250
    %3224 = vmatpush1.bf16.msra.mxu0 %v2249
    %3225 = vmatprep.subr.bf16.mxu0 %v2258
    %3226 = vmatpush1.bf16.msra.mxu0 %v2257
    %3227 = vmatprep.subr.bf16.mxu0 %v2266
    %3228 = vmatpush1.bf16.msra.mxu0 %v2265
    %3229 = vmatprep.subr.bf16.mxu0 %v2274
    %3230 = vmatpush1.bf16.msra.mxu0 %v2273
    %3231 = vmatprep.mubr.bf16.mxu0 %v540
    %3232 = vmatmul.mubr.bf16.gmra.mrb[0].mxu0 %v539
    %v3233 = vpop.f32.mrb[0].mxu0
    %v3234 = vadd.f32 %v3193, %v3233
    %v3235 = vpop.f32.mrb[0].mxu0
    %v3236 = vadd.f32 %v3195, %v3235
    %v3237 = vpop.f32.mrb[0].mxu0
    %v3238 = vpop.f32.mrb[0].mxu0
    %3239 = vdwg.mxu0
    %3240 = vmatprep.subr.bf16.mxu0 %v2282
    %3241 = vmatpush1.bf16.msra.mxu0 %v2281
    %3242 = vmatprep.subr.bf16.mxu0 %v2290
    %3243 = vmatpush1.bf16.msra.mxu0 %v2289
    %3244 = vmatprep.subr.bf16.mxu0 %v2298
    %3245 = vmatpush1.bf16.msra.mxu0 %v2297
    %3246 = vmatprep.subr.bf16.mxu0 %v2306
    %3247 = vmatpush1.bf16.msra.mxu0 %v2305
    %3248 = vmatprep.subr.bf16.mxu0 %v2314
    %3249 = vmatpush1.bf16.msra.mxu0 %v2313
    %3250 = vmatprep.subr.bf16.mxu0 %v2322
    %3251 = vmatpush1.bf16.msra.mxu0 %v2321
    %3252 = vmatprep.subr.bf16.mxu0 %v2330
    %3253 = vmatpush1.bf16.msra.mxu0 %v2329
    %3254 = vmatprep.subr.bf16.mxu0 %v2338
    %3255 = vmatpush1.bf16.msra.mxu0 %v2337
    %3256 = vmatprep.subr.bf16.mxu0 0
    %3257 = vmatpush1.bf16.msra.mxu0 0
    %3258 = vmatprep.subr.bf16.mxu0 0
    %3259 = vmatpush1.bf16.msra.mxu0 0
    %3260 = vmatprep.subr.bf16.mxu0 0
    %3261 = vmatpush1.bf16.msra.mxu0 0
    %3262 = vmatprep.subr.bf16.mxu0 0
    %3263 = vmatpush1.bf16.msra.mxu0 0
    %3264 = vmatprep.subr.bf16.mxu0 0
    %3265 = vmatpush1.bf16.msra.mxu0 0
    %3266 = vmatprep.subr.bf16.mxu0 0
    %3267 = vmatpush1.bf16.msra.mxu0 0
    %3268 = vmatprep.subr.bf16.mxu0 0
    %3269 = vmatpush1.bf16.msra.mxu0 0
    %3270 = vmatprep.subr.bf16.mxu0 0
    %3271 = vmatpush1.bf16.msra.mxu0 0
    %3272 = vmatprep.mubr.bf16.mxu0 0
    %3273 = vmatmul.mubr.bf16.gmra.mrb[0].mxu0 %v541
    %v3274 = vpop.f32.mrb[0].mxu0
    %v3275 = vadd.f32 %v3234, %v3274
    %v3276 = vpop.f32.mrb[0].mxu0
    %v3277 = vadd.f32 %v3236, %v3276
    %v3278 = vpop.f32.mrb[0].mxu0
    %v3279 = vpop.f32.mrb[0].mxu0
    %3280 = vdwg.mxu0
    %3281 = vmatprep.subr.bf16.mxu0 %v1900
    %3282 = vmatpush1.bf16.msra.mxu0 %v1899
    %3283 = vmatprep.subr.bf16.mxu0 %v1908
    %3284 = vmatpush1.bf16.msra.mxu0 %v1907
    %3285 = vmatprep.subr.bf16.mxu0 %v1916
    %3286 = vmatpush1.bf16.msra.mxu0 %v1915
    %3287 = vmatprep.subr.bf16.mxu0 %v1924
    %3288 = vmatpush1.bf16.msra.mxu0 %v1923
    %3289 = vmatprep.subr.bf16.mxu0 %v1932
    %3290 = vmatpush1.bf16.msra.mxu0 %v1931
    %3291 = vmatprep.subr.bf16.mxu0 %v1940
    %3292 = vmatpush1.bf16.msra.mxu0 %v1939
    %3293 = vmatprep.subr.bf16.mxu0 %v1948
    %3294 = vmatpush1.bf16.msra.mxu0 %v1947
    %3295 = vmatprep.subr.bf16.mxu0 %v1956
    %3296 = vmatpush1.bf16.msra.mxu0 %v1955
    %3297 = vmatprep.subr.bf16.mxu0 %v1964
    %3298 = vmatpush1.bf16.msra.mxu0 %v1963
    %3299 = vmatprep.subr.bf16.mxu0 %v1972
    %3300 = vmatpush1.bf16.msra.mxu0 %v1971
    %3301 = vmatprep.subr.bf16.mxu0 %v1980
    %3302 = vmatpush1.bf16.msra.mxu0 %v1979
    %3303 = vmatprep.subr.bf16.mxu0 %v1988
    %3304 = vmatpush1.bf16.msra.mxu0 %v1987
    %3305 = vmatprep.subr.bf16.mxu0 %v1996
    %3306 = vmatpush1.bf16.msra.mxu0 %v1995
    %3307 = vmatprep.subr.bf16.mxu0 %v2004
    %3308 = vmatpush1.bf16.msra.mxu0 %v2003
    %3309 = vmatprep.subr.bf16.mxu0 %v2012
    %3310 = vmatpush1.bf16.msra.mxu0 %v2011
    %3311 = vmatprep.subr.bf16.mxu0 %v2020
    %3312 = vmatpush1.bf16.msra.mxu0 %v2019
    %3313 = vmatprep.mubr.bf16.mxu0 %v536
    %3314 = vmatmul.mubr.bf16.gmra.mrb[0].mxu0 %v535
    %v3315 = vpop.f32.mrb[0].mxu0
    %v3316 = vadd.f32 0.0, %v3315
    %v3317 = vpop.f32.mrb[0].mxu0
    %v3318 = vadd.f32 0.0, %v3317
    %v3319 = vpop.f32.mrb[0].mxu0
    %v3320 = vpop.f32.mrb[0].mxu0
    %3321 = vdwg.mxu0
    %3322 = vmatprep.subr.bf16.mxu0 %v2028
    %3323 = vmatpush1.bf16.msra.mxu0 %v2027
    %3324 = vmatprep.subr.bf16.mxu0 %v2036
    %3325 = vmatpush1.bf16.msra.mxu0 %v2035
    %3326 = vmatprep.subr.bf16.mxu0 %v2044
    %3327 = vmatpush1.bf16.msra.mxu0 %v2043
    %3328 = vmatprep.subr.bf16.mxu0 %v2052
    %3329 = vmatpush1.bf16.msra.mxu0 %v2051
    %3330 = vmatprep.subr.bf16.mxu0 %v2060
    %3331 = vmatpush1.bf16.msra.mxu0 %v2059
    %3332 = vmatprep.subr.bf16.mxu0 %v2068
    %3333 = vmatpush1.bf16.msra.mxu0 %v2067
    %3334 = vmatprep.subr.bf16.mxu0 %v2076
    %3335 = vmatpush1.bf16.msra.mxu0 %v2075
    %3336 = vmatprep.subr.bf16.mxu0 %v2084
    %3337 = vmatpush1.bf16.msra.mxu0 %v2083
    %3338 = vmatprep.subr.bf16.mxu0 %v2092
    %3339 = vmatpush1.bf16.msra.mxu0 %v2091
    %3340 = vmatprep.subr.bf16.mxu0 %v2100
    %3341 = vmatpush1.bf16.msra.mxu0 %v2099
    %3342 = vmatprep.subr.bf16.mxu0 %v2108
    %3343 = vmatpush1.bf16.msra.mxu0 %v2107
    %3344 = vmatprep.subr.bf16.mxu0 %v2116
    %3345 = vmatpush1.bf16.msra.mxu0 %v2115
    %3346 = vmatprep.subr.bf16.mxu0 %v2124
    %3347 = vmatpush1.bf16.msra.mxu0 %v2123
    %3348 = vmatprep.subr.bf16.mxu0 %v2132
    %3349 = vmatpush1.bf16.msra.mxu0 %v2131
    %3350 = vmatprep.subr.bf16.mxu0 %v2140
    %3351 = vmatpush1.bf16.msra.mxu0 %v2139
    %3352 = vmatprep.subr.bf16.mxu0 %v2148
    %3353 = vmatpush1.bf16.msra.mxu0 %v2147
    %3354 = vmatprep.mubr.bf16.mxu0 %v538
    %3355 = vmatmul.mubr.bf16.gmra.mrb[0].mxu0 %v537
    %v3356 = vpop.f32.mrb[0].mxu0
    %v3357 = vadd.f32 %v3316, %v3356
    %v3358 = vpop.f32.mrb[0].mxu0
    %v3359 = vadd.f32 %v3318, %v3358
    %v3360 = vpop.f32.mrb[0].mxu0
    %v3361 = vpop.f32.mrb[0].mxu0
    %3362 = vdwg.mxu0
    %3363 = vmatprep.subr.bf16.mxu0 %v2156
    %3364 = vmatpush1.bf16.msra.mxu0 %v2155
    %3365 = vmatprep.subr.bf16.mxu0 %v2164
    %3366 = vmatpush1.bf16.msra.mxu0 %v2163
    %3367 = vmatprep.subr.bf16.mxu0 %v2172
    %3368 = vmatpush1.bf16.msra.mxu0 %v2171
    %3369 = vmatprep.subr.bf16.mxu0 %v2180
    %3370 = vmatpush1.bf16.msra.mxu0 %v2179
    %3371 = vmatprep.subr.bf16.mxu0 %v2188
    %3372 = vmatpush1.bf16.msra.mxu0 %v2187
    %3373 = vmatprep.subr.bf16.mxu0 %v2196
    %3374 = vmatpush1.bf16.msra.mxu0 %v2195
    %3375 = vmatprep.subr.bf16.mxu0 %v2204
    %3376 = vmatpush1.bf16.msra.mxu0 %v2203
    %3377 = vmatprep.subr.bf16.mxu0 %v2212
    %3378 = vmatpush1.bf16.msra.mxu0 %v2211
    %3379 = vmatprep.subr.bf16.mxu0 %v2220
    %3380 = vmatpush1.bf16.msra.mxu0 %v2219
    %3381 = vmatprep.subr.bf16.mxu0 %v2228
    %3382 = vmatpush1.bf16.msra.mxu0 %v2227
    %3383 = vmatprep.subr.bf16.mxu0 %v2236
    %3384 = vmatpush1.bf16.msra.mxu0 %v2235
    %3385 = vmatprep.subr.bf16.mxu0 %v2244
    %3386 = vmatpush1.bf16.msra.mxu0 %v2243
    %3387 = vmatprep.subr.bf16.mxu0 %v2252
    %3388 = vmatpush1.bf16.msra.mxu0 %v2251
    %3389 = vmatprep.subr.bf16.mxu0 %v2260
    %3390 = vmatpush1.bf16.msra.mxu0 %v2259
    %3391 = vmatprep.subr.bf16.mxu0 %v2268
    %3392 = vmatpush1.bf16.msra.mxu0 %v2267
    %3393 = vmatprep.subr.bf16.mxu0 %v2276
    %3394 = vmatpush1.bf16.msra.mxu0 %v2275
    %3395 = vmatprep.mubr.bf16.mxu0 %v540
    %3396 = vmatmul.mubr.bf16.gmra.mrb[0].mxu0 %v539
    %v3397 = vpop.f32.mrb[0].mxu0
    %v3398 = vadd.f32 %v3357, %v3397
    %v3399 = vpop.f32.mrb[0].mxu0
    %v3400 = vadd.f32 %v3359, %v3399
    %v3401 = vpop.f32.mrb[0].mxu0
    %v3402 = vpop.f32.mrb[0].mxu0
    %3403 = vdwg.mxu0
    %3404 = vmatprep.subr.bf16.mxu0 %v2284
    %3405 = vmatpush1.bf16.msra.mxu0 %v2283
    %3406 = vmatprep.subr.bf16.mxu0 %v2292
    %3407 = vmatpush1.bf16.msra.mxu0 %v2291
    %3408 = vmatprep.subr.bf16.mxu0 %v2300
    %3409 = vmatpush1.bf16.msra.mxu0 %v2299
    %3410 = vmatprep.subr.bf16.mxu0 %v2308
    %3411 = vmatpush1.bf16.msra.mxu0 %v2307
    %3412 = vmatprep.subr.bf16.mxu0 %v2316
    %3413 = vmatpush1.bf16.msra.mxu0 %v2315
    %3414 = vmatprep.subr.bf16.mxu0 %v2324
    %3415 = vmatpush1.bf16.msra.mxu0 %v2323
    %3416 = vmatprep.subr.bf16.mxu0 %v2332
    %3417 = vmatpush1.bf16.msra.mxu0 %v2331
    %3418 = vmatprep.subr.bf16.mxu0 %v2340
    %3419 = vmatpush1.bf16.msra.mxu0 %v2339
    %3420 = vmatprep.subr.bf16.mxu0 0
    %3421 = vmatpush1.bf16.msra.mxu0 0
    %3422 = vmatprep.subr.bf16.mxu0 0
    %3423 = vmatpush1.bf16.msra.mxu0 0
    %3424 = vmatprep.subr.bf16.mxu0 0
    %3425 = vmatpush1.bf16.msra.mxu0 0
    %3426 = vmatprep.subr.bf16.mxu0 0
    %3427 = vmatpush1.bf16.msra.mxu0 0
    %3428 = vmatprep.subr.bf16.mxu0 0
    %3429 = vmatpush1.bf16.msra.mxu0 0
    %3430 = vmatprep.subr.bf16.mxu0 0
    %3431 = vmatpush1.bf16.msra.mxu0 0
    %3432 = vmatprep.subr.bf16.mxu0 0
    %3433 = vmatpush1.bf16.msra.mxu0 0
    %3434 = vmatprep.subr.bf16.mxu0 0
    %3435 = vmatpush1.bf16.msra.mxu0 0
    %3436 = vmatprep.mubr.bf16.mxu0 0
    %3437 = vmatmul.mubr.bf16.gmra.mrb[0].mxu0 %v541
    %v3438 = vpop.f32.mrb[0].mxu0
    %v3439 = vadd.f32 %v3398, %v3438
    %v3440 = vpop.f32.mrb[0].mxu0
    %v3441 = vadd.f32 %v3400, %v3440
    %v3442 = vpop.f32.mrb[0].mxu0
    %v3443 = vpop.f32.mrb[0].mxu0
    %3444 = vdwg.mxu0
    %v3445 = vmul.f32 %v2947, 0.01
    %v3446 = vmul.f32 %v2949, 0.01
    %v3447 = vmul.f32 %v3111, 0.01
    %v3448 = vmul.f32 %v3113, 0.01
    %v3449 = vmul.f32 %v3275, 0.01
    %v3450 = vmul.f32 %v3277, 0.01
    %v3451 = vmul.f32 %v3439, 0.01
    %v3452 = vmul.f32 %v3441, 0.01
    %v3453 = vmax.f32 %v2947, %v3445
    %v3454 = vmax.f32 %v2949, %v3446
    %v3455 = vmax.f32 %v3111, %v3447
    %v3456 = vmax.f32 %v3113, %v3448
    %v3457 = vmax.f32 %v3275, %v3449
    %v3458 = vmax.f32 %v3277, %v3450
    %v3459 = vmax.f32 %v3439, %v3451
    %v3460 = vmax.f32 %v3441, %v3452
    %v3461 = vpack.c.bf16 %v3453, %v3453
    %v3462 = vpack.c.bf16 %v3454, %v3454
    %v3463 = vpack.c.bf16 %v3455, %v3455
    %v3464 = vpack.c.bf16 %v3456, %v3456
    %v3465 = vpack.c.bf16 %v3457, %v3457
    %v3466 = vpack.c.bf16 %v3458, %v3458
    %v3467 = vpack.c.bf16 %v3459, %v3459
    %v3468 = vpack.c.bf16 %v3460, %v3460
    %v3469 = vld [vmem:[#allocation7] sm:$0xf]
    %v3470 = vld [vmem:[#allocation7 + $0x4] sm:$0xf]
    %v3471 = vld [vmem:[#allocation7 + $0x8] sm:$0xf]
    %v3472 = vld [vmem:[#allocation7 + $0xc] sm:$0xf]
    %v3473 = vld [vmem:[#allocation7 + $0x10] sm:$0xf]
    %v3474 = vld [vmem:[#allocation7 + $0x14] sm:$0xf]
    %v3475 = vld [vmem:[#allocation7 + $0x18] sm:$0xf]
    %v3476 = vld [vmem:[#allocation7 + $0x1c] sm:$0xf]
    %v3477 = vld [vmem:[#allocation7 + $0x20] sm:$0xf]
    %v3478 = vld [vmem:[#allocation7 + $0x24] sm:$0xf]
    %v3479 = vld [vmem:[#allocation7 + $0x28] sm:$0xf]
    %v3480 = vld [vmem:[#allocation7 + $0x2c] sm:$0xf]
    %v3481 = vld [vmem:[#allocation7 + $0x30] sm:$0xf]
    %v3482 = vld [vmem:[#allocation7 + $0x34] sm:$0xf]
    %v3483 = vld [vmem:[#allocation7 + $0x38] sm:$0xf]
    %v3484 = vld [vmem:[#allocation7 + $0x3c] sm:$0xf]
    %v3485 = vld [vmem:[#allocation7 + $0x40] sm:$0xf]
    %v3486 = vld [vmem:[#allocation7 + $0x44] sm:$0xf]
    %v3487 = vld [vmem:[#allocation7 + $0x48] sm:$0xf]
    %v3488 = vld [vmem:[#allocation7 + $0x4c] sm:$0xf]
    %v3489 = vld [vmem:[#allocation7 + $0x50] sm:$0xf]
    %v3490 = vld [vmem:[#allocation7 + $0x54] sm:$0xf]
    %v3491 = vld [vmem:[#allocation7 + $0x58] sm:$0xf]
    %v3492 = vld [vmem:[#allocation7 + $0x5c] sm:$0xf]
    %v3493 = vld [vmem:[#allocation7 + $0x60] sm:$0xf]
    %v3494 = vld [vmem:[#allocation7 + $0x64] sm:$0xf]
    %v3495 = vld [vmem:[#allocation7 + $0x68] sm:$0xf]
    %v3496 = vld [vmem:[#allocation7 + $0x6c] sm:$0xf]
    %v3497 = vld [vmem:[#allocation7 + $0x70] sm:$0xf]
    %v3498 = vld [vmem:[#allocation7 + $0x74] sm:$0xf]
    %v3499 = vld [vmem:[#allocation7 + $0x78] sm:$0xf]
    %v3500 = vld [vmem:[#allocation7 + $0x7c] sm:$0xf]
    %v3501 = vld [vmem:[#allocation7 + $0x80] sm:$0xf]
    %v3502 = vld [vmem:[#allocation7 + $0x84] sm:$0xf]
    %v3503 = vld [vmem:[#allocation7 + $0x88] sm:$0xf]
    %v3504 = vld [vmem:[#allocation7 + $0x8c] sm:$0xf]
    %v3505 = vld [vmem:[#allocation7 + $0x90] sm:$0xf]
    %v3506 = vld [vmem:[#allocation7 + $0x94] sm:$0xf]
    %v3507 = vld [vmem:[#allocation7 + $0x98] sm:$0xf]
    %v3508 = vld [vmem:[#allocation7 + $0x9c] sm:$0xf]
    %v3509 = vld [vmem:[#allocation7 + $0xa0] sm:$0xf]
    %v3510 = vld [vmem:[#allocation7 + $0xa4] sm:$0xf]
    %v3511 = vld [vmem:[#allocation7 + $0xa8] sm:$0xf]
    %v3512 = vld [vmem:[#allocation7 + $0xac] sm:$0xf]
    %v3513 = vld [vmem:[#allocation7 + $0xb0] sm:$0xf]
    %v3514 = vld [vmem:[#allocation7 + $0xb4] sm:$0xf]
    %v3515 = vld [vmem:[#allocation7 + $0xb8] sm:$0xf]
    %v3516 = vld [vmem:[#allocation7 + $0xbc] sm:$0xf]
    %v3517 = vld [vmem:[#allocation7 + $0xc0] sm:$0xf]
    %v3518 = vld [vmem:[#allocation7 + $0xc4] sm:$0xf]
    %v3519 = vld [vmem:[#allocation7 + $0xc8] sm:$0xf]
    %v3520 = vld [vmem:[#allocation7 + $0xcc] sm:$0xf]
    %v3521 = vld [vmem:[#allocation7 + $0xd0] sm:$0xf]
    %v3522 = vld [vmem:[#allocation7 + $0xd4] sm:$0xf]
    %v3523 = vld [vmem:[#allocation7 + $0xd8] sm:$0xf]
    %v3524 = vld [vmem:[#allocation7 + $0xdc] sm:$0xf]
    %v3525 = vld [vmem:[#allocation7 + $0xe0] sm:$0xf]
    %v3526 = vld [vmem:[#allocation7 + $0xe4] sm:$0xf]
    %v3527 = vld [vmem:[#allocation7 + $0xe8] sm:$0xf]
    %v3528 = vld [vmem:[#allocation7 + $0xec] sm:$0xf]
    %v3529 = vld [vmem:[#allocation7 + $0xf0] sm:$0xf]
    %v3530 = vld [vmem:[#allocation7 + $0xf4] sm:$0xf]
    %v3531 = vld [vmem:[#allocation7 + $0xf8] sm:$0xf]
    %v3532 = vld [vmem:[#allocation7 + $0xfc] sm:$0xf]
    %v3533 = vld [vmem:[#allocation7 + $0x100] sm:$0xf]
    %v3534 = vld [vmem:[#allocation7 + $0x104] sm:$0xf]
    %v3535 = vld [vmem:[#allocation7 + $0x108] sm:$0xf]
    %v3536 = vld [vmem:[#allocation7 + $0x10c] sm:$0xf]
    %v3537 = vld [vmem:[#allocation7 + $0x110] sm:$0xf]
    %v3538 = vld [vmem:[#allocation7 + $0x114] sm:$0xf]
    %v3539 = vld [vmem:[#allocation7 + $0x118] sm:$0xf]
    %v3540 = vld [vmem:[#allocation7 + $0x11c] sm:$0xf]
    %v3541 = vld [vmem:[#allocation7 + $0x120] sm:$0xf]
    %v3542 = vld [vmem:[#allocation7 + $0x124] sm:$0xf]
    %v3543 = vld [vmem:[#allocation7 + $0x128] sm:$0xf]
    %v3544 = vld [vmem:[#allocation7 + $0x12c] sm:$0xf]
    %v3545 = vld [vmem:[#allocation7 + $0x130] sm:$0xf]
    %v3546 = vld [vmem:[#allocation7 + $0x134] sm:$0xf]
    %v3547 = vld [vmem:[#allocation7 + $0x138] sm:$0xf]
    %v3548 = vld [vmem:[#allocation7 + $0x13c] sm:$0xf]
    %v3549 = vld [vmem:[#allocation7 + $0x140] sm:$0xf]
    %v3550 = vld [vmem:[#allocation7 + $0x144] sm:$0xf]
    %v3551 = vld [vmem:[#allocation7 + $0x148] sm:$0xf]
    %v3552 = vld [vmem:[#allocation7 + $0x14c] sm:$0xf]
    %v3553 = vld [vmem:[#allocation7 + $0x150] sm:$0xf]
    %v3554 = vld [vmem:[#allocation7 + $0x154] sm:$0xf]
    %v3555 = vld [vmem:[#allocation7 + $0x158] sm:$0xf]
    %v3556 = vld [vmem:[#allocation7 + $0x15c] sm:$0xf]
    %v3557 = vld [vmem:[#allocation7 + $0x160] sm:$0xf]
    %v3558 = vld [vmem:[#allocation7 + $0x164] sm:$0xf]
    %v3559 = vld [vmem:[#allocation7 + $0x168] sm:$0xf]
    %v3560 = vld [vmem:[#allocation7 + $0x16c] sm:$0xf]
    %v3561 = vld [vmem:[#allocation7 + $0x170] sm:$0xf]
    %v3562 = vld [vmem:[#allocation7 + $0x174] sm:$0xf]
    %v3563 = vld [vmem:[#allocation7 + $0x178] sm:$0xf]
    %v3564 = vld [vmem:[#allocation7 + $0x17c] sm:$0xf]
    %v3565 = vld [vmem:[#allocation7 + $0x180] sm:$0xf]
    %v3566 = vld [vmem:[#allocation7 + $0x184] sm:$0xf]
    %v3567 = vld [vmem:[#allocation7 + $0x188] sm:$0xf]
    %v3568 = vld [vmem:[#allocation7 + $0x18c] sm:$0xf]
    %v3569 = vld [vmem:[#allocation7 + $0x190] sm:$0xf]
    %v3570 = vld [vmem:[#allocation7 + $0x194] sm:$0xf]
    %v3571 = vld [vmem:[#allocation7 + $0x198] sm:$0xf]
    %v3572 = vld [vmem:[#allocation7 + $0x19c] sm:$0xf]
    %v3573 = vld [vmem:[#allocation7 + $0x1a0] sm:$0xf]
    %v3574 = vld [vmem:[#allocation7 + $0x1a4] sm:$0xf]
    %v3575 = vld [vmem:[#allocation7 + $0x1a8] sm:$0xf]
    %v3576 = vld [vmem:[#allocation7 + $0x1ac] sm:$0xf]
    %v3577 = vld [vmem:[#allocation7 + $0x1b0] sm:$0xf]
    %v3578 = vld [vmem:[#allocation7 + $0x1b4] sm:$0xf]
    %v3579 = vld [vmem:[#allocation7 + $0x1b8] sm:$0xf]
    %v3580 = vld [vmem:[#allocation7 + $0x1bc] sm:$0xf]
    %v3581 = vld [vmem:[#allocation7 + $0x1c0] sm:$0xf]
    %v3582 = vld [vmem:[#allocation7 + $0x1c4] sm:$0xf]
    %v3583 = vld [vmem:[#allocation7 + $0x1c8] sm:$0xf]
    %v3584 = vld [vmem:[#allocation7 + $0x1cc] sm:$0xf]
    %v3585 = vld [vmem:[#allocation7 + $0x1d0] sm:$0xf]
    %v3586 = vld [vmem:[#allocation7 + $0x1d4] sm:$0xf]
    %v3587 = vld [vmem:[#allocation7 + $0x1d8] sm:$0xf]
    %v3588 = vld [vmem:[#allocation7 + $0x1dc] sm:$0xf]
    %v3589 = vld [vmem:[#allocation7 + $0x1e0] sm:$0xf]
    %v3590 = vld [vmem:[#allocation7 + $0x1e4] sm:$0xf]
    %v3591 = vld [vmem:[#allocation7 + $0x1e8] sm:$0xf]
    %v3592 = vld [vmem:[#allocation7 + $0x1ec] sm:$0xf]
    %v3593 = vld [vmem:[#allocation7 + $0x1f0] sm:$0xf]
    %v3594 = vld [vmem:[#allocation7 + $0x1f4] sm:$0xf]
    %v3595 = vld [vmem:[#allocation7 + $0x1f8] sm:$0xf]
    %v3596 = vld [vmem:[#allocation7 + $0x1fc] sm:$0xf]
    %v3725 = vunpack.c.l.b16 %v3469
    %v3726 = vunpack.c.l.b16 %v3470
    %v3727 = vunpack.c.l.b16 %v3471
    %v3728 = vunpack.c.l.b16 %v3472
    %v3729 = vunpack.c.l.b16 %v3473
    %v3730 = vunpack.c.l.b16 %v3474
    %v3731 = vunpack.c.l.b16 %v3475
    %v3732 = vunpack.c.l.b16 %v3476
    %v3733 = vunpack.c.l.b16 %v3477
    %v3734 = vunpack.c.l.b16 %v3478
    %v3735 = vunpack.c.l.b16 %v3479
    %v3736 = vunpack.c.l.b16 %v3480
    %v3737 = vunpack.c.l.b16 %v3481
    %v3738 = vunpack.c.l.b16 %v3482
    %v3739 = vunpack.c.l.b16 %v3483
    %v3740 = vunpack.c.l.b16 %v3484
    %v3741 = vunpack.c.l.b16 %v3485
    %v3742 = vunpack.c.l.b16 %v3486
    %v3743 = vunpack.c.l.b16 %v3487
    %v3744 = vunpack.c.l.b16 %v3488
    %v3745 = vunpack.c.l.b16 %v3489
    %v3746 = vunpack.c.l.b16 %v3490
    %v3747 = vunpack.c.l.b16 %v3491
    %v3748 = vunpack.c.l.b16 %v3492
    %v3749 = vunpack.c.l.b16 %v3493
    %v3750 = vunpack.c.l.b16 %v3494
    %v3751 = vunpack.c.l.b16 %v3495
    %v3752 = vunpack.c.l.b16 %v3496
    %v3753 = vunpack.c.l.b16 %v3497
    %v3754 = vunpack.c.l.b16 %v3498
    %v3755 = vunpack.c.l.b16 %v3499
    %v3756 = vunpack.c.l.b16 %v3500
    %v3757 = vunpack.c.l.b16 %v3501
    %v3758 = vunpack.c.l.b16 %v3502
    %v3759 = vunpack.c.l.b16 %v3503
    %v3760 = vunpack.c.l.b16 %v3504
    %v3761 = vunpack.c.l.b16 %v3505
    %v3762 = vunpack.c.l.b16 %v3506
    %v3763 = vunpack.c.l.b16 %v3507
    %v3764 = vunpack.c.l.b16 %v3508
    %v3765 = vunpack.c.l.b16 %v3509
    %v3766 = vunpack.c.l.b16 %v3510
    %v3767 = vunpack.c.l.b16 %v3511
    %v3768 = vunpack.c.l.b16 %v3512
    %v3769 = vunpack.c.l.b16 %v3513
    %v3770 = vunpack.c.l.b16 %v3514
    %v3771 = vunpack.c.l.b16 %v3515
    %v3772 = vunpack.c.l.b16 %v3516
    %v3773 = vunpack.c.l.b16 %v3517
    %v3774 = vunpack.c.l.b16 %v3518
    %v3775 = vunpack.c.l.b16 %v3519
    %v3776 = vunpack.c.l.b16 %v3520
    %v3777 = vunpack.c.l.b16 %v3521
    %v3778 = vunpack.c.l.b16 %v3522
    %v3779 = vunpack.c.l.b16 %v3523
    %v3780 = vunpack.c.l.b16 %v3524
    %v3781 = vunpack.c.l.b16 %v3525
    %v3782 = vunpack.c.l.b16 %v3526
    %v3783 = vunpack.c.l.b16 %v3527
    %v3784 = vunpack.c.l.b16 %v3528
    %v3785 = vunpack.c.l.b16 %v3529
    %v3786 = vunpack.c.l.b16 %v3530
    %v3787 = vunpack.c.l.b16 %v3531
    %v3788 = vunpack.c.l.b16 %v3532
    %v3789 = vunpack.c.l.b16 %v3533
    %v3790 = vunpack.c.l.b16 %v3534
    %v3791 = vunpack.c.l.b16 %v3535
    %v3792 = vunpack.c.l.b16 %v3536
    %v3793 = vunpack.c.l.b16 %v3537
    %v3794 = vunpack.c.l.b16 %v3538
    %v3795 = vunpack.c.l.b16 %v3539
    %v3796 = vunpack.c.l.b16 %v3540
    %v3797 = vunpack.c.l.b16 %v3541
    %v3798 = vunpack.c.l.b16 %v3542
    %v3799 = vunpack.c.l.b16 %v3543
    %v3800 = vunpack.c.l.b16 %v3544
    %v3801 = vunpack.c.l.b16 %v3545
    %v3802 = vunpack.c.l.b16 %v3546
    %v3803 = vunpack.c.l.b16 %v3547
    %v3804 = vunpack.c.l.b16 %v3548
    %v3805 = vunpack.c.l.b16 %v3549
    %v3806 = vunpack.c.l.b16 %v3550
    %v3807 = vunpack.c.l.b16 %v3551
    %v3808 = vunpack.c.l.b16 %v3552
    %v3809 = vunpack.c.l.b16 %v3553
    %v3810 = vunpack.c.l.b16 %v3554
    %v3811 = vunpack.c.l.b16 %v3555
    %v3812 = vunpack.c.l.b16 %v3556
    %v3813 = vunpack.c.l.b16 %v3557
    %v3814 = vunpack.c.l.b16 %v3558
    %v3815 = vunpack.c.l.b16 %v3559
    %v3816 = vunpack.c.l.b16 %v3560
    %v3817 = vunpack.c.l.b16 %v3561
    %v3818 = vunpack.c.l.b16 %v3562
    %v3819 = vunpack.c.l.b16 %v3563
    %v3820 = vunpack.c.l.b16 %v3564
    %v3821 = vunpack.c.l.b16 %v3565
    %v3822 = vunpack.c.l.b16 %v3566
    %v3823 = vunpack.c.l.b16 %v3567
    %v3824 = vunpack.c.l.b16 %v3568
    %v3825 = vunpack.c.l.b16 %v3569
    %v3826 = vunpack.c.l.b16 %v3570
    %v3827 = vunpack.c.l.b16 %v3571
    %v3828 = vunpack.c.l.b16 %v3572
    %v3829 = vunpack.c.l.b16 %v3573
    %v3830 = vunpack.c.l.b16 %v3574
    %v3831 = vunpack.c.l.b16 %v3575
    %v3832 = vunpack.c.l.b16 %v3576
    %v3833 = vunpack.c.l.b16 %v3577
    %v3834 = vunpack.c.l.b16 %v3578
    %v3835 = vunpack.c.l.b16 %v3579
    %v3836 = vunpack.c.l.b16 %v3580
    %v3837 = vunpack.c.l.b16 %v3581
    %v3838 = vunpack.c.l.b16 %v3582
    %v3839 = vunpack.c.l.b16 %v3583
    %v3840 = vunpack.c.l.b16 %v3584
    %v3841 = vunpack.c.l.b16 %v3585
    %v3842 = vunpack.c.l.b16 %v3586
    %v3843 = vunpack.c.l.b16 %v3587
    %v3844 = vunpack.c.l.b16 %v3588
    %v3845 = vunpack.c.l.b16 %v3589
    %v3846 = vunpack.c.l.b16 %v3590
    %v3847 = vunpack.c.l.b16 %v3591
    %v3848 = vunpack.c.l.b16 %v3592
    %v3849 = vunpack.c.l.b16 %v3593
    %v3850 = vunpack.c.l.b16 %v3594
    %v3851 = vunpack.c.l.b16 %v3595
    %v3852 = vunpack.c.l.b16 %v3596
    %v3853 = vpack.c.b16 %v3726, %v3725
    %v3854 = vpack.c.b16 %v3728, %v3727
    %v3855 = vpack.c.b16 %v3730, %v3729
    %v3856 = vpack.c.b16 %v3732, %v3731
    %v3857 = vpack.c.b16 %v3734, %v3733
    %v3858 = vpack.c.b16 %v3736, %v3735
    %v3859 = vpack.c.b16 %v3738, %v3737
    %v3860 = vpack.c.b16 %v3740, %v3739
    %v3861 = vpack.c.b16 %v3742, %v3741
    %v3862 = vpack.c.b16 %v3744, %v3743
    %v3863 = vpack.c.b16 %v3746, %v3745
    %v3864 = vpack.c.b16 %v3748, %v3747
    %v3865 = vpack.c.b16 %v3750, %v3749
    %v3866 = vpack.c.b16 %v3752, %v3751
    %v3867 = vpack.c.b16 %v3754, %v3753
    %v3868 = vpack.c.b16 %v3756, %v3755
    %v3869 = vpack.c.b16 %v3758, %v3757
    %v3870 = vpack.c.b16 %v3760, %v3759
    %v3871 = vpack.c.b16 %v3762, %v3761
    %v3872 = vpack.c.b16 %v3764, %v3763
    %v3873 = vpack.c.b16 %v3766, %v3765
    %v3874 = vpack.c.b16 %v3768, %v3767
    %v3875 = vpack.c.b16 %v3770, %v3769
    %v3876 = vpack.c.b16 %v3772, %v3771
    %v3877 = vpack.c.b16 %v3774, %v3773
    %v3878 = vpack.c.b16 %v3776, %v3775
    %v3879 = vpack.c.b16 %v3778, %v3777
    %v3880 = vpack.c.b16 %v3780, %v3779
    %v3881 = vpack.c.b16 %v3782, %v3781
    %v3882 = vpack.c.b16 %v3784, %v3783
    %v3883 = vpack.c.b16 %v3786, %v3785
    %v3884 = vpack.c.b16 %v3788, %v3787
    %v3885 = vpack.c.b16 %v3790, %v3789
    %v3886 = vpack.c.b16 %v3792, %v3791
    %v3887 = vpack.c.b16 %v3794, %v3793
    %v3888 = vpack.c.b16 %v3796, %v3795
    %v3889 = vpack.c.b16 %v3798, %v3797
    %v3890 = vpack.c.b16 %v3800, %v3799
    %v3891 = vpack.c.b16 %v3802, %v3801
    %v3892 = vpack.c.b16 %v3804, %v3803
    %v3893 = vpack.c.b16 %v3806, %v3805
    %v3894 = vpack.c.b16 %v3808, %v3807
    %v3895 = vpack.c.b16 %v3810, %v3809
    %v3896 = vpack.c.b16 %v3812, %v3811
    %v3897 = vpack.c.b16 %v3814, %v3813
    %v3898 = vpack.c.b16 %v3816, %v3815
    %v3899 = vpack.c.b16 %v3818, %v3817
    %v3900 = vpack.c.b16 %v3820, %v3819
    %v3901 = vpack.c.b16 %v3822, %v3821
    %v3902 = vpack.c.b16 %v3824, %v3823
    %v3903 = vpack.c.b16 %v3826, %v3825
    %v3904 = vpack.c.b16 %v3828, %v3827
    %v3905 = vpack.c.b16 %v3830, %v3829
    %v3906 = vpack.c.b16 %v3832, %v3831
    %v3907 = vpack.c.b16 %v3834, %v3833
    %v3908 = vpack.c.b16 %v3836, %v3835
    %v3909 = vpack.c.b16 %v3838, %v3837
    %v3910 = vpack.c.b16 %v3840, %v3839
    %v3911 = vpack.c.b16 %v3842, %v3841
    %v3912 = vpack.c.b16 %v3844, %v3843
    %v3913 = vpack.c.b16 %v3846, %v3845
    %v3914 = vpack.c.b16 %v3848, %v3847
    %v3915 = vpack.c.b16 %v3850, %v3849
    %v3916 = vpack.c.b16 %v3852, %v3851
    %3981 = vmatprep.subr.bf16.mxu0 0
    %3982 = vmatpush1.bf16.msra.mxu0 %v3853
    %3983 = vmatprep.subr.bf16.mxu0 0
    %3984 = vmatpush1.bf16.msra.mxu0 %v3854
    %3985 = vmatprep.subr.bf16.mxu0 0
    %3986 = vmatpush1.bf16.msra.mxu0 %v3855
    %3987 = vmatprep.subr.bf16.mxu0 0
    %3988 = vmatpush1.bf16.msra.mxu0 %v3856
    %3989 = vmatprep.subr.bf16.mxu0 0
    %3990 = vmatpush1.bf16.msra.mxu0 %v3857
    %3991 = vmatprep.subr.bf16.mxu0 0
    %3992 = vmatpush1.bf16.msra.mxu0 %v3858
    %3993 = vmatprep.subr.bf16.mxu0 0
    %3994 = vmatpush1.bf16.msra.mxu0 %v3859
    %3995 = vmatprep.subr.bf16.mxu0 0
    %3996 = vmatpush1.bf16.msra.mxu0 %v3860
    %3997 = vmatprep.subr.bf16.mxu0 0
    %3998 = vmatpush1.bf16.msra.mxu0 %v3861
    %3999 = vmatprep.subr.bf16.mxu0 0
    %4000 = vmatpush1.bf16.msra.mxu0 %v3862
    %4001 = vmatprep.subr.bf16.mxu0 0
    %4002 = vmatpush1.bf16.msra.mxu0 %v3863
    %4003 = vmatprep.subr.bf16.mxu0 0
    %4004 = vmatpush1.bf16.msra.mxu0 %v3864
    %4005 = vmatprep.subr.bf16.mxu0 0
    %4006 = vmatpush1.bf16.msra.mxu0 %v3865
    %4007 = vmatprep.subr.bf16.mxu0 0
    %4008 = vmatpush1.bf16.msra.mxu0 %v3866
    %4009 = vmatprep.subr.bf16.mxu0 0
    %4010 = vmatpush1.bf16.msra.mxu0 %v3867
    %4011 = vmatprep.subr.bf16.mxu0 0
    %4012 = vmatpush1.bf16.msra.mxu0 %v3868
    %4013 = vmatprep.mubr.bf16.mxu0 %v3462
    %4014 = vmatmul.mubr.bf16.gmra.mrb[0].mxu0 %v3461
    %v4015 = vpop.f32.mrb[0].mxu0
    %v4016 = vadd.f32 0.0, %v4015
    %v4017 = vpop.f32.mrb[0].mxu0
    %v4018 = vpop.f32.mrb[0].mxu0
    %v4019 = vpop.f32.mrb[0].mxu0
    %4020 = vdwg.mxu0
    %4021 = vmatprep.subr.bf16.mxu0 0
    %4022 = vmatpush1.bf16.msra.mxu0 %v3869
    %4023 = vmatprep.subr.bf16.mxu0 0
    %4024 = vmatpush1.bf16.msra.mxu0 %v3870
    %4025 = vmatprep.subr.bf16.mxu0 0
    %4026 = vmatpush1.bf16.msra.mxu0 %v3871
    %4027 = vmatprep.subr.bf16.mxu0 0
    %4028 = vmatpush1.bf16.msra.mxu0 %v3872
    %4029 = vmatprep.subr.bf16.mxu0 0
    %4030 = vmatpush1.bf16.msra.mxu0 %v3873
    %4031 = vmatprep.subr.bf16.mxu0 0
    %4032 = vmatpush1.bf16.msra.mxu0 %v3874
    %4033 = vmatprep.subr.bf16.mxu0 0
    %4034 = vmatpush1.bf16.msra.mxu0 %v3875
    %4035 = vmatprep.subr.bf16.mxu0 0
    %4036 = vmatpush1.bf16.msra.mxu0 %v3876
    %4037 = vmatprep.subr.bf16.mxu0 0
    %4038 = vmatpush1.bf16.msra.mxu0 %v3877
    %4039 = vmatprep.subr.bf16.mxu0 0
    %4040 = vmatpush1.bf16.msra.mxu0 %v3878
    %4041 = vmatprep.subr.bf16.mxu0 0
    %4042 = vmatpush1.bf16.msra.mxu0 %v3879
    %4043 = vmatprep.subr.bf16.mxu0 0
    %4044 = vmatpush1.bf16.msra.mxu0 %v3880
    %4045 = vmatprep.subr.bf16.mxu0 0
    %4046 = vmatpush1.bf16.msra.mxu0 %v3881
    %4047 = vmatprep.subr.bf16.mxu0 0
    %4048 = vmatpush1.bf16.msra.mxu0 %v3882
    %4049 = vmatprep.subr.bf16.mxu0 0
    %4050 = vmatpush1.bf16.msra.mxu0 %v3883
    %4051 = vmatprep.subr.bf16.mxu0 0
    %4052 = vmatpush1.bf16.msra.mxu0 %v3884
    %4053 = vmatprep.mubr.bf16.mxu0 %v3464
    %4054 = vmatmul.mubr.bf16.gmra.mrb[0].mxu0 %v3463
    %v4055 = vpop.f32.mrb[0].mxu0
    %v4056 = vadd.f32 %v4016, %v4055
    %v4057 = vpop.f32.mrb[0].mxu0
    %v4058 = vpop.f32.mrb[0].mxu0
    %v4059 = vpop.f32.mrb[0].mxu0
    %4060 = vdwg.mxu0
    %4061 = vmatprep.subr.bf16.mxu0 0
    %4062 = vmatpush1.bf16.msra.mxu0 %v3885
    %4063 = vmatprep.subr.bf16.mxu0 0
    %4064 = vmatpush1.bf16.msra.mxu0 %v3886
    %4065 = vmatprep.subr.bf16.mxu0 0
    %4066 = vmatpush1.bf16.msra.mxu0 %v3887
    %4067 = vmatprep.subr.bf16.mxu0 0
    %4068 = vmatpush1.bf16.msra.mxu0 %v3888
    %4069 = vmatprep.subr.bf16.mxu0 0
    %4070 = vmatpush1.bf16.msra.mxu0 %v3889
    %4071 = vmatprep.subr.bf16.mxu0 0
    %4072 = vmatpush1.bf16.msra.mxu0 %v3890
    %4073 = vmatprep.subr.bf16.mxu0 0
    %4074 = vmatpush1.bf16.msra.mxu0 %v3891
    %4075 = vmatprep.subr.bf16.mxu0 0
    %4076 = vmatpush1.bf16.msra.mxu0 %v3892
    %4077 = vmatprep.subr.bf16.mxu0 0
    %4078 = vmatpush1.bf16.msra.mxu0 %v3893
    %4079 = vmatprep.subr.bf16.mxu0 0
    %4080 = vmatpush1.bf16.msra.mxu0 %v3894
    %4081 = vmatprep.subr.bf16.mxu0 0
    %4082 = vmatpush1.bf16.msra.mxu0 %v3895
    %4083 = vmatprep.subr.bf16.mxu0 0
    %4084 = vmatpush1.bf16.msra.mxu0 %v3896
    %4085 = vmatprep.subr.bf16.mxu0 0
    %4086 = vmatpush1.bf16.msra.mxu0 %v3897
    %4087 = vmatprep.subr.bf16.mxu0 0
    %4088 = vmatpush1.bf16.msra.mxu0 %v3898
    %4089 = vmatprep.subr.bf16.mxu0 0
    %4090 = vmatpush1.bf16.msra.mxu0 %v3899
    %4091 = vmatprep.subr.bf16.mxu0 0
    %4092 = vmatpush1.bf16.msra.mxu0 %v3900
    %4093 = vmatprep.mubr.bf16.mxu0 %v3466
    %4094 = vmatmul.mubr.bf16.gmra.mrb[0].mxu0 %v3465
    %v4095 = vpop.f32.mrb[0].mxu0
    %v4096 = vadd.f32 %v4056, %v4095
    %v4097 = vpop.f32.mrb[0].mxu0
    %v4098 = vpop.f32.mrb[0].mxu0
    %v4099 = vpop.f32.mrb[0].mxu0
    %4100 = vdwg.mxu0
    %4101 = vmatprep.subr.bf16.mxu0 0
    %4102 = vmatpush1.bf16.msra.mxu0 %v3901
    %4103 = vmatprep.subr.bf16.mxu0 0
    %4104 = vmatpush1.bf16.msra.mxu0 %v3902
    %4105 = vmatprep.subr.bf16.mxu0 0
    %4106 = vmatpush1.bf16.msra.mxu0 %v3903
    %4107 = vmatprep.subr.bf16.mxu0 0
    %4108 = vmatpush1.bf16.msra.mxu0 %v3904
    %4109 = vmatprep.subr.bf16.mxu0 0
    %4110 = vmatpush1.bf16.msra.mxu0 %v3905
    %4111 = vmatprep.subr.bf16.mxu0 0
    %4112 = vmatpush1.bf16.msra.mxu0 %v3906
    %4113 = vmatprep.subr.bf16.mxu0 0
    %4114 = vmatpush1.bf16.msra.mxu0 %v3907
    %4115 = vmatprep.subr.bf16.mxu0 0
    %4116 = vmatpush1.bf16.msra.mxu0 %v3908
    %4117 = vmatprep.subr.bf16.mxu0 0
    %4118 = vmatpush1.bf16.msra.mxu0 %v3909
    %4119 = vmatprep.subr.bf16.mxu0 0
    %4120 = vmatpush1.bf16.msra.mxu0 %v3910
    %4121 = vmatprep.subr.bf16.mxu0 0
    %4122 = vmatpush1.bf16.msra.mxu0 %v3911
    %4123 = vmatprep.subr.bf16.mxu0 0
    %4124 = vmatpush1.bf16.msra.mxu0 %v3912
    %4125 = vmatprep.subr.bf16.mxu0 0
    %4126 = vmatpush1.bf16.msra.mxu0 %v3913
    %4127 = vmatprep.subr.bf16.mxu0 0
    %4128 = vmatpush1.bf16.msra.mxu0 %v3914
    %4129 = vmatprep.subr.bf16.mxu0 0
    %4130 = vmatpush1.bf16.msra.mxu0 %v3915
    %4131 = vmatprep.subr.bf16.mxu0 0
    %4132 = vmatpush1.bf16.msra.mxu0 %v3916
    %4133 = vmatprep.mubr.bf16.mxu0 %v3468
    %4134 = vmatmul.mubr.bf16.gmra.mrb[0].mxu0 %v3467
    %v4135 = vpop.f32.mrb[0].mxu0
    %v4136 = vadd.f32 %v4096, %v4135
    %v4137 = vpop.f32.mrb[0].mxu0
    %v4138 = vpop.f32.mrb[0].mxu0
    %v4139 = vpop.f32.mrb[0].mxu0
    %4140 = vdwg.mxu0
    %v4141 = vmul.f32 %v4136, 0.01
    %v4142 = vmax.f32 %v4136, %v4141
    %v4143 = vpack.c.bf16 %v4142, %v4142
    %v4144 = vld [vmem:[#allocation8] sm:$0xf]
    %v4145 = vld [vmem:[#allocation8 + $0x4] sm:$0xf]
    %v4146 = vld [vmem:[#allocation8 + $0x8] sm:$0xf]
    %v4147 = vld [vmem:[#allocation8 + $0xc] sm:$0xf]
    %v4148 = vld [vmem:[#allocation8 + $0x10] sm:$0xf]
    %v4149 = vld [vmem:[#allocation8 + $0x14] sm:$0xf]
    %v4150 = vld [vmem:[#allocation8 + $0x18] sm:$0xf]
    %v4151 = vld [vmem:[#allocation8 + $0x1c] sm:$0xf]
    %v4152 = vld [vmem:[#allocation8 + $0x20] sm:$0xf]
    %v4153 = vld [vmem:[#allocation8 + $0x24] sm:$0xf]
    %v4154 = vld [vmem:[#allocation8 + $0x28] sm:$0xf]
    %v4155 = vld [vmem:[#allocation8 + $0x2c] sm:$0xf]
    %v4156 = vld [vmem:[#allocation8 + $0x30] sm:$0xf]
    %v4157 = vld [vmem:[#allocation8 + $0x34] sm:$0xf]
    %v4158 = vld [vmem:[#allocation8 + $0x38] sm:$0xf]
    %v4159 = vld [vmem:[#allocation8 + $0x3c] sm:$0xf]
    %v4176 = vunpack.c.l.b16 %v4144
    %v4177 = vunpack.c.l.b16 %v4145
    %v4178 = vunpack.c.l.b16 %v4146
    %v4179 = vunpack.c.l.b16 %v4147
    %v4180 = vunpack.c.l.b16 %v4148
    %v4181 = vunpack.c.l.b16 %v4149
    %v4182 = vunpack.c.l.b16 %v4150
    %v4183 = vunpack.c.l.b16 %v4151
    %v4184 = vunpack.c.l.b16 %v4152
    %v4185 = vunpack.c.l.b16 %v4153
    %v4186 = vunpack.c.l.b16 %v4154
    %v4187 = vunpack.c.l.b16 %v4155
    %v4188 = vunpack.c.l.b16 %v4156
    %v4189 = vunpack.c.l.b16 %v4157
    %v4190 = vunpack.c.l.b16 %v4158
    %v4191 = vunpack.c.l.b16 %v4159
    %v4192 = vpack.c.b16 %v4177, %v4176
    %v4193 = vpack.c.b16 %v4179, %v4178
    %v4194 = vpack.c.b16 %v4181, %v4180
    %v4195 = vpack.c.b16 %v4183, %v4182
    %v4196 = vpack.c.b16 %v4185, %v4184
    %v4197 = vpack.c.b16 %v4187, %v4186
    %v4198 = vpack.c.b16 %v4189, %v4188
    %v4199 = vpack.c.b16 %v4191, %v4190
    %4208 = vmatprep.subr.bf16.mxu0 0
    %4209 = vmatpush1.bf16.msra.mxu0 %v4192
    %4210 = vmatprep.subr.bf16.mxu0 0
    %4211 = vmatpush1.bf16.msra.mxu0 %v4193
    %4212 = vmatprep.subr.bf16.mxu0 0
    %4213 = vmatpush1.bf16.msra.mxu0 %v4194
    %4214 = vmatprep.subr.bf16.mxu0 0
    %4215 = vmatpush1.bf16.msra.mxu0 %v4195
    %4216 = vmatprep.subr.bf16.mxu0 0
    %4217 = vmatpush1.bf16.msra.mxu0 %v4196
    %4218 = vmatprep.subr.bf16.mxu0 0
    %4219 = vmatpush1.bf16.msra.mxu0 %v4197
    %4220 = vmatprep.subr.bf16.mxu0 0
    %4221 = vmatpush1.bf16.msra.mxu0 %v4198
    %4222 = vmatprep.subr.bf16.mxu0 0
    %4223 = vmatpush1.bf16.msra.mxu0 %v4199
    %4224 = vmatprep.subr.bf16.mxu0 0
    %4225 = vmatpush1.bf16.msra.mxu0 0
    %4226 = vmatprep.subr.bf16.mxu0 0
    %4227 = vmatpush1.bf16.msra.mxu0 0
    %4228 = vmatprep.subr.bf16.mxu0 0
    %4229 = vmatpush1.bf16.msra.mxu0 0
    %4230 = vmatprep.subr.bf16.mxu0 0
    %4231 = vmatpush1.bf16.msra.mxu0 0
    %4232 = vmatprep.subr.bf16.mxu0 0
    %4233 = vmatpush1.bf16.msra.mxu0 0
    %4234 = vmatprep.subr.bf16.mxu0 0
    %4235 = vmatpush1.bf16.msra.mxu0 0
    %4236 = vmatprep.subr.bf16.mxu0 0
    %4237 = vmatpush1.bf16.msra.mxu0 0
    %4238 = vmatprep.subr.bf16.mxu0 0
    %4239 = vmatpush1.bf16.msra.mxu0 0
    %4240 = vmatprep.mubr.bf16.mxu0 0
    %4241 = vmatmul.mubr.bf16.gmra.mrb[0].mxu0 %v4143
    %v4242 = vpop.f32.mrb[0].mxu0
    %v4243 = vadd.f32 0.0, %v4242
    %v4244 = vpop.f32.mrb[0].mxu0
    %v4245 = vpop.f32.mrb[0].mxu0
    %v4246 = vpop.f32.mrb[0].mxu0
    %4247 = vdwg.mxu0
    %v4248 = vmul.f32 %v4243, 0.01
    %v4249 = vmax.f32 %v4243, %v4248
    %4250 = vst [vmem:[#allocation10] sm:$0xff] %v4249
    // Predicated region
    $region34: #{tpu_custom_call.1} parent=1 // pred_check
      _
    $region35: #{tpu_custom_call.1} parent=1 // pred_check_branch
      %4252 = sbr.rel (0) target = $region37
    $region36: #{tpu_custom_call.1} parent=1 // pred_region
      %s4254 = ssub.s32 128, 128
      %4255 = vsyncadd [#allocation4], %s4254
      %s4257 = sshll.u32 [#allocation10], 4
      %s4258 = int_to_ptr.vmem [resolvable:$true] %s4257
      %4260 = dma.vmem_to_hbm [thread:$0]  %s4258, 128, %s4, [#allocation4]
    $region37: #{tpu_custom_call.1} parent=1 // pred_fallthru
      _
    // Predicated region
    $region38: #{tpu_custom_call.1} parent=1 // pred_check
      _
    $region39: #{tpu_custom_call.1} parent=1 // pred_check_branch
      %4262 = sbr.rel (0) target = $region41
    $region40: #{tpu_custom_call.1} parent=1 // pred_region
      %4263 = dma.done [#allocation4], 128
    $region41: #{tpu_custom_call.1} parent=1 // pred_fallthru
      _
    %4264 = vsyncpa [#allocation3], 1
    %4265 = vsyncpa [#allocation6], 1
    %4266 = vsyncpa [#allocation9], 1
    %4267 = vsyncpa [#allocation4], 1

</llo_original>
